<compile_context>
chip_gen: v6e
topology: v6e:2x2x1
jax: 0.10.0
libtpu: 0.0.40
codegen_flags: <defaults>
</compile_context>

<pallas_src>
import math
import functools

import numpy as np
import jax
import jax.numpy as jnp
from jax import lax
from jax.experimental import pallas as pl
from jax.experimental.pallas import tpu as pltpu


PRIMITIVES = ['none', 'skip_connect', 'diff_gcn', 'cheb_gcn']
NUM_OPS = len(PRIMITIVES)


# -----------------------------------------------------------------------------
# The single fused kernel: whole Network.forward for one batch element.
# -----------------------------------------------------------------------------
def _network_kernel(wsc_ref,                      # SMEM [n_scalars] f32 arch weights
                    x_ref,                        # [1, Cin, NT]   bf16  lanes=(t,n)
                    pe_ref,                       # [D, NT]        f32   PE + sqrt(D)*start_b
                    g_ref,                        # [NT, 4*NT]     bf16  [A1|A2|adp|L~] (kron I_T)
                    start_wt_ref,                 # [D, Cin]       bf16
                    gcn_wt_ref, gcn_b_ref,        # [E, c, 4c] bf16, [E, c, 1] f32
                    cheb_wt_ref,                  # [E, c, 2c]     bf16  [theta0|theta1]
                    skip_wt_ref, skip_b_ref,      # [L, 8D, D] bf16, [L, 8D, 1] f32
                    end1_wt_ref, end1_b_ref,      # [16D, 8D] bf16, [16D, 1] f32
                    end2_wt_ref, end2_b_ref,      # [S_pad, 16D] bf16, [S_pad, 1] f32
                    o_ref,                        # [1, S_pad, NT] f32
                    *, layers, steps, hid, n_nodes, t_pad, t_real):
    f32, bf16 = jnp.float32, jnp.bfloat16
    c = hid // 4
    NT = n_nodes * t_pad
    k_edges = sum(1 + i for i in range(steps))
    off_beta = layers * k_edges * NUM_OPS
    off_gamma = off_beta + layers * k_edges

    def mmf(a, b):                                # bf16 x bf16 MXU matmul, f32 accumulate
        return jnp.dot(a, b, preferred_element_type=f32)

    # channel_shuffle(groups=4) == fixed row permutation (no MXU matmul):
    # out[o] = in[(o % 4) * (hid // 4) + o // 4]
    perm_src = [(o % 4) * (hid // 4) + o // 4 for o in range(hid)]

    def shuffle_rows(a):
        return jnp.concatenate([a[i:i + 1] for i in perm_src], axis=0)

    gmat = g_ref[...]                             # fused graph operand, read once

    # ---- start linear + scale + positional embedding (bias pre-folded) ------
    x = mmf(start_wt_ref[...], x_ref[0]) * math.sqrt(hid) + pe_ref[...]   # [D, NT] f32

    def edge_out(xt, gx, e, w_skip, w_diff, w_cheb):
        # gx: [c, 4*NT] f32, aligned 128-lane column blocks of the fused graph matmul
        a1x = gx[:, 0 * NT:1 * NT]
        a2x = gx[:, 1 * NT:2 * NT]
        adx = gx[:, 2 * NT:3 * NT]
        lx = gx[:, 3 * NT:4 * NT]
        # diff_gcn: 1x1 conv on [x, A1 x, A2 x, adp x]
        hcat = jnp.concatenate([xt, a1x, a2x, adx], axis=0).astype(bf16)  # [4c, NT]
        diff = mmf(gcn_wt_ref[e], hcat) + gcn_b_ref[e]
        # cheb_gcn (order 2): theta0 @ x + theta1 @ (L~ x), single fused matmul
        chin = jnp.concatenate([xt, lx], axis=0).astype(bf16)             # [2c, NT]
        cheb = mmf(cheb_wt_ref[e], chin)
        # weighted op mixture ('none' contributes zero); elementwise stays f32
        return w_skip * xt + w_diff * diff + w_cheb * cheb                # [c, NT]

    skip = None
    prev = [x]
    g_ofs = 0
    for li in range(layers):
        # weighted mixture of previous layer states (gamma / weights3)
        xin = None
        for kk in range(len(prev)):
            term = wsc_ref[off_gamma + g_ofs + kk] * prev[kk]
            xin = term if xin is None else xin + term
        g_ofs += len(prev)

        # cell forward: per step, ONE fused graph matmul over the stacked xt's
        states = [xin]
        offset = 0
        for _ in range(steps):
            ns = len(states)
            xts = [s[:c, :] for s in states]                              # each [c, NT] f32
            xstk = jnp.concatenate(xts, axis=0).astype(bf16)              # [c*ns, NT]
            gxs = mmf(xstk, gmat)                                         # [c*ns, 4*NT]
            s_new = None
            for j in range(ns):
                e = li * k_edges + offset + j
                wb = e * NUM_OPS
                t1 = edge_out(xts[j], gxs[j * c:(j + 1) * c, :], e,
                              wsc_ref[wb + 1], wsc_ref[wb + 2], wsc_ref[wb + 3])
                contrib = wsc_ref[off_beta + e] * jnp.concatenate(
                    [t1, states[j][c:, :]], axis=0)                       # [D, NT]
                s_new = contrib if s_new is None else s_new + contrib
            # shuffle commutes with the (linear) edge sum -> apply once per step
            states.append(shuffle_rows(s_new))
            offset += ns
        xcell = states[-1]
        prev.append(xcell)

        # skip connection 1x1 conv, accumulated in-register (no HBM round trip)
        sk = mmf(skip_wt_ref[li], xcell.astype(bf16)) + skip_b_ref[li]    # [8D, NT]
        skip = sk if skip is None else skip + sk

    # ---- head: relu -> zero padded time lanes -> per-node max over time -----
    r = jnp.maximum(skip, 0.0)
    lane = lax.broadcasted_iota(jnp.int32, r.shape, 1)
    r = jnp.where(lane < n_nodes * t_real, r, 0.0)     # padded lanes cannot win the max
    # Segmented max over time: lanes are (t, n), so node n occupies the stride-N
    # residue class {n, n+N, ...}. Cyclic roll-doubling makes EVERY lane hold its
    # node's max -> head matmuls and the final store stay fully 128-lane dense.
    shift = n_nodes
    while shift < NT:
        r = jnp.maximum(r, pltpu.roll(r, shift=shift, axis=1))
        shift *= 2
    out1 = jnp.maximum(mmf(end1_wt_ref[...], r.astype(bf16)) + end1_b_ref[...], 0.0)
    o_ref[0] = mmf(end2_wt_ref[...], out1.astype(bf16)) + end2_b_ref[...]   # [S_pad, NT]


def fused_network_call(wsc, x0, pe_eff, gfused, p, args, B, N, T, t_pad, s_pad):
    hid = args.hid_dim
    NT = N * t_pad
    c = hid // 4
    k = sum(1 + i for i in range(args.steps))
    E = args.layers * k

    def full(*shape):
        return pl.BlockSpec(shape, lambda b, _n=len(shape): (0,) * _n)

    kern = functools.partial(_network_kernel, layers=args.layers, steps=args.steps,
                             hid=hid, n_nodes=N, t_pad=t_pad, t_real=T)

    # advisory cost hint for the XLA scheduler (dominant term: fused graph matmuls)
    flops = 2 * B * NT * (
        hid * args.in_dim
        + args.layers * (c * k * 4 * NT)
        + E * (4 * c * c + 2 * c * c)
        + args.layers * 8 * hid * hid
        + 16 * hid * 8 * hid + s_pad * 16 * hid)
    bytes_accessed = int(gfused.size * 2 + x0.size * 2 + B * s_pad * NT * 4
                         + sum(int(np.prod(p[n].shape)) * 2 for n in
                               ('start_wt', 'gcn_wt', 'cheb_wt',
                                'skip_wt', 'end1_wt', 'end2_wt')))

    return pl.pallas_call(
        kern,
        grid=(B,),
        in_specs=[
            pl.BlockSpec(memory_space=pltpu.MemorySpace.SMEM),        # arch scalars
            pl.BlockSpec((1, args.in_dim, NT), lambda b: (b, 0, 0)),  # x (per batch, bf16)
            full(hid, NT),                                            # PE + scaled start bias
            full(NT, 4 * NT),                                         # fused graph operand
            full(hid, args.in_dim),                                   # start linear weight
            full(E, c, 4 * c), full(E, c, 1),                         # diff_gcn convs
            full(E, c, 2 * c),                                        # cheb thetas [th0|th1]
            full(args.layers, hid * 8, hid), full(args.layers, hid * 8, 1),
            full(hid * 16, hid * 8), full(hid * 16, 1),               # end linear 1
            full(s_pad, hid * 16), full(s_pad, 1),                    # end linear 2 (row-padded)
        ],
        out_specs=pl.BlockSpec((1, s_pad, NT), lambda b: (b, 0, 0)),
        out_shape=jax.ShapeDtypeStruct((B, s_pad, NT), jnp.float32),
        compiler_params=pltpu.CompilerParams(
            dimension_semantics=("parallel",)),                       # v7x: 2 TCs
        cost_estimate=pl.CostEstimate(flops=int(flops), transcendentals=0,
                                      bytes_accessed=bytes_accessed),
    )(wsc, x0, pe_eff, gfused,
      p['start_wt'], p['gcn_wt'], p['gcn_b'], p['cheb_wt'],
      p['skip_wt'], p['skip_b'],
      p['end1_wt'], p['end1_b'], p['end2_wt'], p['end2_b'])


# -----------------------------------------------------------------------------
# Graph utilities & positional embedding (init-time numpy glue)
# -----------------------------------------------------------------------------
def asym_adj(adj):
    rowsum = adj.sum(axis=1)
    d_inv = np.where(rowsum > 0, 1.0 / np.maximum(rowsum, 1e-12), 0.0)
    return (np.diag(d_inv) @ adj).astype(np.float32)


def scaled_laplacian(W):
    D = np.diag(W.sum(axis=1))
    L = D - W
    lam = float(np.max(np.linalg.eigvalsh(L)))
    return (2.0 * L / lam - np.eye(W.shape[0])).astype(np.float32)


def positional_embedding(T, D):
    pe = np.zeros((T, D), dtype=np.float32)
    pos = np.arange(T, dtype=np.float32)[:, None]
    div = np.exp(np.arange(0, D, 2, dtype=np.float32) * (-math.log(10000.0) / D))
    pe[:, 0::2] = np.sin(pos * div)
    pe[:, 1::2] = np.cos(pos * div)
    return pe


# -----------------------------------------------------------------------------
# Network: parameter init + forward
# -----------------------------------------------------------------------------
class Args:
    in_dim = 2
    hid_dim = 8        # must be divisible by 4
    num_nodes = 8
    seq_len = 12
    layers = 2
    steps = 2
    temp = 1.0
    randomadj = True   # -> nodevec1/2 are random parameters (no SVD branch)


def init_network(key, args, adj_mx, t_pad, s_pad):
    N, hid = args.num_nodes, args.hid_dim
    c = hid // 4
    k = sum(1 + i for i in range(args.steps))
    k2 = sum(1 + i for i in range(args.layers))
    E = args.layers * k
    bf16 = jnp.bfloat16

    keys = iter(jax.random.split(key, 64))

    def nrm(shape, scale=0.1, dtype=jnp.float32):
        return (scale * jax.random.normal(next(keys), shape)).astype(dtype)

    params = {
        # TODO(synk): role of `alpha` inside the original cheb_gcn is unspecified;
        # kept as a parameter for parity but unused by the substituted op.
        'alpha':    nrm((2, 2), 1.0),
        'nodevec1': nrm((N, 10), 1.0),
        'nodevec2': nrm((10, N), 1.0),
        # 1x1-conv weights pre-transposed ([Cout, Cin]) and stored in bf16 (MXU
        # operands); biases stay f32 (added to the f32 accumulators).
        'start_wt': nrm((hid, args.in_dim), dtype=bf16),
        'start_b':  nrm((hid, 1)),
        'gcn_wt':   nrm((E, c, 4 * c), dtype=bf16),
        'gcn_b':    nrm((E, c, 1)),
        'cheb_wt':  nrm((E, c, 2 * c), dtype=bf16),      # [theta0 | theta1]
        'skip_wt':  nrm((args.layers, hid * 8, hid), dtype=bf16),
        'skip_b':   nrm((args.layers, hid * 8, 1)),
        'end1_wt':  nrm((hid * 16, hid * 8), dtype=bf16),
        'end1_b':   nrm((hid * 16, 1)),
        # row-padded to s_pad so the final store is fully tile-aligned;
        # padded rows are sliced off in the wrapper.
        'end2_wt':  nrm((s_pad, hid * 16), dtype=bf16),
        'end2_b':   nrm((s_pad, 1)),
        'alphas':   (0.001 * jax.random.normal(next(keys), (args.layers, k, NUM_OPS))).astype(jnp.float32),
        'betas':    (0.001 * jax.random.normal(next(keys), (args.layers, k))).astype(jnp.float32),
        'gamma':    (0.001 * jax.random.normal(next(keys), (k2,))).astype(jnp.float32),
    }

    # Static graph operators, Kronecker-expanded over the time-major (t, n) lane
    # axis: node_mix(A, x) == x_flat @ kron(I_Tpad, A^T).
    # cheb_polynomial(L~, 2) = [I, L~]; the identity term needs no operator.
    a1 = asym_adj(adj_mx)
    a2 = asym_adj(adj_mx.T)
    l_tilde = scaled_laplacian(adj_mx)
    eye_t = np.eye(t_pad, dtype=np.float32)
    g_a12 = np.concatenate([np.kron(eye_t, a1.T), np.kron(eye_t, a2.T)], axis=1)
    g_l = np.kron(eye_t, l_tilde.T)

    pe = positional_embedding(t_pad, hid)             # [t_pad, hid]
    pe_exp = np.repeat(pe.T, N, axis=1)               # [hid, N*t_pad], lanes=(t, n)

    statics = {
        'g_a12':  jnp.asarray(g_a12, dtype=jnp.bfloat16),   # [NT, 2*NT]
        'g_l':    jnp.asarray(g_l, dtype=jnp.bfloat16),     # [NT, NT]
        'pe_exp': jnp.asarray(pe_exp, dtype=jnp.float32),
    }
    return params, statics


def network_forward(params, statics, x_in, count, args, t_pad, s_pad):
    B, Cin, N, T = x_in.shape
    hid = args.hid_dim

    # Adaptive adjacency (GraphWaveNet-style), Kronecker-expanded and fused with
    # the static operators into one [NT, 4*NT] bf16 operand. Tiny 8x8 math: plain XLA.
    adp = jax.nn.softmax(
        jax.nn.relu(jnp.dot(params['nodevec1'], params['nodevec2'])), axis=1)
    g_adp = jnp.kron(jnp.eye(t_pad, dtype=jnp.float32), adp.T).astype(jnp.bfloat16)
    gfused = jnp.concatenate([statics['g_a12'], g_adp, statics['g_l']], axis=1)

    # Architecture mixture weights -> one flat f32 vector read from SMEM.
    wa = jax.nn.softmax(params['alphas'] / args.temp, axis=-1)        # [L, k, ops]
    w2_rows = []
    for i in range(args.layers):
        parts = [jax.nn.softmax(params['betas'][i][0:1], axis=-1)]
        n, start = 2, 1
        for _ in range(args.steps - 1):
            end = start + n
            parts.append(jax.nn.softmax(params['betas'][i][start:end], axis=-1))
            start, n = end, n + 1
        w2_rows.append(jnp.concatenate(parts, axis=0))
    w3_rows = []
    n2, start2 = 1, 0
    for i in range(args.layers):
        w3 = jax.nn.softmax(params['gamma'][start2:start2 + n2] / args.temp, axis=-1)
        if count == 0 and i == 0:
            print('alpha:', params['alphas'])
            print('weights:', wa[i])
        if count == 0:
            print('gamma:', w3)
        w3_rows.append(w3)
        start2 += n2
        n2 += 1
    wsc = jnp.concatenate([wa.reshape(-1), jnp.concatenate(w2_rows)] + w3_rows)

    # start-linear bias folded into the PE slab: sqrt(D)*(Wx + b) + pe
    pe_eff = statics['pe_exp'] + math.sqrt(hid) * params['start_b']

    # input -> time-major lane-dense layout, zero-padded so N*t_pad = 128
    x0 = jnp.transpose(x_in, (0, 1, 3, 2))                         # [B, Cin, T, N]
    x0 = jnp.pad(x0, ((0, 0), (0, 0), (0, t_pad - T), (0, 0)))
    x0 = x0.reshape(B, Cin, t_pad * N).astype(jnp.bfloat16)

    out = fused_network_call(wsc, x0, pe_eff, gfused, params, args,
                             B, N, T, t_pad, s_pad)
    # output lane t*N+n of row s holds logits[s, n] (identical for every t):
    # slice the lane-dense store down to (B, seq_len, N, 1).
    return out[:, :args.seq_len, :N, None]


# -----------------------------------------------------------------------------
if __name__ == "__main__":
    args = Args()

    key = jax.random.PRNGKey(0)
    k_adj, k_param, k_x = jax.random.split(key, 3)

    N, T = args.num_nodes, args.seq_len
    # pad the time axis so that N * t_pad is a multiple of 128 (full lane vregs)
    lane_step = 128 // math.gcd(N, 128)
    t_pad = int(-(-T // lane_step) * lane_step)      # 12 -> 16  (N*t_pad = 128)
    s_pad = int(-(-args.seq_len // 8) * 8)           # 12 -> 16  (tile-aligned store)

    # deterministic symmetric non-negative adjacency with self-loops
    A = np.asarray(jax.random.uniform(k_adj, (N, N)), dtype=np.float32)
    A = (A + A.T) / 2.0
    np.fill_diagonal(A, 1.0)

    params, statics = init_network(k_param, args, A, t_pad, s_pad)

    B = 2
    x_in = jax.random.normal(k_x, (B, args.in_dim, N, T), dtype=jnp.float32)

    fwd = jax.jit(lambda p, xin: network_forward(p, statics, xin, count=1,
                                                 args=args, t_pad=t_pad, s_pad=s_pad))
    logits = fwd(params, x_in)
    jax.block_until_ready(logits)

    assert logits.shape == (B, args.seq_len, N, 1), logits.shape
    assert bool(jnp.all(jnp.isfinite(logits)))
    print("KERNEL_OK")
</pallas_src>

<mosaic_0001>
module attributes {stable_mosaic.version = 11 : i64} {
  func.func @_network_kernel(%arg0: i32, %arg1: memref<33xf32, #tpu.memory_space<smem>>, %arg2: memref<1x2x128xbf16, #tpu.memory_space<vmem>>, %arg3: memref<8x128xf32, #tpu.memory_space<vmem>>, %arg4: memref<128x512xbf16, #tpu.memory_space<vmem>>, %arg5: memref<8x2xbf16, #tpu.memory_space<vmem>>, %arg6: memref<6x2x8xbf16, #tpu.memory_space<vmem>>, %arg7: memref<6x2x1xf32, #tpu.memory_space<vmem>>, %arg8: memref<6x2x4xbf16, #tpu.memory_space<vmem>>, %arg9: memref<2x64x8xbf16, #tpu.memory_space<vmem>>, %arg10: memref<2x64x1xf32, #tpu.memory_space<vmem>>, %arg11: memref<128x64xbf16, #tpu.memory_space<vmem>>, %arg12: memref<128x1xf32, #tpu.memory_space<vmem>>, %arg13: memref<16x128xbf16, #tpu.memory_space<vmem>>, %arg14: memref<16x1xf32, #tpu.memory_space<vmem>>, %arg15: memref<1x16x128xf32, #tpu.memory_space<vmem>>) attributes {dimension_semantics = [#tpu.dimension_semantics<parallel>], iteration_bounds = array<i64: 2>, scalar_prefetch = 0 : i64, scratch_operands = 0 : i64, tpu.core_type = #tpu.core_type<tc>, window_params = [{transform_indices = @transform_0, window_bounds = array<i64: 33>}, {transform_indices = @transform_1, window_bounds = array<i64: 1, 2, 128>}, {pipeline_mode = #tpu.pipeline_mode<synchronous>, transform_indices = @transform_2, window_bounds = array<i64: 8, 128>}, {pipeline_mode = #tpu.pipeline_mode<synchronous>, transform_indices = @transform_3, window_bounds = array<i64: 128, 512>}, {pipeline_mode = #tpu.pipeline_mode<synchronous>, transform_indices = @transform_4, window_bounds = array<i64: 8, 2>}, {pipeline_mode = #tpu.pipeline_mode<synchronous>, transform_indices = @transform_5, window_bounds = array<i64: 6, 2, 8>}, {pipeline_mode = #tpu.pipeline_mode<synchronous>, transform_indices = @transform_6, window_bounds = array<i64: 6, 2, 1>}, {pipeline_mode = #tpu.pipeline_mode<synchronous>, transform_indices = @transform_7, window_bounds = array<i64: 6, 2, 4>}, {pipeline_mode = #tpu.pipeline_mode<synchronous>, transform_indices = @transform_8, window_bounds = array<i64: 2, 64, 8>}, {pipeline_mode = #tpu.pipeline_mode<synchronous>, transform_indices = @transform_9, window_bounds = array<i64: 2, 64, 1>}, {pipeline_mode = #tpu.pipeline_mode<synchronous>, transform_indices = @transform_10, window_bounds = array<i64: 128, 64>}, {pipeline_mode = #tpu.pipeline_mode<synchronous>, transform_indices = @transform_11, window_bounds = array<i64: 128, 1>}, {pipeline_mode = #tpu.pipeline_mode<synchronous>, transform_indices = @transform_12, window_bounds = array<i64: 16, 128>}, {pipeline_mode = #tpu.pipeline_mode<synchronous>, transform_indices = @transform_13, window_bounds = array<i64: 16, 1>}, {transform_indices = @transform_14, window_bounds = array<i64: 1, 16, 128>}]} {
    %c0 = arith.constant 0 : index
    %c0_0 = arith.constant 0 : index
    %0 = vector.load %arg4[%c0, %c0_0] : memref<128x512xbf16, #tpu.memory_space<vmem>>, vector<128x512xbf16>
    %c0_1 = arith.constant 0 : index
    %c0_2 = arith.constant 0 : index
    %1 = vector.load %arg5[%c0_1, %c0_2] : memref<8x2xbf16, #tpu.memory_space<vmem>>, vector<8x2xbf16>
    %c0_3 = arith.constant 0 : index
    %c0_4 = arith.constant 0 : index
    %c0_5 = arith.constant 0 : index
    %2 = vector.load %arg2[%c0_3, %c0_4, %c0_5] : memref<1x2x128xbf16, #tpu.memory_space<vmem>>, vector<1x2x128xbf16>
    %3 = vector.shape_cast %2 : vector<1x2x128xbf16> to vector<2x128xbf16>
    %cst = arith.constant dense<0.000000e+00> : vector<8x128xf32>
    %4 = tpu.matmul %1, %3, %cst {dimension_numbers = #tpu.dot_dimension_numbers<[1], [0], [0], [1], [0, 0, 1, 1], [], []>} : vector<8x2xbf16>, vector<2x128xbf16>, vector<8x128xf32> -> vector<8x128xf32>
    %cst_6 = arith.constant 2.82842708 : f32
    %5 = vector.broadcast %cst_6 : f32 to vector<8x128xf32>
    %6 = arith.mulf %4, %5 : vector<8x128xf32>
    %c0_7 = arith.constant 0 : index
    %c0_8 = arith.constant 0 : index
    %7 = vector.load %arg3[%c0_7, %c0_8] : memref<8x128xf32, #tpu.memory_space<vmem>>, vector<8x128xf32>
    %8 = arith.addf %6, %7 : vector<8x128xf32>
    %c30 = arith.constant 30 : index
    %9 = memref.load %arg1[%c30] : memref<33xf32, #tpu.memory_space<smem>>
    %10 = vector.broadcast %9 : f32 to vector<8x128xf32>
    %11 = arith.mulf %10, %8 : vector<8x128xf32>
    %12 = vector.extract_strided_slice %11 {offsets = [0, 0], sizes = [2, 128], strides = [1, 1]} : vector<8x128xf32> to vector<2x128xf32>
    %13 = arith.truncf %12 : vector<2x128xf32> to vector<2x128xbf16>
    %cst_9 = arith.constant dense<0.000000e+00> : vector<2x512xf32>
    %14 = tpu.matmul %13, %0, %cst_9 {dimension_numbers = #tpu.dot_dimension_numbers<[1], [0], [0], [1], [0, 0, 1, 1], [], []>} : vector<2x128xbf16>, vector<128x512xbf16>, vector<2x512xf32> -> vector<2x512xf32>
    %c1 = arith.constant 1 : index
    %15 = memref.load %arg1[%c1] : memref<33xf32, #tpu.memory_space<smem>>
    %c2 = arith.constant 2 : index
    %16 = memref.load %arg1[%c2] : memref<33xf32, #tpu.memory_space<smem>>
    %c3 = arith.constant 3 : index
    %17 = memref.load %arg1[%c3] : memref<33xf32, #tpu.memory_space<smem>>
    %18 = vector.extract_strided_slice %14 {offsets = [0, 0], sizes = [2, 128], strides = [1, 1]} : vector<2x512xf32> to vector<2x128xf32>
    %19 = vector.extract_strided_slice %14 {offsets = [0, 128], sizes = [2, 128], strides = [1, 1]} : vector<2x512xf32> to vector<2x128xf32>
    %20 = vector.extract_strided_slice %14 {offsets = [0, 256], sizes = [2, 128], strides = [1, 1]} : vector<2x512xf32> to vector<2x128xf32>
    %21 = vector.extract_strided_slice %14 {offsets = [0, 384], sizes = [2, 128], strides = [1, 1]} : vector<2x512xf32> to vector<2x128xf32>
    %22 = tpu.concatenate %12, %18, %19, %20 in 0 : vector<2x128xf32>, vector<2x128xf32>, vector<2x128xf32>, vector<2x128xf32> -> vector<8x128xf32>
    %23 = arith.truncf %22 : vector<8x128xf32> to vector<8x128xbf16>
    %c0_10 = arith.constant 0 : index
    %c0_11 = arith.constant 0 : index
    %c0_12 = arith.constant 0 : index
    %24 = vector.load %arg6[%c0_10, %c0_11, %c0_12] : memref<6x2x8xbf16, #tpu.memory_space<vmem>>, vector<1x2x8xbf16>
    %25 = vector.shape_cast %24 : vector<1x2x8xbf16> to vector<2x8xbf16>
    %cst_13 = arith.constant dense<0.000000e+00> : vector<2x128xf32>
    %26 = tpu.matmul %25, %23, %cst_13 {dimension_numbers = #tpu.dot_dimension_numbers<[1], [0], [0], [1], [0, 0, 1, 1], [], []>} : vector<2x8xbf16>, vector<8x128xbf16>, vector<2x128xf32> -> vector<2x128xf32>
    %c0_14 = arith.constant 0 : index
    %c0_15 = arith.constant 0 : index
    %c0_16 = arith.constant 0 : index
    %27 = vector.load %arg7[%c0_14, %c0_15, %c0_16] : memref<6x2x1xf32, #tpu.memory_space<vmem>>, vector<1x2x1xf32>
    %28 = vector.shape_cast %27 : vector<1x2x1xf32> to vector<2x1xf32>
    %29 = vector.broadcast %28 : vector<2x1xf32> to vector<2x128xf32>
    %30 = arith.addf %26, %29 : vector<2x128xf32>
    %31 = tpu.concatenate %12, %21 in 0 : vector<2x128xf32>, vector<2x128xf32> -> vector<4x128xf32>
    %32 = arith.truncf %31 : vector<4x128xf32> to vector<4x128xbf16>
    %c0_17 = arith.constant 0 : index
    %c0_18 = arith.constant 0 : index
    %c0_19 = arith.constant 0 : index
    %33 = vector.load %arg8[%c0_17, %c0_18, %c0_19] : memref<6x2x4xbf16, #tpu.memory_space<vmem>>, vector<1x2x4xbf16>
    %34 = vector.shape_cast %33 : vector<1x2x4xbf16> to vector<2x4xbf16>
    %cst_20 = arith.constant dense<0.000000e+00> : vector<2x128xf32>
    %35 = tpu.matmul %34, %32, %cst_20 {dimension_numbers = #tpu.dot_dimension_numbers<[1], [0], [0], [1], [0, 0, 1, 1], [], []>} : vector<2x4xbf16>, vector<4x128xbf16>, vector<2x128xf32> -> vector<2x128xf32>
    %36 = vector.broadcast %15 : f32 to vector<2x128xf32>
    %37 = arith.mulf %36, %12 : vector<2x128xf32>
    %38 = vector.broadcast %16 : f32 to vector<2x128xf32>
    %39 = arith.mulf %38, %30 : vector<2x128xf32>
    %40 = arith.addf %37, %39 : vector<2x128xf32>
    %41 = vector.broadcast %17 : f32 to vector<2x128xf32>
    %42 = arith.mulf %41, %35 : vector<2x128xf32>
    %43 = arith.addf %40, %42 : vector<2x128xf32>
    %c24 = arith.constant 24 : index
    %44 = memref.load %arg1[%c24] : memref<33xf32, #tpu.memory_space<smem>>
    %45 = vector.extract_strided_slice %11 {offsets = [2, 0], sizes = [6, 128], strides = [1, 1]} : vector<8x128xf32> to vector<6x128xf32>
    %46 = tpu.concatenate %43, %45 in 0 : vector<2x128xf32>, vector<6x128xf32> -> vector<8x128xf32>
    %47 = vector.broadcast %44 : f32 to vector<8x128xf32>
    %48 = arith.mulf %47, %46 : vector<8x128xf32>
    %49 = vector.extract_strided_slice %48 {offsets = [0, 0], sizes = [1, 128], strides = [1, 1]} : vector<8x128xf32> to vector<1x128xf32>
    %50 = vector.extract_strided_slice %48 {offsets = [2, 0], sizes = [1, 128], strides = [1, 1]} : vector<8x128xf32> to vector<1x128xf32>
    %51 = vector.extract_strided_slice %48 {offsets = [4, 0], sizes = [1, 128], strides = [1, 1]} : vector<8x128xf32> to vector<1x128xf32>
    %52 = vector.extract_strided_slice %48 {offsets = [6, 0], sizes = [1, 128], strides = [1, 1]} : vector<8x128xf32> to vector<1x128xf32>
    %53 = vector.extract_strided_slice %48 {offsets = [1, 0], sizes = [1, 128], strides = [1, 1]} : vector<8x128xf32> to vector<1x128xf32>
    %54 = vector.extract_strided_slice %48 {offsets = [3, 0], sizes = [1, 128], strides = [1, 1]} : vector<8x128xf32> to vector<1x128xf32>
    %55 = vector.extract_strided_slice %48 {offsets = [5, 0], sizes = [1, 128], strides = [1, 1]} : vector<8x128xf32> to vector<1x128xf32>
    %56 = vector.extract_strided_slice %48 {offsets = [7, 0], sizes = [1, 128], strides = [1, 1]} : vector<8x128xf32> to vector<1x128xf32>
    %57 = tpu.concatenate %49, %50, %51, %52, %53, %54, %55, %56 in 0 : vector<1x128xf32>, vector<1x128xf32>, vector<1x128xf32>, vector<1x128xf32>, vector<1x128xf32>, vector<1x128xf32>, vector<1x128xf32>, vector<1x128xf32> -> vector<8x128xf32>
    %58 = vector.extract_strided_slice %11 {offsets = [0, 0], sizes = [2, 128], strides = [1, 1]} : vector<8x128xf32> to vector<2x128xf32>
    %59 = vector.extract_strided_slice %57 {offsets = [0, 0], sizes = [2, 128], strides = [1, 1]} : vector<8x128xf32> to vector<2x128xf32>
    %60 = tpu.concatenate %58, %59 in 0 : vector<2x128xf32>, vector<2x128xf32> -> vector<4x128xf32>
    %61 = arith.truncf %60 : vector<4x128xf32> to vector<4x128xbf16>
    %cst_21 = arith.constant dense<0.000000e+00> : vector<4x512xf32>
    %62 = tpu.matmul %61, %0, %cst_21 {dimension_numbers = #tpu.dot_dimension_numbers<[1], [0], [0], [1], [0, 0, 1, 1], [], []>} : vector<4x128xbf16>, vector<128x512xbf16>, vector<4x512xf32> -> vector<4x512xf32>
    %63 = vector.extract_strided_slice %62 {offsets = [0, 0], sizes = [2, 512], strides = [1, 1]} : vector<4x512xf32> to vector<2x512xf32>
    %c5 = arith.constant 5 : index
    %64 = memref.load %arg1[%c5] : memref<33xf32, #tpu.memory_space<smem>>
    %c6 = arith.constant 6 : index
    %65 = memref.load %arg1[%c6] : memref<33xf32, #tpu.memory_space<smem>>
    %c7 = arith.constant 7 : index
    %66 = memref.load %arg1[%c7] : memref<33xf32, #tpu.memory_space<smem>>
    %67 = vector.extract_strided_slice %63 {offsets = [0, 0], sizes = [2, 128], strides = [1, 1]} : vector<2x512xf32> to vector<2x128xf32>
    %68 = vector.extract_strided_slice %63 {offsets = [0, 128], sizes = [2, 128], strides = [1, 1]} : vector<2x512xf32> to vector<2x128xf32>
    %69 = vector.extract_strided_slice %63 {offsets = [0, 256], sizes = [2, 128], strides = [1, 1]} : vector<2x512xf32> to vector<2x128xf32>
    %70 = vector.extract_strided_slice %63 {offsets = [0, 384], sizes = [2, 128], strides = [1, 1]} : vector<2x512xf32> to vector<2x128xf32>
    %71 = tpu.concatenate %58, %67, %68, %69 in 0 : vector<2x128xf32>, vector<2x128xf32>, vector<2x128xf32>, vector<2x128xf32> -> vector<8x128xf32>
    %72 = arith.truncf %71 : vector<8x128xf32> to vector<8x128xbf16>
    %c1_22 = arith.constant 1 : index
    %c0_23 = arith.constant 0 : index
    %c0_24 = arith.constant 0 : index
    %73 = vector.load %arg6[%c1_22, %c0_23, %c0_24] : memref<6x2x8xbf16, #tpu.memory_space<vmem>>, vector<1x2x8xbf16>
    %74 = vector.shape_cast %73 : vector<1x2x8xbf16> to vector<2x8xbf16>
    %cst_25 = arith.constant dense<0.000000e+00> : vector<2x128xf32>
    %75 = tpu.matmul %74, %72, %cst_25 {dimension_numbers = #tpu.dot_dimension_numbers<[1], [0], [0], [1], [0, 0, 1, 1], [], []>} : vector<2x8xbf16>, vector<8x128xbf16>, vector<2x128xf32> -> vector<2x128xf32>
    %c1_26 = arith.constant 1 : index
    %c0_27 = arith.constant 0 : index
    %c0_28 = arith.constant 0 : index
    %76 = vector.load %arg7[%c1_26, %c0_27, %c0_28] : memref<6x2x1xf32, #tpu.memory_space<vmem>>, vector<1x2x1xf32>
    %77 = vector.shape_cast %76 : vector<1x2x1xf32> to vector<2x1xf32>
    %78 = vector.broadcast %77 : vector<2x1xf32> to vector<2x128xf32>
    %79 = arith.addf %75, %78 : vector<2x128xf32>
    %80 = tpu.concatenate %58, %70 in 0 : vector<2x128xf32>, vector<2x128xf32> -> vector<4x128xf32>
    %81 = arith.truncf %80 : vector<4x128xf32> to vector<4x128xbf16>
    %c1_29 = arith.constant 1 : index
    %c0_30 = arith.constant 0 : index
    %c0_31 = arith.constant 0 : index
    %82 = vector.load %arg8[%c1_29, %c0_30, %c0_31] : memref<6x2x4xbf16, #tpu.memory_space<vmem>>, vector<1x2x4xbf16>
    %83 = vector.shape_cast %82 : vector<1x2x4xbf16> to vector<2x4xbf16>
    %cst_32 = arith.constant dense<0.000000e+00> : vector<2x128xf32>
    %84 = tpu.matmul %83, %81, %cst_32 {dimension_numbers = #tpu.dot_dimension_numbers<[1], [0], [0], [1], [0, 0, 1, 1], [], []>} : vector<2x4xbf16>, vector<4x128xbf16>, vector<2x128xf32> -> vector<2x128xf32>
    %85 = vector.broadcast %64 : f32 to vector<2x128xf32>
    %86 = arith.mulf %85, %58 : vector<2x128xf32>
    %87 = vector.broadcast %65 : f32 to vector<2x128xf32>
    %88 = arith.mulf %87, %79 : vector<2x128xf32>
    %89 = arith.addf %86, %88 : vector<2x128xf32>
    %90 = vector.broadcast %66 : f32 to vector<2x128xf32>
    %91 = arith.mulf %90, %84 : vector<2x128xf32>
    %92 = arith.addf %89, %91 : vector<2x128xf32>
    %c25 = arith.constant 25 : index
    %93 = memref.load %arg1[%c25] : memref<33xf32, #tpu.memory_space<smem>>
    %94 = vector.extract_strided_slice %11 {offsets = [2, 0], sizes = [6, 128], strides = [1, 1]} : vector<8x128xf32> to vector<6x128xf32>
    %95 = tpu.concatenate %92, %94 in 0 : vector<2x128xf32>, vector<6x128xf32> -> vector<8x128xf32>
    %96 = vector.broadcast %93 : f32 to vector<8x128xf32>
    %97 = arith.mulf %96, %95 : vector<8x128xf32>
    %98 = vector.extract_strided_slice %62 {offsets = [2, 0], sizes = [2, 512], strides = [1, 1]} : vector<4x512xf32> to vector<2x512xf32>
    %c9 = arith.constant 9 : index
    %99 = memref.load %arg1[%c9] : memref<33xf32, #tpu.memory_space<smem>>
    %c10 = arith.constant 10 : index
    %100 = memref.load %arg1[%c10] : memref<33xf32, #tpu.memory_space<smem>>
    %c11 = arith.constant 11 : index
    %101 = memref.load %arg1[%c11] : memref<33xf32, #tpu.memory_space<smem>>
    %102 = vector.extract_strided_slice %98 {offsets = [0, 0], sizes = [2, 128], strides = [1, 1]} : vector<2x512xf32> to vector<2x128xf32>
    %103 = vector.extract_strided_slice %98 {offsets = [0, 128], sizes = [2, 128], strides = [1, 1]} : vector<2x512xf32> to vector<2x128xf32>
    %104 = vector.extract_strided_slice %98 {offsets = [0, 256], sizes = [2, 128], strides = [1, 1]} : vector<2x512xf32> to vector<2x128xf32>
    %105 = vector.extract_strided_slice %98 {offsets = [0, 384], sizes = [2, 128], strides = [1, 1]} : vector<2x512xf32> to vector<2x128xf32>
    %106 = tpu.concatenate %59, %102, %103, %104 in 0 : vector<2x128xf32>, vector<2x128xf32>, vector<2x128xf32>, vector<2x128xf32> -> vector<8x128xf32>
    %107 = arith.truncf %106 : vector<8x128xf32> to vector<8x128xbf16>
    %c2_33 = arith.constant 2 : index
    %c0_34 = arith.constant 0 : index
    %c0_35 = arith.constant 0 : index
    %108 = vector.load %arg6[%c2_33, %c0_34, %c0_35] : memref<6x2x8xbf16, #tpu.memory_space<vmem>>, vector<1x2x8xbf16>
    %109 = vector.shape_cast %108 : vector<1x2x8xbf16> to vector<2x8xbf16>
    %cst_36 = arith.constant dense<0.000000e+00> : vector<2x128xf32>
    %110 = tpu.matmul %109, %107, %cst_36 {dimension_numbers = #tpu.dot_dimension_numbers<[1], [0], [0], [1], [0, 0, 1, 1], [], []>} : vector<2x8xbf16>, vector<8x128xbf16>, vector<2x128xf32> -> vector<2x128xf32>
    %c2_37 = arith.constant 2 : index
    %c0_38 = arith.constant 0 : index
    %c0_39 = arith.constant 0 : index
    %111 = vector.load %arg7[%c2_37, %c0_38, %c0_39] : memref<6x2x1xf32, #tpu.memory_space<vmem>>, vector<1x2x1xf32>
    %112 = vector.shape_cast %111 : vector<1x2x1xf32> to vector<2x1xf32>
    %113 = vector.broadcast %112 : vector<2x1xf32> to vector<2x128xf32>
    %114 = arith.addf %110, %113 : vector<2x128xf32>
    %115 = tpu.concatenate %59, %105 in 0 : vector<2x128xf32>, vector<2x128xf32> -> vector<4x128xf32>
    %116 = arith.truncf %115 : vector<4x128xf32> to vector<4x128xbf16>
    %c2_40 = arith.constant 2 : index
    %c0_41 = arith.constant 0 : index
    %c0_42 = arith.constant 0 : index
    %117 = vector.load %arg8[%c2_40, %c0_41, %c0_42] : memref<6x2x4xbf16, #tpu.memory_space<vmem>>, vector<1x2x4xbf16>
    %118 = vector.shape_cast %117 : vector<1x2x4xbf16> to vector<2x4xbf16>
    %cst_43 = arith.constant dense<0.000000e+00> : vector<2x128xf32>
    %119 = tpu.matmul %118, %116, %cst_43 {dimension_numbers = #tpu.dot_dimension_numbers<[1], [0], [0], [1], [0, 0, 1, 1], [], []>} : vector<2x4xbf16>, vector<4x128xbf16>, vector<2x128xf32> -> vector<2x128xf32>
    %120 = vector.broadcast %99 : f32 to vector<2x128xf32>
    %121 = arith.mulf %120, %59 : vector<2x128xf32>
    %122 = vector.broadcast %100 : f32 to vector<2x128xf32>
    %123 = arith.mulf %122, %114 : vector<2x128xf32>
    %124 = arith.addf %121, %123 : vector<2x128xf32>
    %125 = vector.broadcast %101 : f32 to vector<2x128xf32>
    %126 = arith.mulf %125, %119 : vector<2x128xf32>
    %127 = arith.addf %124, %126 : vector<2x128xf32>
    %c26 = arith.constant 26 : index
    %128 = memref.load %arg1[%c26] : memref<33xf32, #tpu.memory_space<smem>>
    %129 = vector.extract_strided_slice %57 {offsets = [2, 0], sizes = [6, 128], strides = [1, 1]} : vector<8x128xf32> to vector<6x128xf32>
    %130 = tpu.concatenate %127, %129 in 0 : vector<2x128xf32>, vector<6x128xf32> -> vector<8x128xf32>
    %131 = vector.broadcast %128 : f32 to vector<8x128xf32>
    %132 = arith.mulf %131, %130 : vector<8x128xf32>
    %133 = arith.addf %97, %132 : vector<8x128xf32>
    %134 = vector.extract_strided_slice %133 {offsets = [0, 0], sizes = [1, 128], strides = [1, 1]} : vector<8x128xf32> to vector<1x128xf32>
    %135 = vector.extract_strided_slice %133 {offsets = [2, 0], sizes = [1, 128], strides = [1, 1]} : vector<8x128xf32> to vector<1x128xf32>
    %136 = vector.extract_strided_slice %133 {offsets = [4, 0], sizes = [1, 128], strides = [1, 1]} : vector<8x128xf32> to vector<1x128xf32>
    %137 = vector.extract_strided_slice %133 {offsets = [6, 0], sizes = [1, 128], strides = [1, 1]} : vector<8x128xf32> to vector<1x128xf32>
    %138 = vector.extract_strided_slice %133 {offsets = [1, 0], sizes = [1, 128], strides = [1, 1]} : vector<8x128xf32> to vector<1x128xf32>
    %139 = vector.extract_strided_slice %133 {offsets = [3, 0], sizes = [1, 128], strides = [1, 1]} : vector<8x128xf32> to vector<1x128xf32>
    %140 = vector.extract_strided_slice %133 {offsets = [5, 0], sizes = [1, 128], strides = [1, 1]} : vector<8x128xf32> to vector<1x128xf32>
    %141 = vector.extract_strided_slice %133 {offsets = [7, 0], sizes = [1, 128], strides = [1, 1]} : vector<8x128xf32> to vector<1x128xf32>
    %142 = tpu.concatenate %134, %135, %136, %137, %138, %139, %140, %141 in 0 : vector<1x128xf32>, vector<1x128xf32>, vector<1x128xf32>, vector<1x128xf32>, vector<1x128xf32>, vector<1x128xf32>, vector<1x128xf32>, vector<1x128xf32> -> vector<8x128xf32>
    %c0_44 = arith.constant 0 : index
    %c0_45 = arith.constant 0 : index
    %c0_46 = arith.constant 0 : index
    %143 = vector.load %arg9[%c0_44, %c0_45, %c0_46] : memref<2x64x8xbf16, #tpu.memory_space<vmem>>, vector<1x64x8xbf16>
    %144 = vector.shape_cast %143 : vector<1x64x8xbf16> to vector<64x8xbf16>
    %145 = arith.truncf %142 : vector<8x128xf32> to vector<8x128xbf16>
    %cst_47 = arith.constant dense<0.000000e+00> : vector<64x128xf32>
    %146 = tpu.matmul %144, %145, %cst_47 {dimension_numbers = #tpu.dot_dimension_numbers<[1], [0], [0], [1], [0, 0, 1, 1], [], []>} : vector<64x8xbf16>, vector<8x128xbf16>, vector<64x128xf32> -> vector<64x128xf32>
    %c0_48 = arith.constant 0 : index
    %c0_49 = arith.constant 0 : index
    %c0_50 = arith.constant 0 : index
    %147 = vector.load %arg10[%c0_48, %c0_49, %c0_50] : memref<2x64x1xf32, #tpu.memory_space<vmem>>, vector<1x64x1xf32>
    %148 = vector.shape_cast %147 : vector<1x64x1xf32> to vector<64x1xf32>
    %149 = vector.broadcast %148 : vector<64x1xf32> to vector<64x128xf32>
    %150 = arith.addf %146, %149 : vector<64x128xf32>
    %c31 = arith.constant 31 : index
    %151 = memref.load %arg1[%c31] : memref<33xf32, #tpu.memory_space<smem>>
    %152 = vector.broadcast %151 : f32 to vector<8x128xf32>
    %153 = arith.mulf %152, %8 : vector<8x128xf32>
    %c32 = arith.constant 32 : index
    %154 = memref.load %arg1[%c32] : memref<33xf32, #tpu.memory_space<smem>>
    %155 = vector.broadcast %154 : f32 to vector<8x128xf32>
    %156 = arith.mulf %155, %142 : vector<8x128xf32>
    %157 = arith.addf %153, %156 : vector<8x128xf32>
    %158 = vector.extract_strided_slice %157 {offsets = [0, 0], sizes = [2, 128], strides = [1, 1]} : vector<8x128xf32> to vector<2x128xf32>
    %159 = arith.truncf %158 : vector<2x128xf32> to vector<2x128xbf16>
    %cst_51 = arith.constant dense<0.000000e+00> : vector<2x512xf32>
    %160 = tpu.matmul %159, %0, %cst_51 {dimension_numbers = #tpu.dot_dimension_numbers<[1], [0], [0], [1], [0, 0, 1, 1], [], []>} : vector<2x128xbf16>, vector<128x512xbf16>, vector<2x512xf32> -> vector<2x512xf32>
    %c13 = arith.constant 13 : index
    %161 = memref.load %arg1[%c13] : memref<33xf32, #tpu.memory_space<smem>>
    %c14 = arith.constant 14 : index
    %162 = memref.load %arg1[%c14] : memref<33xf32, #tpu.memory_space<smem>>
    %c15 = arith.constant 15 : index
    %163 = memref.load %arg1[%c15] : memref<33xf32, #tpu.memory_space<smem>>
    %164 = vector.extract_strided_slice %160 {offsets = [0, 0], sizes = [2, 128], strides = [1, 1]} : vector<2x512xf32> to vector<2x128xf32>
    %165 = vector.extract_strided_slice %160 {offsets = [0, 128], sizes = [2, 128], strides = [1, 1]} : vector<2x512xf32> to vector<2x128xf32>
    %166 = vector.extract_strided_slice %160 {offsets = [0, 256], sizes = [2, 128], strides = [1, 1]} : vector<2x512xf32> to vector<2x128xf32>
    %167 = vector.extract_strided_slice %160 {offsets = [0, 384], sizes = [2, 128], strides = [1, 1]} : vector<2x512xf32> to vector<2x128xf32>
    %168 = tpu.concatenate %158, %164, %165, %166 in 0 : vector<2x128xf32>, vector<2x128xf32>, vector<2x128xf32>, vector<2x128xf32> -> vector<8x128xf32>
    %169 = arith.truncf %168 : vector<8x128xf32> to vector<8x128xbf16>
    %c3_52 = arith.constant 3 : index
    %c0_53 = arith.constant 0 : index
    %c0_54 = arith.constant 0 : index
    %170 = vector.load %arg6[%c3_52, %c0_53, %c0_54] : memref<6x2x8xbf16, #tpu.memory_space<vmem>>, vector<1x2x8xbf16>
    %171 = vector.shape_cast %170 : vector<1x2x8xbf16> to vector<2x8xbf16>
    %cst_55 = arith.constant dense<0.000000e+00> : vector<2x128xf32>
    %172 = tpu.matmul %171, %169, %cst_55 {dimension_numbers = #tpu.dot_dimension_numbers<[1], [0], [0], [1], [0, 0, 1, 1], [], []>} : vector<2x8xbf16>, vector<8x128xbf16>, vector<2x128xf32> -> vector<2x128xf32>
    %c3_56 = arith.constant 3 : index
    %c0_57 = arith.constant 0 : index
    %c0_58 = arith.constant 0 : index
    %173 = vector.load %arg7[%c3_56, %c0_57, %c0_58] : memref<6x2x1xf32, #tpu.memory_space<vmem>>, vector<1x2x1xf32>
    %174 = vector.shape_cast %173 : vector<1x2x1xf32> to vector<2x1xf32>
    %175 = vector.broadcast %174 : vector<2x1xf32> to vector<2x128xf32>
    %176 = arith.addf %172, %175 : vector<2x128xf32>
    %177 = tpu.concatenate %158, %167 in 0 : vector<2x128xf32>, vector<2x128xf32> -> vector<4x128xf32>
    %178 = arith.truncf %177 : vector<4x128xf32> to vector<4x128xbf16>
    %c3_59 = arith.constant 3 : index
    %c0_60 = arith.constant 0 : index
    %c0_61 = arith.constant 0 : index
    %179 = vector.load %arg8[%c3_59, %c0_60, %c0_61] : memref<6x2x4xbf16, #tpu.memory_space<vmem>>, vector<1x2x4xbf16>
    %180 = vector.shape_cast %179 : vector<1x2x4xbf16> to vector<2x4xbf16>
    %cst_62 = arith.constant dense<0.000000e+00> : vector<2x128xf32>
    %181 = tpu.matmul %180, %178, %cst_62 {dimension_numbers = #tpu.dot_dimension_numbers<[1], [0], [0], [1], [0, 0, 1, 1], [], []>} : vector<2x4xbf16>, vector<4x128xbf16>, vector<2x128xf32> -> vector<2x128xf32>
    %182 = vector.broadcast %161 : f32 to vector<2x128xf32>
    %183 = arith.mulf %182, %158 : vector<2x128xf32>
    %184 = vector.broadcast %162 : f32 to vector<2x128xf32>
    %185 = arith.mulf %184, %176 : vector<2x128xf32>
    %186 = arith.addf %183, %185 : vector<2x128xf32>
    %187 = vector.broadcast %163 : f32 to vector<2x128xf32>
    %188 = arith.mulf %187, %181 : vector<2x128xf32>
    %189 = arith.addf %186, %188 : vector<2x128xf32>
    %c27 = arith.constant 27 : index
    %190 = memref.load %arg1[%c27] : memref<33xf32, #tpu.memory_space<smem>>
    %191 = vector.extract_strided_slice %157 {offsets = [2, 0], sizes = [6, 128], strides = [1, 1]} : vector<8x128xf32> to vector<6x128xf32>
    %192 = tpu.concatenate %189, %191 in 0 : vector<2x128xf32>, vector<6x128xf32> -> vector<8x128xf32>
    %193 = vector.broadcast %190 : f32 to vector<8x128xf32>
    %194 = arith.mulf %193, %192 : vector<8x128xf32>
    %195 = vector.extract_strided_slice %194 {offsets = [0, 0], sizes = [1, 128], strides = [1, 1]} : vector<8x128xf32> to vector<1x128xf32>
    %196 = vector.extract_strided_slice %194 {offsets = [2, 0], sizes = [1, 128], strides = [1, 1]} : vector<8x128xf32> to vector<1x128xf32>
    %197 = vector.extract_strided_slice %194 {offsets = [4, 0], sizes = [1, 128], strides = [1, 1]} : vector<8x128xf32> to vector<1x128xf32>
    %198 = vector.extract_strided_slice %194 {offsets = [6, 0], sizes = [1, 128], strides = [1, 1]} : vector<8x128xf32> to vector<1x128xf32>
    %199 = vector.extract_strided_slice %194 {offsets = [1, 0], sizes = [1, 128], strides = [1, 1]} : vector<8x128xf32> to vector<1x128xf32>
    %200 = vector.extract_strided_slice %194 {offsets = [3, 0], sizes = [1, 128], strides = [1, 1]} : vector<8x128xf32> to vector<1x128xf32>
    %201 = vector.extract_strided_slice %194 {offsets = [5, 0], sizes = [1, 128], strides = [1, 1]} : vector<8x128xf32> to vector<1x128xf32>
    %202 = vector.extract_strided_slice %194 {offsets = [7, 0], sizes = [1, 128], strides = [1, 1]} : vector<8x128xf32> to vector<1x128xf32>
    %203 = tpu.concatenate %195, %196, %197, %198, %199, %200, %201, %202 in 0 : vector<1x128xf32>, vector<1x128xf32>, vector<1x128xf32>, vector<1x128xf32>, vector<1x128xf32>, vector<1x128xf32>, vector<1x128xf32>, vector<1x128xf32> -> vector<8x128xf32>
    %204 = vector.extract_strided_slice %157 {offsets = [0, 0], sizes = [2, 128], strides = [1, 1]} : vector<8x128xf32> to vector<2x128xf32>
    %205 = vector.extract_strided_slice %203 {offsets = [0, 0], sizes = [2, 128], strides = [1, 1]} : vector<8x128xf32> to vector<2x128xf32>
    %206 = tpu.concatenate %204, %205 in 0 : vector<2x128xf32>, vector<2x128xf32> -> vector<4x128xf32>
    %207 = arith.truncf %206 : vector<4x128xf32> to vector<4x128xbf16>
    %cst_63 = arith.constant dense<0.000000e+00> : vector<4x512xf32>
    %208 = tpu.matmul %207, %0, %cst_63 {dimension_numbers = #tpu.dot_dimension_numbers<[1], [0], [0], [1], [0, 0, 1, 1], [], []>} : vector<4x128xbf16>, vector<128x512xbf16>, vector<4x512xf32> -> vector<4x512xf32>
    %209 = vector.extract_strided_slice %208 {offsets = [0, 0], sizes = [2, 512], strides = [1, 1]} : vector<4x512xf32> to vector<2x512xf32>
    %c17 = arith.constant 17 : index
    %210 = memref.load %arg1[%c17] : memref<33xf32, #tpu.memory_space<smem>>
    %c18 = arith.constant 18 : index
    %211 = memref.load %arg1[%c18] : memref<33xf32, #tpu.memory_space<smem>>
    %c19 = arith.constant 19 : index
    %212 = memref.load %arg1[%c19] : memref<33xf32, #tpu.memory_space<smem>>
    %213 = vector.extract_strided_slice %209 {offsets = [0, 0], sizes = [2, 128], strides = [1, 1]} : vector<2x512xf32> to vector<2x128xf32>
    %214 = vector.extract_strided_slice %209 {offsets = [0, 128], sizes = [2, 128], strides = [1, 1]} : vector<2x512xf32> to vector<2x128xf32>
    %215 = vector.extract_strided_slice %209 {offsets = [0, 256], sizes = [2, 128], strides = [1, 1]} : vector<2x512xf32> to vector<2x128xf32>
    %216 = vector.extract_strided_slice %209 {offsets = [0, 384], sizes = [2, 128], strides = [1, 1]} : vector<2x512xf32> to vector<2x128xf32>
    %217 = tpu.concatenate %204, %213, %214, %215 in 0 : vector<2x128xf32>, vector<2x128xf32>, vector<2x128xf32>, vector<2x128xf32> -> vector<8x128xf32>
    %218 = arith.truncf %217 : vector<8x128xf32> to vector<8x128xbf16>
    %c4 = arith.constant 4 : index
    %c0_64 = arith.constant 0 : index
    %c0_65 = arith.constant 0 : index
    %219 = vector.load %arg6[%c4, %c0_64, %c0_65] : memref<6x2x8xbf16, #tpu.memory_space<vmem>>, vector<1x2x8xbf16>
    %220 = vector.shape_cast %219 : vector<1x2x8xbf16> to vector<2x8xbf16>
    %cst_66 = arith.constant dense<0.000000e+00> : vector<2x128xf32>
    %221 = tpu.matmul %220, %218, %cst_66 {dimension_numbers = #tpu.dot_dimension_numbers<[1], [0], [0], [1], [0, 0, 1, 1], [], []>} : vector<2x8xbf16>, vector<8x128xbf16>, vector<2x128xf32> -> vector<2x128xf32>
    %c4_67 = arith.constant 4 : index
    %c0_68 = arith.constant 0 : index
    %c0_69 = arith.constant 0 : index
    %222 = vector.load %arg7[%c4_67, %c0_68, %c0_69] : memref<6x2x1xf32, #tpu.memory_space<vmem>>, vector<1x2x1xf32>
    %223 = vector.shape_cast %222 : vector<1x2x1xf32> to vector<2x1xf32>
    %224 = vector.broadcast %223 : vector<2x1xf32> to vector<2x128xf32>
    %225 = arith.addf %221, %224 : vector<2x128xf32>
    %226 = tpu.concatenate %204, %216 in 0 : vector<2x128xf32>, vector<2x128xf32> -> vector<4x128xf32>
    %227 = arith.truncf %226 : vector<4x128xf32> to vector<4x128xbf16>
    %c4_70 = arith.constant 4 : index
    %c0_71 = arith.constant 0 : index
    %c0_72 = arith.constant 0 : index
    %228 = vector.load %arg8[%c4_70, %c0_71, %c0_72] : memref<6x2x4xbf16, #tpu.memory_space<vmem>>, vector<1x2x4xbf16>
    %229 = vector.shape_cast %228 : vector<1x2x4xbf16> to vector<2x4xbf16>
    %cst_73 = arith.constant dense<0.000000e+00> : vector<2x128xf32>
    %230 = tpu.matmul %229, %227, %cst_73 {dimension_numbers = #tpu.dot_dimension_numbers<[1], [0], [0], [1], [0, 0, 1, 1], [], []>} : vector<2x4xbf16>, vector<4x128xbf16>, vector<2x128xf32> -> vector<2x128xf32>
    %231 = vector.broadcast %210 : f32 to vector<2x128xf32>
    %232 = arith.mulf %231, %204 : vector<2x128xf32>
    %233 = vector.broadcast %211 : f32 to vector<2x128xf32>
    %234 = arith.mulf %233, %225 : vector<2x128xf32>
    %235 = arith.addf %232, %234 : vector<2x128xf32>
    %236 = vector.broadcast %212 : f32 to vector<2x128xf32>
    %237 = arith.mulf %236, %230 : vector<2x128xf32>
    %238 = arith.addf %235, %237 : vector<2x128xf32>
    %c28 = arith.constant 28 : index
    %239 = memref.load %arg1[%c28] : memref<33xf32, #tpu.memory_space<smem>>
    %240 = vector.extract_strided_slice %157 {offsets = [2, 0], sizes = [6, 128], strides = [1, 1]} : vector<8x128xf32> to vector<6x128xf32>
    %241 = tpu.concatenate %238, %240 in 0 : vector<2x128xf32>, vector<6x128xf32> -> vector<8x128xf32>
    %242 = vector.broadcast %239 : f32 to vector<8x128xf32>
    %243 = arith.mulf %242, %241 : vector<8x128xf32>
    %244 = vector.extract_strided_slice %208 {offsets = [2, 0], sizes = [2, 512], strides = [1, 1]} : vector<4x512xf32> to vector<2x512xf32>
    %c21 = arith.constant 21 : index
    %245 = memref.load %arg1[%c21] : memref<33xf32, #tpu.memory_space<smem>>
    %c22 = arith.constant 22 : index
    %246 = memref.load %arg1[%c22] : memref<33xf32, #tpu.memory_space<smem>>
    %c23 = arith.constant 23 : index
    %247 = memref.load %arg1[%c23] : memref<33xf32, #tpu.memory_space<smem>>
    %248 = vector.extract_strided_slice %244 {offsets = [0, 0], sizes = [2, 128], strides = [1, 1]} : vector<2x512xf32> to vector<2x128xf32>
    %249 = vector.extract_strided_slice %244 {offsets = [0, 128], sizes = [2, 128], strides = [1, 1]} : vector<2x512xf32> to vector<2x128xf32>
    %250 = vector.extract_strided_slice %244 {offsets = [0, 256], sizes = [2, 128], strides = [1, 1]} : vector<2x512xf32> to vector<2x128xf32>
    %251 = vector.extract_strided_slice %244 {offsets = [0, 384], sizes = [2, 128], strides = [1, 1]} : vector<2x512xf32> to vector<2x128xf32>
    %252 = tpu.concatenate %205, %248, %249, %250 in 0 : vector<2x128xf32>, vector<2x128xf32>, vector<2x128xf32>, vector<2x128xf32> -> vector<8x128xf32>
    %253 = arith.truncf %252 : vector<8x128xf32> to vector<8x128xbf16>
    %c5_74 = arith.constant 5 : index
    %c0_75 = arith.constant 0 : index
    %c0_76 = arith.constant 0 : index
    %254 = vector.load %arg6[%c5_74, %c0_75, %c0_76] : memref<6x2x8xbf16, #tpu.memory_space<vmem>>, vector<1x2x8xbf16>
    %255 = vector.shape_cast %254 : vector<1x2x8xbf16> to vector<2x8xbf16>
    %cst_77 = arith.constant dense<0.000000e+00> : vector<2x128xf32>
    %256 = tpu.matmul %255, %253, %cst_77 {dimension_numbers = #tpu.dot_dimension_numbers<[1], [0], [0], [1], [0, 0, 1, 1], [], []>} : vector<2x8xbf16>, vector<8x128xbf16>, vector<2x128xf32> -> vector<2x128xf32>
    %c5_78 = arith.constant 5 : index
    %c0_79 = arith.constant 0 : index
    %c0_80 = arith.constant 0 : index
    %257 = vector.load %arg7[%c5_78, %c0_79, %c0_80] : memref<6x2x1xf32, #tpu.memory_space<vmem>>, vector<1x2x1xf32>
    %258 = vector.shape_cast %257 : vector<1x2x1xf32> to vector<2x1xf32>
    %259 = vector.broadcast %258 : vector<2x1xf32> to vector<2x128xf32>
    %260 = arith.addf %256, %259 : vector<2x128xf32>
    %261 = tpu.concatenate %205, %251 in 0 : vector<2x128xf32>, vector<2x128xf32> -> vector<4x128xf32>
    %262 = arith.truncf %261 : vector<4x128xf32> to vector<4x128xbf16>
    %c5_81 = arith.constant 5 : index
    %c0_82 = arith.constant 0 : index
    %c0_83 = arith.constant 0 : index
    %263 = vector.load %arg8[%c5_81, %c0_82, %c0_83] : memref<6x2x4xbf16, #tpu.memory_space<vmem>>, vector<1x2x4xbf16>
    %264 = vector.shape_cast %263 : vector<1x2x4xbf16> to vector<2x4xbf16>
    %cst_84 = arith.constant dense<0.000000e+00> : vector<2x128xf32>
    %265 = tpu.matmul %264, %262, %cst_84 {dimension_numbers = #tpu.dot_dimension_numbers<[1], [0], [0], [1], [0, 0, 1, 1], [], []>} : vector<2x4xbf16>, vector<4x128xbf16>, vector<2x128xf32> -> vector<2x128xf32>
    %266 = vector.broadcast %245 : f32 to vector<2x128xf32>
    %267 = arith.mulf %266, %205 : vector<2x128xf32>
    %268 = vector.broadcast %246 : f32 to vector<2x128xf32>
    %269 = arith.mulf %268, %260 : vector<2x128xf32>
    %270 = arith.addf %267, %269 : vector<2x128xf32>
    %271 = vector.broadcast %247 : f32 to vector<2x128xf32>
    %272 = arith.mulf %271, %265 : vector<2x128xf32>
    %273 = arith.addf %270, %272 : vector<2x128xf32>
    %c29 = arith.constant 29 : index
    %274 = memref.load %arg1[%c29] : memref<33xf32, #tpu.memory_space<smem>>
    %275 = vector.extract_strided_slice %203 {offsets = [2, 0], sizes = [6, 128], strides = [1, 1]} : vector<8x128xf32> to vector<6x128xf32>
    %276 = tpu.concatenate %273, %275 in 0 : vector<2x128xf32>, vector<6x128xf32> -> vector<8x128xf32>
    %277 = vector.broadcast %274 : f32 to vector<8x128xf32>
    %278 = arith.mulf %277, %276 : vector<8x128xf32>
    %279 = arith.addf %243, %278 : vector<8x128xf32>
    %280 = vector.extract_strided_slice %279 {offsets = [0, 0], sizes = [1, 128], strides = [1, 1]} : vector<8x128xf32> to vector<1x128xf32>
    %281 = vector.extract_strided_slice %279 {offsets = [2, 0], sizes = [1, 128], strides = [1, 1]} : vector<8x128xf32> to vector<1x128xf32>
    %282 = vector.extract_strided_slice %279 {offsets = [4, 0], sizes = [1, 128], strides = [1, 1]} : vector<8x128xf32> to vector<1x128xf32>
    %283 = vector.extract_strided_slice %279 {offsets = [6, 0], sizes = [1, 128], strides = [1, 1]} : vector<8x128xf32> to vector<1x128xf32>
    %284 = vector.extract_strided_slice %279 {offsets = [1, 0], sizes = [1, 128], strides = [1, 1]} : vector<8x128xf32> to vector<1x128xf32>
    %285 = vector.extract_strided_slice %279 {offsets = [3, 0], sizes = [1, 128], strides = [1, 1]} : vector<8x128xf32> to vector<1x128xf32>
    %286 = vector.extract_strided_slice %279 {offsets = [5, 0], sizes = [1, 128], strides = [1, 1]} : vector<8x128xf32> to vector<1x128xf32>
    %287 = vector.extract_strided_slice %279 {offsets = [7, 0], sizes = [1, 128], strides = [1, 1]} : vector<8x128xf32> to vector<1x128xf32>
    %288 = tpu.concatenate %280, %281, %282, %283, %284, %285, %286, %287 in 0 : vector<1x128xf32>, vector<1x128xf32>, vector<1x128xf32>, vector<1x128xf32>, vector<1x128xf32>, vector<1x128xf32>, vector<1x128xf32>, vector<1x128xf32> -> vector<8x128xf32>
    %c1_85 = arith.constant 1 : index
    %c0_86 = arith.constant 0 : index
    %c0_87 = arith.constant 0 : index
    %289 = vector.load %arg9[%c1_85, %c0_86, %c0_87] : memref<2x64x8xbf16, #tpu.memory_space<vmem>>, vector<1x64x8xbf16>
    %290 = vector.shape_cast %289 : vector<1x64x8xbf16> to vector<64x8xbf16>
    %291 = arith.truncf %288 : vector<8x128xf32> to vector<8x128xbf16>
    %cst_88 = arith.constant dense<0.000000e+00> : vector<64x128xf32>
    %292 = tpu.matmul %290, %291, %cst_88 {dimension_numbers = #tpu.dot_dimension_numbers<[1], [0], [0], [1], [0, 0, 1, 1], [], []>} : vector<64x8xbf16>, vector<8x128xbf16>, vector<64x128xf32> -> vector<64x128xf32>
    %c1_89 = arith.constant 1 : index
    %c0_90 = arith.constant 0 : index
    %c0_91 = arith.constant 0 : index
    %293 = vector.load %arg10[%c1_89, %c0_90, %c0_91] : memref<2x64x1xf32, #tpu.memory_space<vmem>>, vector<1x64x1xf32>
    %294 = vector.shape_cast %293 : vector<1x64x1xf32> to vector<64x1xf32>
    %295 = vector.broadcast %294 : vector<64x1xf32> to vector<64x128xf32>
    %296 = arith.addf %292, %295 : vector<64x128xf32>
    %297 = arith.addf %150, %296 : vector<64x128xf32>
    %cst_92 = arith.constant 0.000000e+00 : f32
    %298 = vector.broadcast %cst_92 : f32 to vector<64x128xf32>
    %299 = arith.maximumf %297, %298 : vector<64x128xf32>
    %300 = tpu.iota {dimensions = array<i32: 1>} : vector<64x128xi32>
    %c96_i32 = arith.constant 96 : i32
    %301 = vector.broadcast %c96_i32 : i32 to vector<64x128xi32>
    %302 = arith.cmpi slt, %300, %301 : vector<64x128xi32>
    %cst_93 = arith.constant 0.000000e+00 : f32
    %303 = vector.broadcast %cst_93 : f32 to vector<64x128xf32>
    %304 = arith.select %302, %299, %303 : vector<64x128xi1>, vector<64x128xf32>
    %c8_i32 = arith.constant 8 : i32
    %305 = tpu.dynamic_rotate %304 by %c8_i32 dim 1 : vector<64x128xf32>, i32 -> vector<64x128xf32>
    %306 = arith.maximumf %304, %305 : vector<64x128xf32>
    %c16_i32 = arith.constant 16 : i32
    %307 = tpu.dynamic_rotate %306 by %c16_i32 dim 1 : vector<64x128xf32>, i32 -> vector<64x128xf32>
    %308 = arith.maximumf %306, %307 : vector<64x128xf32>
    %c32_i32 = arith.constant 32 : i32
    %309 = tpu.dynamic_rotate %308 by %c32_i32 dim 1 : vector<64x128xf32>, i32 -> vector<64x128xf32>
    %310 = arith.maximumf %308, %309 : vector<64x128xf32>
    %c64_i32 = arith.constant 64 : i32
    %311 = tpu.dynamic_rotate %310 by %c64_i32 dim 1 : vector<64x128xf32>, i32 -> vector<64x128xf32>
    %312 = arith.maximumf %310, %311 : vector<64x128xf32>
    %c0_94 = arith.constant 0 : index
    %c0_95 = arith.constant 0 : index
    %313 = vector.load %arg11[%c0_94, %c0_95] : memref<128x64xbf16, #tpu.memory_space<vmem>>, vector<128x64xbf16>
    %314 = arith.truncf %312 : vector<64x128xf32> to vector<64x128xbf16>
    %cst_96 = arith.constant dense<0.000000e+00> : vector<128x128xf32>
    %315 = tpu.matmul %313, %314, %cst_96 {dimension_numbers = #tpu.dot_dimension_numbers<[1], [0], [0], [1], [0, 0, 1, 1], [], []>} : vector<128x64xbf16>, vector<64x128xbf16>, vector<128x128xf32> -> vector<128x128xf32>
    %c0_97 = arith.constant 0 : index
    %c0_98 = arith.constant 0 : index
    %316 = vector.load %arg12[%c0_97, %c0_98] : memref<128x1xf32, #tpu.memory_space<vmem>>, vector<128x1xf32>
    %317 = vector.broadcast %316 : vector<128x1xf32> to vector<128x128xf32>
    %318 = arith.addf %315, %317 : vector<128x128xf32>
    %cst_99 = arith.constant 0.000000e+00 : f32
    %319 = vector.broadcast %cst_99 : f32 to vector<128x128xf32>
    %320 = arith.maximumf %318, %319 : vector<128x128xf32>
    %c0_100 = arith.constant 0 : index
    %c0_101 = arith.constant 0 : index
    %321 = vector.load %arg13[%c0_100, %c0_101] : memref<16x128xbf16, #tpu.memory_space<vmem>>, vector<16x128xbf16>
    %322 = arith.truncf %320 : vector<128x128xf32> to vector<128x128xbf16>
    %cst_102 = arith.constant dense<0.000000e+00> : vector<16x128xf32>
    %323 = tpu.matmul %321, %322, %cst_102 {dimension_numbers = #tpu.dot_dimension_numbers<[1], [0], [0], [1], [0, 0, 1, 1], [], []>} : vector<16x128xbf16>, vector<128x128xbf16>, vector<16x128xf32> -> vector<16x128xf32>
    %c0_103 = arith.constant 0 : index
    %c0_104 = arith.constant 0 : index
    %324 = vector.load %arg14[%c0_103, %c0_104] : memref<16x1xf32, #tpu.memory_space<vmem>>, vector<16x1xf32>
    %325 = vector.broadcast %324 : vector<16x1xf32> to vector<16x128xf32>
    %326 = arith.addf %323, %325 : vector<16x128xf32>
    %c0_105 = arith.constant 0 : index
    %c0_106 = arith.constant 0 : index
    %c0_107 = arith.constant 0 : index
    %327 = vector.load %arg15[%c0_105, %c0_106, %c0_107] : memref<1x16x128xf32, #tpu.memory_space<vmem>>, vector<1x16x128xf32>
    %328 = vector.shape_cast %327 : vector<1x16x128xf32> to vector<16x128xf32>
    %329 = vector.shape_cast %326 : vector<16x128xf32> to vector<1x16x128xf32>
    tpu.vector_store %arg15[%c0_105, %c0_106, %c0_107], %329 {strides = array<i32>} : memref<1x16x128xf32, #tpu.memory_space<vmem>>, vector<1x16x128xf32>,
    return
  }
  func.func @transform_0(%arg0: i32) -> i32 {
    %c0_i32 = arith.constant 0 : i32
    %c0_i32_0 = arith.constant 0 : i32
    return %c0_i32 : i32
  }
  func.func @transform_1(%arg0: i32) -> (i32, i32, i32) {
    %c0_i32 = arith.constant 0 : i32
    %c0_i32_0 = arith.constant 0 : i32
    %c0_i32_1 = arith.constant 0 : i32
    return %arg0, %c0_i32, %c0_i32_0 : i32, i32, i32
  }
  func.func @transform_2(%arg0: i32) -> (i32, i32) {
    %c0_i32 = arith.constant 0 : i32
    %c0_i32_0 = arith.constant 0 : i32
    %c0_i32_1 = arith.constant 0 : i32
    return %c0_i32, %c0_i32_0 : i32, i32
  }
  func.func @transform_3(%arg0: i32) -> (i32, i32) {
    %c0_i32 = arith.constant 0 : i32
    %c0_i32_0 = arith.constant 0 : i32
    %c0_i32_1 = arith.constant 0 : i32
    return %c0_i32, %c0_i32_0 : i32, i32
  }
  func.func @transform_4(%arg0: i32) -> (i32, i32) {
    %c0_i32 = arith.constant 0 : i32
    %c0_i32_0 = arith.constant 0 : i32
    %c0_i32_1 = arith.constant 0 : i32
    return %c0_i32, %c0_i32_0 : i32, i32
  }
  func.func @transform_5(%arg0: i32) -> (i32, i32, i32) {
    %c0_i32 = arith.constant 0 : i32
    %c0_i32_0 = arith.constant 0 : i32
    %c0_i32_1 = arith.constant 0 : i32
    %c0_i32_2 = arith.constant 0 : i32
    return %c0_i32, %c0_i32_0, %c0_i32_1 : i32, i32, i32
  }
  func.func @transform_6(%arg0: i32) -> (i32, i32, i32) {
    %c0_i32 = arith.constant 0 : i32
    %c0_i32_0 = arith.constant 0 : i32
    %c0_i32_1 = arith.constant 0 : i32
    %c0_i32_2 = arith.constant 0 : i32
    return %c0_i32, %c0_i32_0, %c0_i32_1 : i32, i32, i32
  }
  func.func @transform_7(%arg0: i32) -> (i32, i32, i32) {
    %c0_i32 = arith.constant 0 : i32
    %c0_i32_0 = arith.constant 0 : i32
    %c0_i32_1 = arith.constant 0 : i32
    %c0_i32_2 = arith.constant 0 : i32
    return %c0_i32, %c0_i32_0, %c0_i32_1 : i32, i32, i32
  }
  func.func @transform_8(%arg0: i32) -> (i32, i32, i32) {
    %c0_i32 = arith.constant 0 : i32
    %c0_i32_0 = arith.constant 0 : i32
    %c0_i32_1 = arith.constant 0 : i32
    %c0_i32_2 = arith.constant 0 : i32
    return %c0_i32, %c0_i32_0, %c0_i32_1 : i32, i32, i32
  }
  func.func @transform_9(%arg0: i32) -> (i32, i32, i32) {
    %c0_i32 = arith.constant 0 : i32
    %c0_i32_0 = arith.constant 0 : i32
    %c0_i32_1 = arith.constant 0 : i32
    %c0_i32_2 = arith.constant 0 : i32
    return %c0_i32, %c0_i32_0, %c0_i32_1 : i32, i32, i32
  }
  func.func @transform_10(%arg0: i32) -> (i32, i32) {
    %c0_i32 = arith.constant 0 : i32
    %c0_i32_0 = arith.constant 0 : i32
    %c0_i32_1 = arith.constant 0 : i32
    return %c0_i32, %c0_i32_0 : i32, i32
  }
  func.func @transform_11(%arg0: i32) -> (i32, i32) {
    %c0_i32 = arith.constant 0 : i32
    %c0_i32_0 = arith.constant 0 : i32
    %c0_i32_1 = arith.constant 0 : i32
    return %c0_i32, %c0_i32_0 : i32, i32
  }
  func.func @transform_12(%arg0: i32) -> (i32, i32) {
    %c0_i32 = arith.constant 0 : i32
    %c0_i32_0 = arith.constant 0 : i32
    %c0_i32_1 = arith.constant 0 : i32
    return %c0_i32, %c0_i32_0 : i32, i32
  }
  func.func @transform_13(%arg0: i32) -> (i32, i32) {
    %c0_i32 = arith.constant 0 : i32
    %c0_i32_0 = arith.constant 0 : i32
    %c0_i32_1 = arith.constant 0 : i32
    return %c0_i32, %c0_i32_0 : i32, i32
  }
  func.func @transform_14(%arg0: i32) -> (i32, i32, i32) {
    %c0_i32 = arith.constant 0 : i32
    %c0_i32_0 = arith.constant 0 : i32
    %c0_i32_1 = arith.constant 0 : i32
    return %arg0, %c0_i32, %c0_i32_0 : i32, i32, i32
  }
}

</mosaic_0001>

<llo_original>
// kernel: _lambda_.1
$region0: #{_lambda_.1}
  #allocation0 [shape = 'u32[]', space=smem, size = 0x4, offset = 0x4, fixed_abs, tag = 'smem constant byte address 0x4 - core index']
  #allocation1 [shape = 'u32[144,128]{1,0:T(1,128)}', space=vmem, size = 0x12000, scoped, tag = 'internal scratch']
  %s0 = inlined_call_operand.vmem [shape: f32[33], index: 0, kind: input, shape index: {}]
  %s1 = inlined_call_operand.vmem [shape: bf16[2,2,128], index: 1, kind: input, shape index: {}]
  %s2 = inlined_call_operand.vmem [shape: f32[8,128], index: 2, kind: input, shape index: {}]
  %s3 = inlined_call_operand.vmem [shape: bf16[128,512], index: 3, kind: input, shape index: {}]
  %s4 = inlined_call_operand.vmem [shape: bf16[8,2], index: 4, kind: input, shape index: {}]
  %s5 = inlined_call_operand.vmem [shape: bf16[6,2,8], index: 5, kind: input, shape index: {}]
  %s6 = inlined_call_operand.vmem [shape: f32[6,2,1], index: 6, kind: input, shape index: {}]
  %s7 = inlined_call_operand.vmem [shape: bf16[6,2,4], index: 7, kind: input, shape index: {}]
  %s8 = inlined_call_operand.vmem [shape: bf16[2,64,8], index: 8, kind: input, shape index: {}]
  %s9 = inlined_call_operand.vmem [shape: f32[2,64,1], index: 9, kind: input, shape index: {}]
  %s10 = inlined_call_operand.vmem [shape: bf16[128,64], index: 10, kind: input, shape index: {}]
  %s11 = inlined_call_operand.vmem [shape: f32[128,1], index: 11, kind: input, shape index: {}]
  %s12 = inlined_call_operand.vmem [shape: bf16[16,128], index: 12, kind: input, shape index: {}]
  %s13 = inlined_call_operand.vmem [shape: f32[16,1], index: 13, kind: input, shape index: {}]
  %s14 = inlined_call_operand.vmem [shape: f32[2,16,128], index: 14, kind: output, shape index: {}]
  %s15 = sld [smem:[#allocation0]]
  $region93: #{_lambda_.1} parent=0
    _
  %s17 = ssub.s32 1, %s15
  %s18 = scalar_select 0, %s17, %s15
  $region1: #{_lambda_.1} parent=0
    #allocation2 [shape = 'u8[512]{0}', space=smem, size = 0x200, scoped, tag = 'input window, operand 0, single buffered']
    #allocation3 [shape = 's32[2]{0}', space=sflag, size = 0x8, scoped, tag = 'scoped memory for _lambda_.1']
    %19 = vsyncpa [#allocation3], 0
    loop: start=0, step=1, limit=4
    $region2: #{_lambda_.1} parent=1 // loop_pre_header
      _
    $region3: #{_lambda_.1} parent=1 // loop_header
      %s21 = sphi 0, %s25
      %p22 = scmp.ge.s32.totalorder %s21, 4
      %s29 = sphi 0, %s29
      %s31 = sphi 0, %s29
      %s32 = sphi 0, %s31
      %s46 = sphi 0, %s32
      %s52 = sphi 0, %s54
      %s55 = sphi 0, %s52
      %s56 = sphi 0, %s55
      %s72 = sphi 0, %s56
      %s76 = sphi 0, %s76
      %s78 = sphi 0, %s76
      %s79 = sphi 0, %s78
      %s93 = sphi 0, %s79
      %s97 = sphi 0, %s97
      %s99 = sphi 0, %s97
      %s100 = sphi 0, %s99
      %s114 = sphi 0, %s100
      %s118 = sphi 0, %s118
      %s120 = sphi 0, %s118
      %s121 = sphi 0, %s120
      %s135 = sphi 0, %s121
      %s139 = sphi 0, %s139
      %s141 = sphi 0, %s139
      %s142 = sphi 0, %s141
      %s156 = sphi 0, %s142
      %s160 = sphi 0, %s160
      %s162 = sphi 0, %s160
      %s163 = sphi 0, %s162
      %s177 = sphi 0, %s163
      %s181 = sphi 0, %s181
      %s183 = sphi 0, %s181
      %s184 = sphi 0, %s183
      %s198 = sphi 0, %s184
      %s202 = sphi 0, %s202
      %s204 = sphi 0, %s202
      %s205 = sphi 0, %s204
      %s219 = sphi 0, %s205
      %s223 = sphi 0, %s223
      %s225 = sphi 0, %s223
      %s226 = sphi 0, %s225
      %s240 = sphi 0, %s226
      %s244 = sphi 0, %s244
      %s246 = sphi 0, %s244
      %s247 = sphi 0, %s246
      %s261 = sphi 0, %s247
      %s265 = sphi 0, %s265
      %s267 = sphi 0, %s265
      %s268 = sphi 0, %s267
      %s282 = sphi 0, %s268
      %s286 = sphi 0, %s286
      %s288 = sphi 0, %s286
      %s289 = sphi 0, %s288
      %s303 = sphi 0, %s289
      %s307 = sphi 0, %s307
      %s309 = sphi 0, %s307
      %s310 = sphi 0, %s309
      %s324 = sphi 0, %s310
      %s330 = sphi 0, %s332
      %s333 = sphi 0, %s330
      %s334 = sphi 0, %s333
      %s350 = sphi 0, %s334
    $region4: #{_lambda_.1} parent=1 // loop_header_branch
      %24 = sbr.rel (%p22) target = $region8
    $region5: #{_lambda_.1} parent=1 // loop_body
      %s26 = ssub.s32 %s21, 1
      %s27 = ssub.s32 %s21, 2
      %s28 = sadd.s32 %s21, 1
      %s30 = sadd.s32 %s29, 1
      %p33 = scmp.eq.s32.totalorder %s21, 1
      %p34 = scmp.ne.s32.totalorder %s29, %s31
      %p35 = scmp.eq.s32.totalorder %s21, 0
      %p36 = por %p34, %p35
      %p37 = scmp.ne.s32.totalorder %s29, %s31
      %p38 = scmp.eq.s32.totalorder %s26, 1
      %p39 = por %p37, %p38
      %p40 = scmp.ne.s32.totalorder %s31, %s32
      %p41 = scmp.eq.s32.totalorder %s26, 0
      %p42 = por %p40, %p41
      %p43 = scmp.ne.s32.totalorder %s31, %s32
      %p44 = scmp.eq.s32.totalorder %s27, 1
      %p45 = por %p43, %p44
      %p47 = scmp.ne.s32.totalorder %s32, %s46
      %p48 = scmp.eq.s32.totalorder %s27, 0
      %p49 = por %p47, %p48
      %s50 = ssub.s32 %s21, %s28
      %p51 = scmp.eq.s32.totalorder %s50, 0
      %s53 = sadd.s32 %s52, 1
      %s54 = scalar_select %p51, %s52, %s53
      %p57 = pneg %p51
      %p58 = scmp.eq.s32.totalorder %s21, 1
      %p59 = por %p57, %p58
      %p60 = scmp.ne.s32.totalorder %s52, %s55
      %p61 = scmp.eq.s32.totalorder %s21, 0
      %p62 = por %p60, %p61
      %p63 = scmp.ne.s32.totalorder %s52, %s55
      %p64 = scmp.eq.s32.totalorder %s26, 1
      %p65 = por %p63, %p64
      %p66 = scmp.ne.s32.totalorder %s55, %s56
      %p67 = scmp.eq.s32.totalorder %s26, 0
      %p68 = por %p66, %p67
      %p69 = scmp.ne.s32.totalorder %s55, %s56
      %p70 = scmp.eq.s32.totalorder %s27, 1
      %p71 = por %p69, %p70
      %p73 = scmp.ne.s32.totalorder %s56, %s72
      %p74 = scmp.eq.s32.totalorder %s27, 0
      %p75 = por %p73, %p74
      %s77 = sadd.s32 %s76, 1
      %p80 = scmp.eq.s32.totalorder %s21, 1
      %p81 = scmp.ne.s32.totalorder %s76, %s78
      %p82 = scmp.eq.s32.totalorder %s21, 0
      %p83 = por %p81, %p82
      %p84 = scmp.ne.s32.totalorder %s76, %s78
      %p85 = scmp.eq.s32.totalorder %s26, 1
      %p86 = por %p84, %p85
      %p87 = scmp.ne.s32.totalorder %s78, %s79
      %p88 = scmp.eq.s32.totalorder %s26, 0
      %p89 = por %p87, %p88
      %p90 = scmp.ne.s32.totalorder %s78, %s79
      %p91 = scmp.eq.s32.totalorder %s27, 1
      %p92 = por %p90, %p91
      %p94 = scmp.ne.s32.totalorder %s79, %s93
      %p95 = scmp.eq.s32.totalorder %s27, 0
      %p96 = por %p94, %p95
      %s98 = sadd.s32 %s97, 1
      %p101 = scmp.eq.s32.totalorder %s21, 1
      %p102 = scmp.ne.s32.totalorder %s97, %s99
      %p103 = scmp.eq.s32.totalorder %s21, 0
      %p104 = por %p102, %p103
      %p105 = scmp.ne.s32.totalorder %s97, %s99
      %p106 = scmp.eq.s32.totalorder %s26, 1
      %p107 = por %p105, %p106
      %p108 = scmp.ne.s32.totalorder %s99, %s100
      %p109 = scmp.eq.s32.totalorder %s26, 0
      %p110 = por %p108, %p109
      %p111 = scmp.ne.s32.totalorder %s99, %s100
      %p112 = scmp.eq.s32.totalorder %s27, 1
      %p113 = por %p111, %p112
      %p115 = scmp.ne.s32.totalorder %s100, %s114
      %p116 = scmp.eq.s32.totalorder %s27, 0
      %p117 = por %p115, %p116
      %s119 = sadd.s32 %s118, 1
      %p122 = scmp.eq.s32.totalorder %s21, 1
      %p123 = scmp.ne.s32.totalorder %s118, %s120
      %p124 = scmp.eq.s32.totalorder %s21, 0
      %p125 = por %p123, %p124
      %p126 = scmp.ne.s32.totalorder %s118, %s120
      %p127 = scmp.eq.s32.totalorder %s26, 1
      %p128 = por %p126, %p127
      %p129 = scmp.ne.s32.totalorder %s120, %s121
      %p130 = scmp.eq.s32.totalorder %s26, 0
      %p131 = por %p129, %p130
      %p132 = scmp.ne.s32.totalorder %s120, %s121
      %p133 = scmp.eq.s32.totalorder %s27, 1
      %p134 = por %p132, %p133
      %p136 = scmp.ne.s32.totalorder %s121, %s135
      %p137 = scmp.eq.s32.totalorder %s27, 0
      %p138 = por %p136, %p137
      %s140 = sadd.s32 %s139, 1
      %p143 = scmp.eq.s32.totalorder %s21, 1
      %p144 = scmp.ne.s32.totalorder %s139, %s141
      %p145 = scmp.eq.s32.totalorder %s21, 0
      %p146 = por %p144, %p145
      %p147 = scmp.ne.s32.totalorder %s139, %s141
      %p148 = scmp.eq.s32.totalorder %s26, 1
      %p149 = por %p147, %p148
      %p150 = scmp.ne.s32.totalorder %s141, %s142
      %p151 = scmp.eq.s32.totalorder %s26, 0
      %p152 = por %p150, %p151
      %p153 = scmp.ne.s32.totalorder %s141, %s142
      %p154 = scmp.eq.s32.totalorder %s27, 1
      %p155 = por %p153, %p154
      %p157 = scmp.ne.s32.totalorder %s142, %s156
      %p158 = scmp.eq.s32.totalorder %s27, 0
      %p159 = por %p157, %p158
      %s161 = sadd.s32 %s160, 1
      %p164 = scmp.eq.s32.totalorder %s21, 1
      %p165 = scmp.ne.s32.totalorder %s160, %s162
      %p166 = scmp.eq.s32.totalorder %s21, 0
      %p167 = por %p165, %p166
      %p168 = scmp.ne.s32.totalorder %s160, %s162
      %p169 = scmp.eq.s32.totalorder %s26, 1
      %p170 = por %p168, %p169
      %p171 = scmp.ne.s32.totalorder %s162, %s163
      %p172 = scmp.eq.s32.totalorder %s26, 0
      %p173 = por %p171, %p172
      %p174 = scmp.ne.s32.totalorder %s162, %s163
      %p175 = scmp.eq.s32.totalorder %s27, 1
      %p176 = por %p174, %p175
      %p178 = scmp.ne.s32.totalorder %s163, %s177
      %p179 = scmp.eq.s32.totalorder %s27, 0
      %p180 = por %p178, %p179
      %s182 = sadd.s32 %s181, 1
      %p185 = scmp.eq.s32.totalorder %s21, 1
      %p186 = scmp.ne.s32.totalorder %s181, %s183
      %p187 = scmp.eq.s32.totalorder %s21, 0
      %p188 = por %p186, %p187
      %p189 = scmp.ne.s32.totalorder %s181, %s183
      %p190 = scmp.eq.s32.totalorder %s26, 1
      %p191 = por %p189, %p190
      %p192 = scmp.ne.s32.totalorder %s183, %s184
      %p193 = scmp.eq.s32.totalorder %s26, 0
      %p194 = por %p192, %p193
      %p195 = scmp.ne.s32.totalorder %s183, %s184
      %p196 = scmp.eq.s32.totalorder %s27, 1
      %p197 = por %p195, %p196
      %p199 = scmp.ne.s32.totalorder %s184, %s198
      %p200 = scmp.eq.s32.totalorder %s27, 0
      %p201 = por %p199, %p200
      %s203 = sadd.s32 %s202, 1
      %p206 = scmp.eq.s32.totalorder %s21, 1
      %p207 = scmp.ne.s32.totalorder %s202, %s204
      %p208 = scmp.eq.s32.totalorder %s21, 0
      %p209 = por %p207, %p208
      %p210 = scmp.ne.s32.totalorder %s202, %s204
      %p211 = scmp.eq.s32.totalorder %s26, 1
      %p212 = por %p210, %p211
      %p213 = scmp.ne.s32.totalorder %s204, %s205
      %p214 = scmp.eq.s32.totalorder %s26, 0
      %p215 = por %p213, %p214
      %p216 = scmp.ne.s32.totalorder %s204, %s205
      %p217 = scmp.eq.s32.totalorder %s27, 1
      %p218 = por %p216, %p217
      %p220 = scmp.ne.s32.totalorder %s205, %s219
      %p221 = scmp.eq.s32.totalorder %s27, 0
      %p222 = por %p220, %p221
      %s224 = sadd.s32 %s223, 1
      %p227 = scmp.eq.s32.totalorder %s21, 1
      %p228 = scmp.ne.s32.totalorder %s223, %s225
      %p229 = scmp.eq.s32.totalorder %s21, 0
      %p230 = por %p228, %p229
      %p231 = scmp.ne.s32.totalorder %s223, %s225
      %p232 = scmp.eq.s32.totalorder %s26, 1
      %p233 = por %p231, %p232
      %p234 = scmp.ne.s32.totalorder %s225, %s226
      %p235 = scmp.eq.s32.totalorder %s26, 0
      %p236 = por %p234, %p235
      %p237 = scmp.ne.s32.totalorder %s225, %s226
      %p238 = scmp.eq.s32.totalorder %s27, 1
      %p239 = por %p237, %p238
      %p241 = scmp.ne.s32.totalorder %s226, %s240
      %p242 = scmp.eq.s32.totalorder %s27, 0
      %p243 = por %p241, %p242
      %s245 = sadd.s32 %s244, 1
      %p248 = scmp.eq.s32.totalorder %s21, 1
      %p249 = scmp.ne.s32.totalorder %s244, %s246
      %p250 = scmp.eq.s32.totalorder %s21, 0
      %p251 = por %p249, %p250
      %p252 = scmp.ne.s32.totalorder %s244, %s246
      %p253 = scmp.eq.s32.totalorder %s26, 1
      %p254 = por %p252, %p253
      %p255 = scmp.ne.s32.totalorder %s246, %s247
      %p256 = scmp.eq.s32.totalorder %s26, 0
      %p257 = por %p255, %p256
      %p258 = scmp.ne.s32.totalorder %s246, %s247
      %p259 = scmp.eq.s32.totalorder %s27, 1
      %p260 = por %p258, %p259
      %p262 = scmp.ne.s32.totalorder %s247, %s261
      %p263 = scmp.eq.s32.totalorder %s27, 0
      %p264 = por %p262, %p263
      %s266 = sadd.s32 %s265, 1
      %p269 = scmp.eq.s32.totalorder %s21, 1
      %p270 = scmp.ne.s32.totalorder %s265, %s267
      %p271 = scmp.eq.s32.totalorder %s21, 0
      %p272 = por %p270, %p271
      %p273 = scmp.ne.s32.totalorder %s265, %s267
      %p274 = scmp.eq.s32.totalorder %s26, 1
      %p275 = por %p273, %p274
      %p276 = scmp.ne.s32.totalorder %s267, %s268
      %p277 = scmp.eq.s32.totalorder %s26, 0
      %p278 = por %p276, %p277
      %p279 = scmp.ne.s32.totalorder %s267, %s268
      %p280 = scmp.eq.s32.totalorder %s27, 1
      %p281 = por %p279, %p280
      %p283 = scmp.ne.s32.totalorder %s268, %s282
      %p284 = scmp.eq.s32.totalorder %s27, 0
      %p285 = por %p283, %p284
      %s287 = sadd.s32 %s286, 1
      %p290 = scmp.eq.s32.totalorder %s21, 1
      %p291 = scmp.ne.s32.totalorder %s286, %s288
      %p292 = scmp.eq.s32.totalorder %s21, 0
      %p293 = por %p291, %p292
      %p294 = scmp.ne.s32.totalorder %s286, %s288
      %p295 = scmp.eq.s32.totalorder %s26, 1
      %p296 = por %p294, %p295
      %p297 = scmp.ne.s32.totalorder %s288, %s289
      %p298 = scmp.eq.s32.totalorder %s26, 0
      %p299 = por %p297, %p298
      %p300 = scmp.ne.s32.totalorder %s288, %s289
      %p301 = scmp.eq.s32.totalorder %s27, 1
      %p302 = por %p300, %p301
      %p304 = scmp.ne.s32.totalorder %s289, %s303
      %p305 = scmp.eq.s32.totalorder %s27, 0
      %p306 = por %p304, %p305
      %s308 = sadd.s32 %s307, 1
      %p311 = scmp.eq.s32.totalorder %s21, 1
      %p312 = scmp.ne.s32.totalorder %s307, %s309
      %p313 = scmp.eq.s32.totalorder %s21, 0
      %p314 = por %p312, %p313
      %p315 = scmp.ne.s32.totalorder %s307, %s309
      %p316 = scmp.eq.s32.totalorder %s26, 1
      %p317 = por %p315, %p316
      %p318 = scmp.ne.s32.totalorder %s309, %s310
      %p319 = scmp.eq.s32.totalorder %s26, 0
      %p320 = por %p318, %p319
      %p321 = scmp.ne.s32.totalorder %s309, %s310
      %p322 = scmp.eq.s32.totalorder %s27, 1
      %p323 = por %p321, %p322
      %p325 = scmp.ne.s32.totalorder %s310, %s324
      %p326 = scmp.eq.s32.totalorder %s27, 0
      %p327 = por %p325, %p326
      %s328 = ssub.s32 %s21, %s28
      %p329 = scmp.eq.s32.totalorder %s328, 0
      %s331 = sadd.s32 %s330, 1
      %s332 = scalar_select %p329, %s330, %s331
      %p335 = pneg %p329
      %p336 = scmp.eq.s32.totalorder %s21, 1
      %p337 = por %p335, %p336
      %p338 = scmp.ne.s32.totalorder %s330, %s333
      %p339 = scmp.eq.s32.totalorder %s21, 0
      %p340 = por %p338, %p339
      %p341 = scmp.ne.s32.totalorder %s330, %s333
      %p342 = scmp.eq.s32.totalorder %s26, 1
      %p343 = por %p341, %p342
      %p344 = scmp.ne.s32.totalorder %s333, %s334
      %p345 = scmp.eq.s32.totalorder %s26, 0
      %p346 = por %p344, %p345
      %p347 = scmp.ne.s32.totalorder %s333, %s334
      %p348 = scmp.eq.s32.totalorder %s27, 1
      %p349 = por %p347, %p348
      %p351 = scmp.ne.s32.totalorder %s334, %s350
      %p352 = scmp.eq.s32.totalorder %s27, 0
      %p353 = por %p351, %p352
      %p354 = scmp.le.s32.totalorder 1, %s21
      %p355 = scmp.lt.s32.totalorder %s21, 3
      %p356 = pnand %p354, %p355
      %p357 = pneg %p356
      // Predicated region
      $region9: #{_lambda_.1} parent=5 // pred_check
        _
      $region10: #{_lambda_.1} parent=5 // pred_check_branch
        %359 = sbr.rel (%p356) target = $region12
      $region11: #{_lambda_.1} parent=5 // pred_region
        %s360 = ssub.s32 %s21, 1
        // Predicated region
        $region13: #{_lambda_.1} parent=11 // pred_check
          %p361 = pneg %p42
        $region14: #{_lambda_.1} parent=11 // pred_check_branch
          %363 = sbr.rel (%p361) target = $region16
        $region15: #{_lambda_.1} parent=11 // pred_region
          %s365 = ssub.s32 16, 16
          %366 = vsyncadd [#allocation3], %s365
          %s368 = sshll.u32 %s0, 4
          %s369 = int_to_ptr.vmem [resolvable:$true] %s368
          %371 = dma.vmem_to_smem %s369, 16, [#allocation2], [#allocation3]
        $region16: #{_lambda_.1} parent=11 // pred_fallthru
          _
        // Predicated region
        $region17: #{_lambda_.1} parent=11 // pred_check
          %p372 = pneg %p89
        $region18: #{_lambda_.1} parent=11 // pred_check_branch
          %374 = sbr.rel (%p372) target = $region20
        $region19: #{_lambda_.1} parent=11 // pred_region
          _
        $region20: #{_lambda_.1} parent=11 // pred_fallthru
          _
        // Predicated region
        $region21: #{_lambda_.1} parent=11 // pred_check
          %p375 = pneg %p110
        $region22: #{_lambda_.1} parent=11 // pred_check_branch
          %377 = sbr.rel (%p375) target = $region24
        $region23: #{_lambda_.1} parent=11 // pred_region
          _
        $region24: #{_lambda_.1} parent=11 // pred_fallthru
          _
        // Predicated region
        $region25: #{_lambda_.1} parent=11 // pred_check
          %p378 = pneg %p131
        $region26: #{_lambda_.1} parent=11 // pred_check_branch
          %380 = sbr.rel (%p378) target = $region28
        $region27: #{_lambda_.1} parent=11 // pred_region
          _
        $region28: #{_lambda_.1} parent=11 // pred_fallthru
          _
        // Predicated region
        $region29: #{_lambda_.1} parent=11 // pred_check
          %p381 = pneg %p152
        $region30: #{_lambda_.1} parent=11 // pred_check_branch
          %383 = sbr.rel (%p381) target = $region32
        $region31: #{_lambda_.1} parent=11 // pred_region
          _
        $region32: #{_lambda_.1} parent=11 // pred_fallthru
          _
        // Predicated region
        $region33: #{_lambda_.1} parent=11 // pred_check
          %p384 = pneg %p173
        $region34: #{_lambda_.1} parent=11 // pred_check_branch
          %386 = sbr.rel (%p384) target = $region36
        $region35: #{_lambda_.1} parent=11 // pred_region
          _
        $region36: #{_lambda_.1} parent=11 // pred_fallthru
          _
        // Predicated region
        $region37: #{_lambda_.1} parent=11 // pred_check
          %p387 = pneg %p194
        $region38: #{_lambda_.1} parent=11 // pred_check_branch
          %389 = sbr.rel (%p387) target = $region40
        $region39: #{_lambda_.1} parent=11 // pred_region
          _
        $region40: #{_lambda_.1} parent=11 // pred_fallthru
          _
        // Predicated region
        $region41: #{_lambda_.1} parent=11 // pred_check
          %p390 = pneg %p215
        $region42: #{_lambda_.1} parent=11 // pred_check_branch
          %392 = sbr.rel (%p390) target = $region44
        $region43: #{_lambda_.1} parent=11 // pred_region
          _
        $region44: #{_lambda_.1} parent=11 // pred_fallthru
          _
        // Predicated region
        $region45: #{_lambda_.1} parent=11 // pred_check
          %p393 = pneg %p236
        $region46: #{_lambda_.1} parent=11 // pred_check_branch
          %395 = sbr.rel (%p393) target = $region48
        $region47: #{_lambda_.1} parent=11 // pred_region
          _
        $region48: #{_lambda_.1} parent=11 // pred_fallthru
          _
        // Predicated region
        $region49: #{_lambda_.1} parent=11 // pred_check
          %p396 = pneg %p257
        $region50: #{_lambda_.1} parent=11 // pred_check_branch
          %398 = sbr.rel (%p396) target = $region52
        $region51: #{_lambda_.1} parent=11 // pred_region
          _
        $region52: #{_lambda_.1} parent=11 // pred_fallthru
          _
        // Predicated region
        $region53: #{_lambda_.1} parent=11 // pred_check
          %p399 = pneg %p278
        $region54: #{_lambda_.1} parent=11 // pred_check_branch
          %401 = sbr.rel (%p399) target = $region56
        $region55: #{_lambda_.1} parent=11 // pred_region
          _
        $region56: #{_lambda_.1} parent=11 // pred_fallthru
          _
        // Predicated region
        $region57: #{_lambda_.1} parent=11 // pred_check
          %p402 = pneg %p299
        $region58: #{_lambda_.1} parent=11 // pred_check_branch
          %404 = sbr.rel (%p402) target = $region60
        $region59: #{_lambda_.1} parent=11 // pred_region
          _
        $region60: #{_lambda_.1} parent=11 // pred_fallthru
          _
        // Predicated region
        $region61: #{_lambda_.1} parent=11 // pred_check
          %p405 = pneg %p320
        $region62: #{_lambda_.1} parent=11 // pred_check_branch
          %407 = sbr.rel (%p405) target = $region64
        $region63: #{_lambda_.1} parent=11 // pred_region
          _
        $region64: #{_lambda_.1} parent=11 // pred_fallthru
          _
      $region12: #{_lambda_.1} parent=5 // pred_fallthru
        _
      %p408 = scmp.lt.s32.totalorder %s21, 2
      // Predicated region
      $region65: #{_lambda_.1} parent=5 // pred_check
        %p409 = pneg %p408
      $region66: #{_lambda_.1} parent=5 // pred_check_branch
        %411 = sbr.rel (%p409) target = $region68
      $region67: #{_lambda_.1} parent=5 // pred_region
        // Predicated region
        $region69: #{_lambda_.1} parent=67 // pred_check
          %p412 = pneg %p62
        $region70: #{_lambda_.1} parent=67 // pred_check_branch
          %414 = sbr.rel (%p412) target = $region72
        $region71: #{_lambda_.1} parent=67 // pred_region
          %p415 = scmp.lt.s32.totalorder %s21, 1
          %s416 = scalar_select %p415, %s21, 1
          %s417 = scalar_lea.vmem %s1, %s416
        $region72: #{_lambda_.1} parent=67 // pred_fallthru
          _
      $region68: #{_lambda_.1} parent=5 // pred_fallthru
        _
      %p418 = scmp.le.s32.totalorder 1, %s21
      %p419 = scmp.lt.s32.totalorder %s21, 3
      %p420 = pnand %p418, %p419
      %p421 = pneg %p420
      // Predicated region
      $region73: #{_lambda_.1} parent=5 // pred_check
        _
      $region74: #{_lambda_.1} parent=5 // pred_check_branch
        %423 = sbr.rel (%p420) target = $region76
      $region75: #{_lambda_.1} parent=5 // pred_region
        %s424 = ssub.s32 %s21, 1
        // Predicated region
        $region77: #{_lambda_.1} parent=75 // pred_check
          %p425 = pneg %p42
        $region78: #{_lambda_.1} parent=75 // pred_check_branch
          %427 = sbr.rel (%p425) target = $region80
        $region79: #{_lambda_.1} parent=75 // pred_region
          %428 = dma.done [#allocation3], 16
        $region80: #{_lambda_.1} parent=75 // pred_fallthru
          _
        %429 = sfence
        %p430 = pneg %p42
        %p431 = pneg %p39
        %p432 = scmp.lt.s32.totalorder %s26, 1
        %s433 = scalar_select %p432, %s26, 1
        %s434 = scalar_lea.vmem %s1, %s433
        %p435 = pneg %p68
        %p436 = pneg %p65
        %p437 = pneg %p89
        %p438 = pneg %p86
        %p439 = pneg %p110
        %p440 = pneg %p107
        %p441 = pneg %p131
        %p442 = pneg %p128
        %p443 = pneg %p152
        %p444 = pneg %p149
        %p445 = pneg %p173
        %p446 = pneg %p170
        %p447 = pneg %p194
        %p448 = pneg %p191
        %p449 = pneg %p215
        %p450 = pneg %p212
        %p451 = pneg %p236
        %p452 = pneg %p233
        %p453 = pneg %p257
        %p454 = pneg %p254
        %p455 = pneg %p278
        %p456 = pneg %p275
        %p457 = pneg %p299
        %p458 = pneg %p296
        %p459 = pneg %p320
        %p460 = pneg %p317
        %p461 = pneg %p346
        %p462 = pneg %p343
        %p463 = scmp.lt.s32.totalorder %s26, 1
        %s464 = scalar_select %p463, %s26, 1
        %s465 = smul.addr %s464, 2
        %s466 = smul.addr %s465, 8
        %s467 = scalar_lea.vmem %s14, %s466
        %p468 = scmp.lt.s32.totalorder %s26, 1
        %s469 = scalar_select %p468, %s26, 1
        %s470 = scalar_lea.vmem %s1, %s469
        %p471 = scmp.lt.s32.totalorder %s26, 1
        %s472 = scalar_select %p471, %s26, 1
        %s473 = smul.addr %s472, 2
        %s474 = smul.addr %s473, 8
        %s475 = scalar_lea.vmem %s14, %s474
        %v477 = vld [vmem:[%s3] sm:$0xff]
        %v478 = vld [vmem:[%s3 + $0x8] sm:$0xff]
        %v479 = vld [vmem:[%s3 + $0x10] sm:$0xff]
        %v480 = vld [vmem:[%s3 + $0x18] sm:$0xff]
        %v481 = vld [vmem:[%s3 + $0x20] sm:$0xff]
        %v482 = vld [vmem:[%s3 + $0x28] sm:$0xff]
        %v483 = vld [vmem:[%s3 + $0x30] sm:$0xff]
        %v484 = vld [vmem:[%s3 + $0x38] sm:$0xff]
        %v485 = vld [vmem:[%s3 + $0x40] sm:$0xff]
        %v486 = vld [vmem:[%s3 + $0x48] sm:$0xff]
        %v487 = vld [vmem:[%s3 + $0x50] sm:$0xff]
        %v488 = vld [vmem:[%s3 + $0x58] sm:$0xff]
        %v489 = vld [vmem:[%s3 + $0x60] sm:$0xff]
        %v490 = vld [vmem:[%s3 + $0x68] sm:$0xff]
        %v491 = vld [vmem:[%s3 + $0x70] sm:$0xff]
        %v492 = vld [vmem:[%s3 + $0x78] sm:$0xff]
        %v493 = vld [vmem:[%s3 + $0x80] sm:$0xff]
        %v494 = vld [vmem:[%s3 + $0x88] sm:$0xff]
        %v495 = vld [vmem:[%s3 + $0x90] sm:$0xff]
        %v496 = vld [vmem:[%s3 + $0x98] sm:$0xff]
        %v497 = vld [vmem:[%s3 + $0xa0] sm:$0xff]
        %v498 = vld [vmem:[%s3 + $0xa8] sm:$0xff]
        %v499 = vld [vmem:[%s3 + $0xb0] sm:$0xff]
        %v500 = vld [vmem:[%s3 + $0xb8] sm:$0xff]
        %v501 = vld [vmem:[%s3 + $0xc0] sm:$0xff]
        %v502 = vld [vmem:[%s3 + $0xc8] sm:$0xff]
        %v503 = vld [vmem:[%s3 + $0xd0] sm:$0xff]
        %v504 = vld [vmem:[%s3 + $0xd8] sm:$0xff]
        %v505 = vld [vmem:[%s3 + $0xe0] sm:$0xff]
        %v506 = vld [vmem:[%s3 + $0xe8] sm:$0xff]
        %v507 = vld [vmem:[%s3 + $0xf0] sm:$0xff]
        %v508 = vld [vmem:[%s3 + $0xf8] sm:$0xff]
        %v509 = vld [vmem:[%s4] sm:$0xf]
        %v510 = vld [vmem:[%s470] sm:$0x1]
        %vm511 = vcmask 15360
        %v513 = vsel %vm511, %v509, 0
        %vm515 = vcmask 1040384
        %v517 = vsel %vm515, %v510, 0
        %519 = vmatprep.subr.bf16.mxu0 0
        %520 = vmatpush1.bf16.msra.mxu0 0
        %521 = vmatprep.subr.bf16.mxu0 0
        %522 = vmatpush1.bf16.msra.mxu0 0
        %523 = vmatprep.subr.bf16.mxu0 0
        %524 = vmatpush1.bf16.msra.mxu0 0
        %525 = vmatprep.subr.bf16.mxu0 0
        %526 = vmatpush1.bf16.msra.mxu0 0
        %527 = vmatprep.subr.bf16.mxu0 0
        %528 = vmatpush1.bf16.msra.mxu0 0
        %529 = vmatprep.subr.bf16.mxu0 0
        %530 = vmatpush1.bf16.msra.mxu0 0
        %531 = vmatprep.subr.bf16.mxu0 0
        %532 = vmatpush1.bf16.msra.mxu0 0
        %533 = vmatprep.subr.bf16.mxu0 0
        %534 = vmatpush1.bf16.msra.mxu0 %v517
        %535 = vmatprep.subr.bf16.mxu0 0
        %536 = vmatpush2.bf16.msra.mxu0 0
        %537 = vmatprep.subr.bf16.mxu0 0
        %538 = vmatpush2.bf16.msra.mxu0 0
        %539 = vmatprep.subr.bf16.mxu0 0
        %540 = vmatpush2.bf16.msra.mxu0 0
        %541 = vmatprep.subr.bf16.mxu0 0
        %542 = vmatpush2.bf16.msra.mxu0 0
        %543 = vmatprep.subr.bf16.mxu0 0
        %544 = vmatpush2.bf16.msra.mxu0 0
        %545 = vmatprep.subr.bf16.mxu0 0
        %546 = vmatpush2.bf16.msra.mxu0 0
        %547 = vmatprep.subr.bf16.mxu0 0
        %548 = vmatpush2.bf16.msra.mxu0 0
        %549 = vmatprep.subr.bf16.mxu0 0
        %550 = vmatpush2.bf16.msra.mxu0 0
        %551 = vmatprep.mubr.bf16.mxu0 0
        %552 = vmatmul.mubr.bf16.gmra.mxu0 %v513
        %v553 = vpop.f32.mrf.mxu0
        %v554 = vadd.f32 0.0, %v553
        %v555 = vpop.f32.mrf.mxu0
        %v556 = vpop.f32.mrf.mxu0
        %v557 = vpop.f32.mrf.mxu0
        %558 = vdwg.mxu0
        %v559 = vmul.f32 %v554, 2.828427
        %v560 = vld [vmem:[%s2] sm:$0xff]
        %v561 = vadd.f32 %v559, %v560
        %s562 = sld [smem:[#allocation2 + $0x1e]]
        %v563 = vstv %s562
        %v564 = vmul.f32 %v563, %v561
        %v565 = vpack.c.bf16 %v564, %v564
        %v598 = vunpack.c.l.b16 %v477
        %v599 = vunpack.c.h.b16 %v477
        %v600 = vunpack.c.l.b16 %v478
        %v601 = vunpack.c.h.b16 %v478
        %v602 = vunpack.c.l.b16 %v479
        %v603 = vunpack.c.h.b16 %v479
        %v604 = vunpack.c.l.b16 %v480
        %v605 = vunpack.c.h.b16 %v480
        %v606 = vunpack.c.l.b16 %v481
        %v607 = vunpack.c.h.b16 %v481
        %v608 = vunpack.c.l.b16 %v482
        %v609 = vunpack.c.h.b16 %v482
        %v610 = vunpack.c.l.b16 %v483
        %v611 = vunpack.c.h.b16 %v483
        %v612 = vunpack.c.l.b16 %v484
        %v613 = vunpack.c.h.b16 %v484
        %v614 = vunpack.c.l.b16 %v485
        %v615 = vunpack.c.h.b16 %v485
        %v616 = vunpack.c.l.b16 %v486
        %v617 = vunpack.c.h.b16 %v486
        %v618 = vunpack.c.l.b16 %v487
        %v619 = vunpack.c.h.b16 %v487
        %v620 = vunpack.c.l.b16 %v488
        %v621 = vunpack.c.h.b16 %v488
        %v622 = vunpack.c.l.b16 %v489
        %v623 = vunpack.c.h.b16 %v489
        %v624 = vunpack.c.l.b16 %v490
        %v625 = vunpack.c.h.b16 %v490
        %v626 = vunpack.c.l.b16 %v491
        %v627 = vunpack.c.h.b16 %v491
        %v628 = vunpack.c.l.b16 %v492
        %v629 = vunpack.c.h.b16 %v492
        %v630 = vunpack.c.l.b16 %v493
        %v631 = vunpack.c.h.b16 %v493
        %v632 = vunpack.c.l.b16 %v494
        %v633 = vunpack.c.h.b16 %v494
        %v634 = vunpack.c.l.b16 %v495
        %v635 = vunpack.c.h.b16 %v495
        %v636 = vunpack.c.l.b16 %v496
        %v637 = vunpack.c.h.b16 %v496
        %v638 = vunpack.c.l.b16 %v497
        %v639 = vunpack.c.h.b16 %v497
        %v640 = vunpack.c.l.b16 %v498
        %v641 = vunpack.c.h.b16 %v498
        %v642 = vunpack.c.l.b16 %v499
        %v643 = vunpack.c.h.b16 %v499
        %v644 = vunpack.c.l.b16 %v500
        %v645 = vunpack.c.h.b16 %v500
        %v646 = vunpack.c.l.b16 %v501
        %v647 = vunpack.c.h.b16 %v501
        %v648 = vunpack.c.l.b16 %v502
        %v649 = vunpack.c.h.b16 %v502
        %v650 = vunpack.c.l.b16 %v503
        %v651 = vunpack.c.h.b16 %v503
        %v652 = vunpack.c.l.b16 %v504
        %v653 = vunpack.c.h.b16 %v504
        %v654 = vunpack.c.l.b16 %v505
        %v655 = vunpack.c.h.b16 %v505
        %v656 = vunpack.c.l.b16 %v506
        %v657 = vunpack.c.h.b16 %v506
        %v658 = vunpack.c.l.b16 %v507
        %v659 = vunpack.c.h.b16 %v507
        %v660 = vunpack.c.l.b16 %v508
        %v661 = vunpack.c.h.b16 %v508
        %v662 = vpack.c.b16 %v602, %v598
        %v663 = vpack.c.b16 %v603, %v599
        %v664 = vpack.c.b16 %v604, %v600
        %v665 = vpack.c.b16 %v605, %v601
        %v666 = vpack.c.b16 %v610, %v606
        %v667 = vpack.c.b16 %v611, %v607
        %v668 = vpack.c.b16 %v612, %v608
        %v669 = vpack.c.b16 %v613, %v609
        %v670 = vpack.c.b16 %v618, %v614
        %v671 = vpack.c.b16 %v619, %v615
        %v672 = vpack.c.b16 %v620, %v616
        %v673 = vpack.c.b16 %v621, %v617
        %v674 = vpack.c.b16 %v626, %v622
        %v675 = vpack.c.b16 %v627, %v623
        %v676 = vpack.c.b16 %v628, %v624
        %v677 = vpack.c.b16 %v629, %v625
        %v678 = vpack.c.b16 %v634, %v630
        %v679 = vpack.c.b16 %v635, %v631
        %v680 = vpack.c.b16 %v636, %v632
        %v681 = vpack.c.b16 %v637, %v633
        %v682 = vpack.c.b16 %v642, %v638
        %v683 = vpack.c.b16 %v643, %v639
        %v684 = vpack.c.b16 %v644, %v640
        %v685 = vpack.c.b16 %v645, %v641
        %v686 = vpack.c.b16 %v650, %v646
        %v687 = vpack.c.b16 %v651, %v647
        %v688 = vpack.c.b16 %v652, %v648
        %v689 = vpack.c.b16 %v653, %v649
        %v690 = vpack.c.b16 %v658, %v654
        %v691 = vpack.c.b16 %v659, %v655
        %v692 = vpack.c.b16 %v660, %v656
        %v693 = vpack.c.b16 %v661, %v657
        %726 = vmatprep.subr.bf16.mxu0 %v691
        %727 = vmatpush1.bf16.msra.mxu0 %v690
        %728 = vmatprep.subr.bf16.mxu0 %v687
        %729 = vmatpush1.bf16.msra.mxu0 %v686
        %730 = vmatprep.subr.bf16.mxu0 %v683
        %731 = vmatpush1.bf16.msra.mxu0 %v682
        %732 = vmatprep.subr.bf16.mxu0 %v679
        %733 = vmatpush1.bf16.msra.mxu0 %v678
        %734 = vmatprep.subr.bf16.mxu0 %v675
        %735 = vmatpush1.bf16.msra.mxu0 %v674
        %736 = vmatprep.subr.bf16.mxu0 %v671
        %737 = vmatpush1.bf16.msra.mxu0 %v670
        %738 = vmatprep.subr.bf16.mxu0 %v667
        %739 = vmatpush1.bf16.msra.mxu0 %v666
        %740 = vmatprep.subr.bf16.mxu0 %v663
        %741 = vmatpush1.bf16.msra.mxu0 %v662
        %742 = vmatprep.subr.bf16.mxu0 0
        %743 = vmatpush2.bf16.msra.mxu0 0
        %744 = vmatprep.subr.bf16.mxu0 0
        %745 = vmatpush2.bf16.msra.mxu0 0
        %746 = vmatprep.subr.bf16.mxu0 0
        %747 = vmatpush2.bf16.msra.mxu0 0
        %748 = vmatprep.subr.bf16.mxu0 0
        %749 = vmatpush2.bf16.msra.mxu0 0
        %750 = vmatprep.subr.bf16.mxu0 0
        %751 = vmatpush2.bf16.msra.mxu0 0
        %752 = vmatprep.subr.bf16.mxu0 0
        %753 = vmatpush2.bf16.msra.mxu0 0
        %754 = vmatprep.subr.bf16.mxu0 0
        %755 = vmatpush2.bf16.msra.mxu0 0
        %756 = vmatprep.subr.bf16.mxu0 0
        %757 = vmatpush2.bf16.msra.mxu0 0
        %758 = vmatprep.mubr.bf16.mxu0 0
        %759 = vmatmul.mubr.bf16.gmra.mxu0 %v565
        %v760 = vpop.f32.mrf.mxu0
        %v761 = vadd.f32 0.0, %v760
        %v762 = vpop.f32.mrf.mxu0
        %v763 = vadd.f32 0.0, %v762
        %v764 = vpop.f32.mrf.mxu0
        %v765 = vpop.f32.mrf.mxu0
        %766 = vdwg.mxu0
        %767 = vmatprep.subr.bf16.mxu0 %v693
        %768 = vmatpush1.bf16.msra.mxu0 %v692
        %769 = vmatprep.subr.bf16.mxu0 %v689
        %770 = vmatpush1.bf16.msra.mxu0 %v688
        %771 = vmatprep.subr.bf16.mxu0 %v685
        %772 = vmatpush1.bf16.msra.mxu0 %v684
        %773 = vmatprep.subr.bf16.mxu0 %v681
        %774 = vmatpush1.bf16.msra.mxu0 %v680
        %775 = vmatprep.subr.bf16.mxu0 %v677
        %776 = vmatpush1.bf16.msra.mxu0 %v676
        %777 = vmatprep.subr.bf16.mxu0 %v673
        %778 = vmatpush1.bf16.msra.mxu0 %v672
        %779 = vmatprep.subr.bf16.mxu0 %v669
        %780 = vmatpush1.bf16.msra.mxu0 %v668
        %781 = vmatprep.subr.bf16.mxu0 %v665
        %782 = vmatpush1.bf16.msra.mxu0 %v664
        %783 = vmatprep.subr.bf16.mxu0 0
        %784 = vmatpush2.bf16.msra.mxu0 0
        %785 = vmatprep.subr.bf16.mxu0 0
        %786 = vmatpush2.bf16.msra.mxu0 0
        %787 = vmatprep.subr.bf16.mxu0 0
        %788 = vmatpush2.bf16.msra.mxu0 0
        %789 = vmatprep.subr.bf16.mxu0 0
        %790 = vmatpush2.bf16.msra.mxu0 0
        %791 = vmatprep.subr.bf16.mxu0 0
        %792 = vmatpush2.bf16.msra.mxu0 0
        %793 = vmatprep.subr.bf16.mxu0 0
        %794 = vmatpush2.bf16.msra.mxu0 0
        %795 = vmatprep.subr.bf16.mxu0 0
        %796 = vmatpush2.bf16.msra.mxu0 0
        %797 = vmatprep.subr.bf16.mxu0 0
        %798 = vmatpush2.bf16.msra.mxu0 0
        %799 = vmatprep.mubr.bf16.mxu0 0
        %800 = vmatmul.mubr.bf16.gmra.mxu0 %v565
        %v801 = vpop.f32.mrf.mxu0
        %v802 = vadd.f32 0.0, %v801
        %v803 = vpop.f32.mrf.mxu0
        %v804 = vadd.f32 0.0, %v803
        %v805 = vpop.f32.mrf.mxu0
        %v806 = vpop.f32.mrf.mxu0
        %807 = vdwg.mxu0
        %s808 = sld [smem:[#allocation2 + $0x1]]
        %s809 = sld [smem:[#allocation2 + $0x2]]
        %s810 = sld [smem:[#allocation2 + $0x3]]
        %v812 = vrot.slane %v761, 6
        %v815 = vrot.slane %v763, 4
        %v818 = vrot.slane %v802, 2
        %vm820 = vcmask 1041408
        %v821 = vsel %vm820, %v564, %v812
        %vm822 = vcmask 1043456
        %v823 = vsel %vm822, %v821, %v815
        %vm824 = vcmask 1045504
        %v825 = vsel %vm824, %v823, %v818
        %v826 = vpack.c.bf16 %v825, %v825
        %v827 = vld [vmem:[%s5] sm:$0x1]
        %v828 = vld [vmem:[%s6] sm:$0x3]
        %830 = vset.pattern.permute.xlu0 0
        %831 = vperm.xlu0 %830, %v828
        %v832 = vpop.permute.xlu0 %831
        %vm834 = vcmask 64512
        %v836 = vsel %vm834, %v827, 0
        %v839 = vsel %vm822, %v826, 0
        %841 = vmatprep.subr.bf16.mxu0 0
        %842 = vmatpush1.bf16.msra.mxu0 0
        %843 = vmatprep.subr.bf16.mxu0 0
        %844 = vmatpush1.bf16.msra.mxu0 0
        %845 = vmatprep.subr.bf16.mxu0 0
        %846 = vmatpush1.bf16.msra.mxu0 0
        %847 = vmatprep.subr.bf16.mxu0 0
        %848 = vmatpush1.bf16.msra.mxu0 0
        %849 = vmatprep.subr.bf16.mxu0 0
        %850 = vmatpush1.bf16.msra.mxu0 0
        %851 = vmatprep.subr.bf16.mxu0 0
        %852 = vmatpush1.bf16.msra.mxu0 0
        %853 = vmatprep.subr.bf16.mxu0 0
        %854 = vmatpush1.bf16.msra.mxu0 0
        %855 = vmatprep.subr.bf16.mxu0 0
        %856 = vmatpush1.bf16.msra.mxu0 %v839
        %857 = vmatprep.subr.bf16.mxu0 0
        %858 = vmatpush2.bf16.msra.mxu0 0
        %859 = vmatprep.subr.bf16.mxu0 0
        %860 = vmatpush2.bf16.msra.mxu0 0
        %861 = vmatprep.subr.bf16.mxu0 0
        %862 = vmatpush2.bf16.msra.mxu0 0
        %863 = vmatprep.subr.bf16.mxu0 0
        %864 = vmatpush2.bf16.msra.mxu0 0
        %865 = vmatprep.subr.bf16.mxu0 0
        %866 = vmatpush2.bf16.msra.mxu0 0
        %867 = vmatprep.subr.bf16.mxu0 0
        %868 = vmatpush2.bf16.msra.mxu0 0
        %869 = vmatprep.subr.bf16.mxu0 0
        %870 = vmatpush2.bf16.msra.mxu0 0
        %871 = vmatprep.subr.bf16.mxu0 0
        %872 = vmatpush2.bf16.msra.mxu0 0
        %873 = vmatprep.mubr.bf16.mxu0 0
        %874 = vmatmul.mubr.bf16.gmra.mxu0 %v836
        %v875 = vpop.f32.mrf.mxu0
        %v876 = vadd.f32 %v832, %v875
        %v877 = vpop.f32.mrf.mxu0
        %v878 = vpop.f32.mrf.mxu0
        %v879 = vpop.f32.mrf.mxu0
        %880 = vdwg.mxu0
        %v882 = vrot.slane %v804, 6
        %v884 = vsel %vm820, %v564, %v882
        %v885 = vpack.c.bf16 %v884, %v884
        %v886 = vld [vmem:[%s7] sm:$0x1]
        %vm887 = vcmask 31744
        %v889 = vsel %vm887, %v886, 0
        %v892 = vsel %vm820, %v885, 0
        %894 = vmatprep.subr.bf16.mxu0 0
        %895 = vmatpush1.bf16.msra.mxu0 0
        %896 = vmatprep.subr.bf16.mxu0 0
        %897 = vmatpush1.bf16.msra.mxu0 0
        %898 = vmatprep.subr.bf16.mxu0 0
        %899 = vmatpush1.bf16.msra.mxu0 0
        %900 = vmatprep.subr.bf16.mxu0 0
        %901 = vmatpush1.bf16.msra.mxu0 0
        %902 = vmatprep.subr.bf16.mxu0 0
        %903 = vmatpush1.bf16.msra.mxu0 0
        %904 = vmatprep.subr.bf16.mxu0 0
        %905 = vmatpush1.bf16.msra.mxu0 0
        %906 = vmatprep.subr.bf16.mxu0 0
        %907 = vmatpush1.bf16.msra.mxu0 0
        %908 = vmatprep.subr.bf16.mxu0 0
        %909 = vmatpush1.bf16.msra.mxu0 %v892
        %910 = vmatprep.subr.bf16.mxu0 0
        %911 = vmatpush2.bf16.msra.mxu0 0
        %912 = vmatprep.subr.bf16.mxu0 0
        %913 = vmatpush2.bf16.msra.mxu0 0
        %914 = vmatprep.subr.bf16.mxu0 0
        %915 = vmatpush2.bf16.msra.mxu0 0
        %916 = vmatprep.subr.bf16.mxu0 0
        %917 = vmatpush2.bf16.msra.mxu0 0
        %918 = vmatprep.subr.bf16.mxu0 0
        %919 = vmatpush2.bf16.msra.mxu0 0
        %920 = vmatprep.subr.bf16.mxu0 0
        %921 = vmatpush2.bf16.msra.mxu0 0
        %922 = vmatprep.subr.bf16.mxu0 0
        %923 = vmatpush2.bf16.msra.mxu0 0
        %924 = vmatprep.subr.bf16.mxu0 0
        %925 = vmatpush2.bf16.msra.mxu0 0
        %926 = vmatprep.mubr.bf16.mxu0 0
        %927 = vmatmul.mubr.bf16.gmra.mxu0 %v889
        %v928 = vpop.f32.mrf.mxu0
        %v929 = vadd.f32 0.0, %v928
        %v930 = vpop.f32.mrf.mxu0
        %v931 = vpop.f32.mrf.mxu0
        %v932 = vpop.f32.mrf.mxu0
        %933 = vdwg.mxu0
        %v934 = vstv %s808
        %v935 = vmul.f32 %v934, %v564
        %v936 = vstv %s809
        %v937 = vmul.f32 %v936, %v876
        %v938 = vadd.f32 %v935, %v937
        %v939 = vstv %s810
        %v940 = vmul.f32 %v939, %v929
        %v941 = vadd.f32 %v938, %v940
        %s942 = sld [smem:[#allocation2 + $0x18]]
        %v943 = vsel %vm820, %v941, %v564
        %v944 = vstv %s942
        %v945 = vmul.f32 %v944, %v943
        %v947 = vrot.slane %v945, 1
        %v949 = vrot.slane %v945, 2
        %v951 = vrot.slane %v945, 3
        %v953 = vrot.slane %v945, 5
        %v955 = vrot.slane %v945, 6
        %v957 = vrot.slane %v945, 7
        %v959 = vsel %vm515, %v945, %v947
        %v960 = vsel %vm820, %v959, %v949
        %vm961 = vcmask 1042432
        %v962 = vsel %vm961, %v960, %v951
        %v963 = vsel %vm822, %v962, %v953
        %vm964 = vcmask 1044480
        %v965 = vsel %vm964, %v963, %v955
        %v966 = vsel %vm824, %v965, %v957
        %vm967 = vcmask 1046528
        %v968 = vsel %vm967, %v966, %v945
        %v970 = vrot.slane %v968, 6
        %v972 = vsel %vm820, %v564, %v970
        %v973 = vpack.c.bf16 %v972, %v972
        %974 = vmatprep.subr.bf16.mxu0 %v691
        %975 = vmatpush1.bf16.msra.mxu0 %v690
        %976 = vmatprep.subr.bf16.mxu0 %v687
        %977 = vmatpush1.bf16.msra.mxu0 %v686
        %978 = vmatprep.subr.bf16.mxu0 %v683
        %979 = vmatpush1.bf16.msra.mxu0 %v682
        %980 = vmatprep.subr.bf16.mxu0 %v679
        %981 = vmatpush1.bf16.msra.mxu0 %v678
        %982 = vmatprep.subr.bf16.mxu0 %v675
        %983 = vmatpush1.bf16.msra.mxu0 %v674
        %984 = vmatprep.subr.bf16.mxu0 %v671
        %985 = vmatpush1.bf16.msra.mxu0 %v670
        %986 = vmatprep.subr.bf16.mxu0 %v667
        %987 = vmatpush1.bf16.msra.mxu0 %v666
        %988 = vmatprep.subr.bf16.mxu0 %v663
        %989 = vmatpush1.bf16.msra.mxu0 %v662
        %990 = vmatprep.subr.bf16.mxu0 0
        %991 = vmatpush2.bf16.msra.mxu0 0
        %992 = vmatprep.subr.bf16.mxu0 0
        %993 = vmatpush2.bf16.msra.mxu0 0
        %994 = vmatprep.subr.bf16.mxu0 0
        %995 = vmatpush2.bf16.msra.mxu0 0
        %996 = vmatprep.subr.bf16.mxu0 0
        %997 = vmatpush2.bf16.msra.mxu0 0
        %998 = vmatprep.subr.bf16.mxu0 0
        %999 = vmatpush2.bf16.msra.mxu0 0
        %1000 = vmatprep.subr.bf16.mxu0 0
        %1001 = vmatpush2.bf16.msra.mxu0 0
        %1002 = vmatprep.subr.bf16.mxu0 0
        %1003 = vmatpush2.bf16.msra.mxu0 0
        %1004 = vmatprep.subr.bf16.mxu0 0
        %1005 = vmatpush2.bf16.msra.mxu0 0
        %1006 = vmatprep.mubr.bf16.mxu0 0
        %1007 = vmatmul.mubr.bf16.gmra.mxu0 %v973
        %v1008 = vpop.f32.mrf.mxu0
        %v1009 = vadd.f32 0.0, %v1008
        %v1010 = vpop.f32.mrf.mxu0
        %v1011 = vadd.f32 0.0, %v1010
        %v1012 = vpop.f32.mrf.mxu0
        %v1013 = vpop.f32.mrf.mxu0
        %1014 = vdwg.mxu0
        %1015 = vmatprep.subr.bf16.mxu0 %v693
        %1016 = vmatpush1.bf16.msra.mxu0 %v692
        %1017 = vmatprep.subr.bf16.mxu0 %v689
        %1018 = vmatpush1.bf16.msra.mxu0 %v688
        %1019 = vmatprep.subr.bf16.mxu0 %v685
        %1020 = vmatpush1.bf16.msra.mxu0 %v684
        %1021 = vmatprep.subr.bf16.mxu0 %v681
        %1022 = vmatpush1.bf16.msra.mxu0 %v680
        %1023 = vmatprep.subr.bf16.mxu0 %v677
        %1024 = vmatpush1.bf16.msra.mxu0 %v676
        %1025 = vmatprep.subr.bf16.mxu0 %v673
        %1026 = vmatpush1.bf16.msra.mxu0 %v672
        %1027 = vmatprep.subr.bf16.mxu0 %v669
        %1028 = vmatpush1.bf16.msra.mxu0 %v668
        %1029 = vmatprep.subr.bf16.mxu0 %v665
        %1030 = vmatpush1.bf16.msra.mxu0 %v664
        %1031 = vmatprep.subr.bf16.mxu0 0
        %1032 = vmatpush2.bf16.msra.mxu0 0
        %1033 = vmatprep.subr.bf16.mxu0 0
        %1034 = vmatpush2.bf16.msra.mxu0 0
        %1035 = vmatprep.subr.bf16.mxu0 0
        %1036 = vmatpush2.bf16.msra.mxu0 0
        %1037 = vmatprep.subr.bf16.mxu0 0
        %1038 = vmatpush2.bf16.msra.mxu0 0
        %1039 = vmatprep.subr.bf16.mxu0 0
        %1040 = vmatpush2.bf16.msra.mxu0 0
        %1041 = vmatprep.subr.bf16.mxu0 0
        %1042 = vmatpush2.bf16.msra.mxu0 0
        %1043 = vmatprep.subr.bf16.mxu0 0
        %1044 = vmatpush2.bf16.msra.mxu0 0
        %1045 = vmatprep.subr.bf16.mxu0 0
        %1046 = vmatpush2.bf16.msra.mxu0 0
        %1047 = vmatprep.mubr.bf16.mxu0 0
        %1048 = vmatmul.mubr.bf16.gmra.mxu0 %v973
        %v1049 = vpop.f32.mrf.mxu0
        %v1050 = vadd.f32 0.0, %v1049
        %v1051 = vpop.f32.mrf.mxu0
        %v1052 = vadd.f32 0.0, %v1051
        %v1053 = vpop.f32.mrf.mxu0
        %v1054 = vpop.f32.mrf.mxu0
        %1055 = vdwg.mxu0
        %s1056 = sld [smem:[#allocation2 + $0x5]]
        %s1057 = sld [smem:[#allocation2 + $0x6]]
        %s1058 = sld [smem:[#allocation2 + $0x7]]
        %v1060 = vrot.slane %v1009, 6
        %v1063 = vrot.slane %v1011, 4
        %v1066 = vrot.slane %v1050, 2
        %v1068 = vsel %vm820, %v564, %v1060
        %v1069 = vsel %vm822, %v1068, %v1063
        %v1070 = vsel %vm824, %v1069, %v1066
        %v1071 = vpack.c.bf16 %v1070, %v1070
        %s1072 = scalar_lea.vmem %s5, 1
        %v1073 = vld [vmem:[%s1072] sm:$0x1]
        %s1074 = scalar_lea.vmem %s6, 2
        %v1075 = vld [vmem:[%s1074] sm:$0x3]
        %1077 = vset.pattern.permute.xlu0 0
        %1078 = vperm.xlu0 %1077, %v1075
        %v1079 = vpop.permute.xlu0 %1078
        %v1082 = vsel %vm834, %v1073, 0
        %v1085 = vsel %vm822, %v1071, 0
        %1087 = vmatprep.subr.bf16.mxu0 0
        %1088 = vmatpush1.bf16.msra.mxu0 0
        %1089 = vmatprep.subr.bf16.mxu0 0
        %1090 = vmatpush1.bf16.msra.mxu0 0
        %1091 = vmatprep.subr.bf16.mxu0 0
        %1092 = vmatpush1.bf16.msra.mxu0 0
        %1093 = vmatprep.subr.bf16.mxu0 0
        %1094 = vmatpush1.bf16.msra.mxu0 0
        %1095 = vmatprep.subr.bf16.mxu0 0
        %1096 = vmatpush1.bf16.msra.mxu0 0
        %1097 = vmatprep.subr.bf16.mxu0 0
        %1098 = vmatpush1.bf16.msra.mxu0 0
        %1099 = vmatprep.subr.bf16.mxu0 0
        %1100 = vmatpush1.bf16.msra.mxu0 0
        %1101 = vmatprep.subr.bf16.mxu0 0
        %1102 = vmatpush1.bf16.msra.mxu0 %v1085
        %1103 = vmatprep.subr.bf16.mxu0 0
        %1104 = vmatpush2.bf16.msra.mxu0 0
        %1105 = vmatprep.subr.bf16.mxu0 0
        %1106 = vmatpush2.bf16.msra.mxu0 0
        %1107 = vmatprep.subr.bf16.mxu0 0
        %1108 = vmatpush2.bf16.msra.mxu0 0
        %1109 = vmatprep.subr.bf16.mxu0 0
        %1110 = vmatpush2.bf16.msra.mxu0 0
        %1111 = vmatprep.subr.bf16.mxu0 0
        %1112 = vmatpush2.bf16.msra.mxu0 0
        %1113 = vmatprep.subr.bf16.mxu0 0
        %1114 = vmatpush2.bf16.msra.mxu0 0
        %1115 = vmatprep.subr.bf16.mxu0 0
        %1116 = vmatpush2.bf16.msra.mxu0 0
        %1117 = vmatprep.subr.bf16.mxu0 0
        %1118 = vmatpush2.bf16.msra.mxu0 0
        %1119 = vmatprep.mubr.bf16.mxu0 0
        %1120 = vmatmul.mubr.bf16.gmra.mxu0 %v1082
        %v1121 = vpop.f32.mrf.mxu0
        %v1122 = vadd.f32 %v1079, %v1121
        %v1123 = vpop.f32.mrf.mxu0
        %v1124 = vpop.f32.mrf.mxu0
        %v1125 = vpop.f32.mrf.mxu0
        %1126 = vdwg.mxu0
        %v1128 = vrot.slane %v1052, 6
        %v1130 = vsel %vm820, %v564, %v1128
        %v1131 = vpack.c.bf16 %v1130, %v1130
        %s1132 = scalar_lea.vmem %s7, 1
        %v1133 = vld [vmem:[%s1132] sm:$0x1]
        %v1135 = vsel %vm887, %v1133, 0
        %v1138 = vsel %vm820, %v1131, 0
        %1140 = vmatprep.subr.bf16.mxu0 0
        %1141 = vmatpush1.bf16.msra.mxu0 0
        %1142 = vmatprep.subr.bf16.mxu0 0
        %1143 = vmatpush1.bf16.msra.mxu0 0
        %1144 = vmatprep.subr.bf16.mxu0 0
        %1145 = vmatpush1.bf16.msra.mxu0 0
        %1146 = vmatprep.subr.bf16.mxu0 0
        %1147 = vmatpush1.bf16.msra.mxu0 0
        %1148 = vmatprep.subr.bf16.mxu0 0
        %1149 = vmatpush1.bf16.msra.mxu0 0
        %1150 = vmatprep.subr.bf16.mxu0 0
        %1151 = vmatpush1.bf16.msra.mxu0 0
        %1152 = vmatprep.subr.bf16.mxu0 0
        %1153 = vmatpush1.bf16.msra.mxu0 0
        %1154 = vmatprep.subr.bf16.mxu0 0
        %1155 = vmatpush1.bf16.msra.mxu0 %v1138
        %1156 = vmatprep.subr.bf16.mxu0 0
        %1157 = vmatpush2.bf16.msra.mxu0 0
        %1158 = vmatprep.subr.bf16.mxu0 0
        %1159 = vmatpush2.bf16.msra.mxu0 0
        %1160 = vmatprep.subr.bf16.mxu0 0
        %1161 = vmatpush2.bf16.msra.mxu0 0
        %1162 = vmatprep.subr.bf16.mxu0 0
        %1163 = vmatpush2.bf16.msra.mxu0 0
        %1164 = vmatprep.subr.bf16.mxu0 0
        %1165 = vmatpush2.bf16.msra.mxu0 0
        %1166 = vmatprep.subr.bf16.mxu0 0
        %1167 = vmatpush2.bf16.msra.mxu0 0
        %1168 = vmatprep.subr.bf16.mxu0 0
        %1169 = vmatpush2.bf16.msra.mxu0 0
        %1170 = vmatprep.subr.bf16.mxu0 0
        %1171 = vmatpush2.bf16.msra.mxu0 0
        %1172 = vmatprep.mubr.bf16.mxu0 0
        %1173 = vmatmul.mubr.bf16.gmra.mxu0 %v1135
        %v1174 = vpop.f32.mrf.mxu0
        %v1175 = vadd.f32 0.0, %v1174
        %v1176 = vpop.f32.mrf.mxu0
        %v1177 = vpop.f32.mrf.mxu0
        %v1178 = vpop.f32.mrf.mxu0
        %1179 = vdwg.mxu0
        %v1180 = vstv %s1056
        %v1181 = vmul.f32 %v1180, %v564
        %v1182 = vstv %s1057
        %v1183 = vmul.f32 %v1182, %v1122
        %v1184 = vadd.f32 %v1181, %v1183
        %v1185 = vstv %s1058
        %v1186 = vmul.f32 %v1185, %v1175
        %v1187 = vadd.f32 %v1184, %v1186
        %s1188 = sld [smem:[#allocation2 + $0x19]]
        %v1189 = vsel %vm820, %v1187, %v564
        %v1190 = vstv %s1188
        %v1191 = vmul.f32 %v1190, %v1189
        %s1192 = sld [smem:[#allocation2 + $0x9]]
        %s1193 = sld [smem:[#allocation2 + $0xa]]
        %s1194 = sld [smem:[#allocation2 + $0xb]]
        %v1195 = vrot.slane %v1011, 6
        %v1197 = vrot.slane %v1050, 4
        %v1199 = vsel %vm820, %v968, %v1009
        %v1200 = vsel %vm822, %v1199, %v1195
        %v1201 = vsel %vm824, %v1200, %v1197
        %v1202 = vpack.c.bf16 %v1201, %v1201
        %s1203 = scalar_lea.vmem %s5, 2
        %v1204 = vld [vmem:[%s1203] sm:$0x1]
        %s1205 = scalar_lea.vmem %s6, 4
        %v1206 = vld [vmem:[%s1205] sm:$0x3]
        %1208 = vset.pattern.permute.xlu0 0
        %1209 = vperm.xlu0 %1208, %v1206
        %v1210 = vpop.permute.xlu0 %1209
        %v1213 = vsel %vm834, %v1204, 0
        %v1216 = vsel %vm822, %v1202, 0
        %1218 = vmatprep.subr.bf16.mxu0 0
        %1219 = vmatpush1.bf16.msra.mxu0 0
        %1220 = vmatprep.subr.bf16.mxu0 0
        %1221 = vmatpush1.bf16.msra.mxu0 0
        %1222 = vmatprep.subr.bf16.mxu0 0
        %1223 = vmatpush1.bf16.msra.mxu0 0
        %1224 = vmatprep.subr.bf16.mxu0 0
        %1225 = vmatpush1.bf16.msra.mxu0 0
        %1226 = vmatprep.subr.bf16.mxu0 0
        %1227 = vmatpush1.bf16.msra.mxu0 0
        %1228 = vmatprep.subr.bf16.mxu0 0
        %1229 = vmatpush1.bf16.msra.mxu0 0
        %1230 = vmatprep.subr.bf16.mxu0 0
        %1231 = vmatpush1.bf16.msra.mxu0 0
        %1232 = vmatprep.subr.bf16.mxu0 0
        %1233 = vmatpush1.bf16.msra.mxu0 %v1216
        %1234 = vmatprep.subr.bf16.mxu0 0
        %1235 = vmatpush2.bf16.msra.mxu0 0
        %1236 = vmatprep.subr.bf16.mxu0 0
        %1237 = vmatpush2.bf16.msra.mxu0 0
        %1238 = vmatprep.subr.bf16.mxu0 0
        %1239 = vmatpush2.bf16.msra.mxu0 0
        %1240 = vmatprep.subr.bf16.mxu0 0
        %1241 = vmatpush2.bf16.msra.mxu0 0
        %1242 = vmatprep.subr.bf16.mxu0 0
        %1243 = vmatpush2.bf16.msra.mxu0 0
        %1244 = vmatprep.subr.bf16.mxu0 0
        %1245 = vmatpush2.bf16.msra.mxu0 0
        %1246 = vmatprep.subr.bf16.mxu0 0
        %1247 = vmatpush2.bf16.msra.mxu0 0
        %1248 = vmatprep.subr.bf16.mxu0 0
        %1249 = vmatpush2.bf16.msra.mxu0 0
        %1250 = vmatprep.mubr.bf16.mxu0 0
        %1251 = vmatmul.mubr.bf16.gmra.mxu0 %v1213
        %v1252 = vpop.f32.mrf.mxu0
        %v1253 = vadd.f32 %v1210, %v1252
        %v1254 = vpop.f32.mrf.mxu0
        %v1255 = vpop.f32.mrf.mxu0
        %v1256 = vpop.f32.mrf.mxu0
        %1257 = vdwg.mxu0
        %v1258 = vsel %vm820, %v968, %v1052
        %v1259 = vpack.c.bf16 %v1258, %v1258
        %s1260 = scalar_lea.vmem %s7, 2
        %v1261 = vld [vmem:[%s1260] sm:$0x1]
        %v1263 = vsel %vm887, %v1261, 0
        %v1266 = vsel %vm820, %v1259, 0
        %1268 = vmatprep.subr.bf16.mxu0 0
        %1269 = vmatpush1.bf16.msra.mxu0 0
        %1270 = vmatprep.subr.bf16.mxu0 0
        %1271 = vmatpush1.bf16.msra.mxu0 0
        %1272 = vmatprep.subr.bf16.mxu0 0
        %1273 = vmatpush1.bf16.msra.mxu0 0
        %1274 = vmatprep.subr.bf16.mxu0 0
        %1275 = vmatpush1.bf16.msra.mxu0 0
        %1276 = vmatprep.subr.bf16.mxu0 0
        %1277 = vmatpush1.bf16.msra.mxu0 0
        %1278 = vmatprep.subr.bf16.mxu0 0
        %1279 = vmatpush1.bf16.msra.mxu0 0
        %1280 = vmatprep.subr.bf16.mxu0 0
        %1281 = vmatpush1.bf16.msra.mxu0 0
        %1282 = vmatprep.subr.bf16.mxu0 0
        %1283 = vmatpush1.bf16.msra.mxu0 %v1266
        %1284 = vmatprep.subr.bf16.mxu0 0
        %1285 = vmatpush2.bf16.msra.mxu0 0
        %1286 = vmatprep.subr.bf16.mxu0 0
        %1287 = vmatpush2.bf16.msra.mxu0 0
        %1288 = vmatprep.subr.bf16.mxu0 0
        %1289 = vmatpush2.bf16.msra.mxu0 0
        %1290 = vmatprep.subr.bf16.mxu0 0
        %1291 = vmatpush2.bf16.msra.mxu0 0
        %1292 = vmatprep.subr.bf16.mxu0 0
        %1293 = vmatpush2.bf16.msra.mxu0 0
        %1294 = vmatprep.subr.bf16.mxu0 0
        %1295 = vmatpush2.bf16.msra.mxu0 0
        %1296 = vmatprep.subr.bf16.mxu0 0
        %1297 = vmatpush2.bf16.msra.mxu0 0
        %1298 = vmatprep.subr.bf16.mxu0 0
        %1299 = vmatpush2.bf16.msra.mxu0 0
        %1300 = vmatprep.mubr.bf16.mxu0 0
        %1301 = vmatmul.mubr.bf16.gmra.mxu0 %v1263
        %v1302 = vpop.f32.mrf.mxu0
        %v1303 = vadd.f32 0.0, %v1302
        %v1304 = vpop.f32.mrf.mxu0
        %v1305 = vpop.f32.mrf.mxu0
        %v1306 = vpop.f32.mrf.mxu0
        %1307 = vdwg.mxu0
        %v1308 = vstv %s1192
        %v1309 = vmul.f32 %v1308, %v968
        %v1310 = vstv %s1193
        %v1311 = vmul.f32 %v1310, %v1253
        %v1312 = vadd.f32 %v1309, %v1311
        %v1313 = vstv %s1194
        %v1314 = vmul.f32 %v1313, %v1303
        %v1315 = vadd.f32 %v1312, %v1314
        %s1316 = sld [smem:[#allocation2 + $0x1a]]
        %v1317 = vsel %vm820, %v1315, %v968
        %v1318 = vstv %s1316
        %v1319 = vmul.f32 %v1318, %v1317
        %v1320 = vadd.f32 %v1191, %v1319
        %v1322 = vrot.slane %v1320, 1
        %v1324 = vrot.slane %v1320, 2
        %v1326 = vrot.slane %v1320, 3
        %v1328 = vrot.slane %v1320, 5
        %v1330 = vrot.slane %v1320, 6
        %v1332 = vrot.slane %v1320, 7
        %v1334 = vsel %vm515, %v1320, %v1322
        %v1335 = vsel %vm820, %v1334, %v1324
        %v1336 = vsel %vm961, %v1335, %v1326
        %v1337 = vsel %vm822, %v1336, %v1328
        %v1338 = vsel %vm964, %v1337, %v1330
        %v1339 = vsel %vm824, %v1338, %v1332
        %v1340 = vsel %vm967, %v1339, %v1320
        %v1341 = vld [vmem:[%s8] sm:$0xf]
        %v1342 = vld [vmem:[%s8 + $0x4] sm:$0xf]
        %v1343 = vld [vmem:[%s8 + $0x8] sm:$0xf]
        %v1344 = vld [vmem:[%s8 + $0xc] sm:$0xf]
        %v1345 = vld [vmem:[%s8 + $0x10] sm:$0xf]
        %v1346 = vld [vmem:[%s8 + $0x14] sm:$0xf]
        %v1347 = vld [vmem:[%s8 + $0x18] sm:$0xf]
        %v1348 = vld [vmem:[%s8 + $0x1c] sm:$0xf]
        %v1349 = vpack.c.bf16 %v1340, %v1340
        %v1350 = vld [vmem:[%s9] sm:$0xff]
        %v1351 = vld [vmem:[%s9 + $0x8] sm:$0xff]
        %v1352 = vld [vmem:[%s9 + $0x10] sm:$0xff]
        %v1353 = vld [vmem:[%s9 + $0x18] sm:$0xff]
        %v1354 = vld [vmem:[%s9 + $0x20] sm:$0xff]
        %v1355 = vld [vmem:[%s9 + $0x28] sm:$0xff]
        %v1356 = vld [vmem:[%s9 + $0x30] sm:$0xff]
        %v1357 = vld [vmem:[%s9 + $0x38] sm:$0xff]
        %1359 = vset.pattern.permute.xlu0 0
        %1360 = vperm.xlu0 %1359, %v1350
        %v1361 = vpop.permute.xlu0 %1360
        %1364 = vset.pattern.permute.xlu0 0
        %1365 = vperm.xlu0 %1364, %v1351
        %v1366 = vpop.permute.xlu0 %1365
        %1369 = vset.pattern.permute.xlu0 0
        %1370 = vperm.xlu0 %1369, %v1352
        %v1371 = vpop.permute.xlu0 %1370
        %1374 = vset.pattern.permute.xlu0 0
        %1375 = vperm.xlu0 %1374, %v1353
        %v1376 = vpop.permute.xlu0 %1375
        %1379 = vset.pattern.permute.xlu0 0
        %1380 = vperm.xlu0 %1379, %v1354
        %v1381 = vpop.permute.xlu0 %1380
        %1384 = vset.pattern.permute.xlu0 0
        %1385 = vperm.xlu0 %1384, %v1355
        %v1386 = vpop.permute.xlu0 %1385
        %1389 = vset.pattern.permute.xlu0 0
        %1390 = vperm.xlu0 %1389, %v1356
        %v1391 = vpop.permute.xlu0 %1390
        %1394 = vset.pattern.permute.xlu0 0
        %1395 = vperm.xlu0 %1394, %v1357
        %v1396 = vpop.permute.xlu0 %1395
        %v1406 = vunpack.c.l.b16 %v1341
        %v1407 = vunpack.c.l.b16 %v1342
        %v1408 = vunpack.c.l.b16 %v1343
        %v1409 = vunpack.c.l.b16 %v1344
        %v1410 = vunpack.c.l.b16 %v1345
        %v1411 = vunpack.c.l.b16 %v1346
        %v1412 = vunpack.c.l.b16 %v1347
        %v1413 = vunpack.c.l.b16 %v1348
        %v1414 = vpack.c.b16 %v1407, %v1406
        %v1415 = vpack.c.b16 %v1409, %v1408
        %v1416 = vpack.c.b16 %v1411, %v1410
        %v1417 = vpack.c.b16 %v1413, %v1412
        %v1419 = vsel %vm834, %v1414, 0
        %v1422 = vsel %vm834, %v1415, 0
        %v1425 = vsel %vm834, %v1416, 0
        %v1428 = vsel %vm834, %v1417, 0
        %v1431 = vsel %vm822, %v1349, 0
        %1433 = vmatprep.subr.bf16.mxu0 0
        %1434 = vmatpush1.bf16.msra.mxu0 0
        %1435 = vmatprep.subr.bf16.mxu0 0
        %1436 = vmatpush1.bf16.msra.mxu0 0
        %1437 = vmatprep.subr.bf16.mxu0 0
        %1438 = vmatpush1.bf16.msra.mxu0 0
        %1439 = vmatprep.subr.bf16.mxu0 0
        %1440 = vmatpush1.bf16.msra.mxu0 0
        %1441 = vmatprep.subr.bf16.mxu0 0
        %1442 = vmatpush1.bf16.msra.mxu0 0
        %1443 = vmatprep.subr.bf16.mxu0 0
        %1444 = vmatpush1.bf16.msra.mxu0 0
        %1445 = vmatprep.subr.bf16.mxu0 0
        %1446 = vmatpush1.bf16.msra.mxu0 0
        %1447 = vmatprep.subr.bf16.mxu0 0
        %1448 = vmatpush1.bf16.msra.mxu0 %v1431
        %1449 = vmatprep.subr.bf16.mxu0 0
        %1450 = vmatpush2.bf16.msra.mxu0 0
        %1451 = vmatprep.subr.bf16.mxu0 0
        %1452 = vmatpush2.bf16.msra.mxu0 0
        %1453 = vmatprep.subr.bf16.mxu0 0
        %1454 = vmatpush2.bf16.msra.mxu0 0
        %1455 = vmatprep.subr.bf16.mxu0 0
        %1456 = vmatpush2.bf16.msra.mxu0 0
        %1457 = vmatprep.subr.bf16.mxu0 0
        %1458 = vmatpush2.bf16.msra.mxu0 0
        %1459 = vmatprep.subr.bf16.mxu0 0
        %1460 = vmatpush2.bf16.msra.mxu0 0
        %1461 = vmatprep.subr.bf16.mxu0 0
        %1462 = vmatpush2.bf16.msra.mxu0 0
        %1463 = vmatprep.subr.bf16.mxu0 0
        %1464 = vmatpush2.bf16.msra.mxu0 0
        %1465 = vmatprep.mubr.bf16.mxu0 0
        %1466 = vmatmul.mubr.bf16.gmra.mxu0 %v1419
        %v1467 = vpop.f32.mrf.mxu0
        %v1468 = vadd.f32 %v1361, %v1467
        %v1469 = vpop.f32.mrf.mxu0
        %v1470 = vpop.f32.mrf.mxu0
        %v1471 = vadd.f32 %v1366, %v1470
        %v1472 = vpop.f32.mrf.mxu0
        %1473 = vmatprep.mubr.bf16.mxu0 0
        %1474 = vmatmul.mubr.bf16.gmra.mxu0 %v1422
        %v1475 = vpop.f32.mrf.mxu0
        %v1476 = vadd.f32 %v1371, %v1475
        %v1477 = vpop.f32.mrf.mxu0
        %v1478 = vpop.f32.mrf.mxu0
        %v1479 = vadd.f32 %v1376, %v1478
        %v1480 = vpop.f32.mrf.mxu0
        %1481 = vmatprep.mubr.bf16.mxu0 0
        %1482 = vmatmul.mubr.bf16.gmra.mxu0 %v1425
        %v1483 = vpop.f32.mrf.mxu0
        %v1484 = vadd.f32 %v1381, %v1483
        %v1485 = vpop.f32.mrf.mxu0
        %v1486 = vpop.f32.mrf.mxu0
        %v1487 = vadd.f32 %v1386, %v1486
        %v1488 = vpop.f32.mrf.mxu0
        %1489 = vmatprep.mubr.bf16.mxu0 0
        %1490 = vmatmul.mubr.bf16.gmra.mxu0 %v1428
        %v1491 = vpop.f32.mrf.mxu0
        %v1492 = vadd.f32 %v1391, %v1491
        %v1493 = vpop.f32.mrf.mxu0
        %v1494 = vpop.f32.mrf.mxu0
        %v1495 = vadd.f32 %v1396, %v1494
        %v1496 = vpop.f32.mrf.mxu0
        %1497 = vdwg.mxu0
        %s1498 = sld [smem:[#allocation2 + $0x1f]]
        %v1499 = vstv %s1498
        %v1500 = vmul.f32 %v1499, %v561
        %s1501 = sld [smem:[#allocation2 + $0x20]]
        %v1502 = vstv %s1501
        %v1503 = vmul.f32 %v1502, %v1340
        %v1504 = vadd.f32 %v1500, %v1503
        %v1505 = vpack.c.bf16 %v1504, %v1504
        %1506 = vmatprep.subr.bf16.mxu0 %v691
        %1507 = vmatpush1.bf16.msra.mxu0 %v690
        %1508 = vmatprep.subr.bf16.mxu0 %v687
        %1509 = vmatpush1.bf16.msra.mxu0 %v686
        %1510 = vmatprep.subr.bf16.mxu0 %v683
        %1511 = vmatpush1.bf16.msra.mxu0 %v682
        %1512 = vmatprep.subr.bf16.mxu0 %v679
        %1513 = vmatpush1.bf16.msra.mxu0 %v678
        %1514 = vmatprep.subr.bf16.mxu0 %v675
        %1515 = vmatpush1.bf16.msra.mxu0 %v674
        %1516 = vmatprep.subr.bf16.mxu0 %v671
        %1517 = vmatpush1.bf16.msra.mxu0 %v670
        %1518 = vmatprep.subr.bf16.mxu0 %v667
        %1519 = vmatpush1.bf16.msra.mxu0 %v666
        %1520 = vmatprep.subr.bf16.mxu0 %v663
        %1521 = vmatpush1.bf16.msra.mxu0 %v662
        %1522 = vmatprep.subr.bf16.mxu0 0
        %1523 = vmatpush2.bf16.msra.mxu0 0
        %1524 = vmatprep.subr.bf16.mxu0 0
        %1525 = vmatpush2.bf16.msra.mxu0 0
        %1526 = vmatprep.subr.bf16.mxu0 0
        %1527 = vmatpush2.bf16.msra.mxu0 0
        %1528 = vmatprep.subr.bf16.mxu0 0
        %1529 = vmatpush2.bf16.msra.mxu0 0
        %1530 = vmatprep.subr.bf16.mxu0 0
        %1531 = vmatpush2.bf16.msra.mxu0 0
        %1532 = vmatprep.subr.bf16.mxu0 0
        %1533 = vmatpush2.bf16.msra.mxu0 0
        %1534 = vmatprep.subr.bf16.mxu0 0
        %1535 = vmatpush2.bf16.msra.mxu0 0
        %1536 = vmatprep.subr.bf16.mxu0 0
        %1537 = vmatpush2.bf16.msra.mxu0 0
        %1538 = vmatprep.mubr.bf16.mxu0 0
        %1539 = vmatmul.mubr.bf16.gmra.mxu0 %v1505
        %v1540 = vpop.f32.mrf.mxu0
        %v1541 = vadd.f32 0.0, %v1540
        %v1542 = vpop.f32.mrf.mxu0
        %v1543 = vadd.f32 0.0, %v1542
        %v1544 = vpop.f32.mrf.mxu0
        %v1545 = vpop.f32.mrf.mxu0
        %1546 = vdwg.mxu0
        %1547 = vmatprep.subr.bf16.mxu0 %v693
        %1548 = vmatpush1.bf16.msra.mxu0 %v692
        %1549 = vmatprep.subr.bf16.mxu0 %v689
        %1550 = vmatpush1.bf16.msra.mxu0 %v688
        %1551 = vmatprep.subr.bf16.mxu0 %v685
        %1552 = vmatpush1.bf16.msra.mxu0 %v684
        %1553 = vmatprep.subr.bf16.mxu0 %v681
        %1554 = vmatpush1.bf16.msra.mxu0 %v680
        %1555 = vmatprep.subr.bf16.mxu0 %v677
        %1556 = vmatpush1.bf16.msra.mxu0 %v676
        %1557 = vmatprep.subr.bf16.mxu0 %v673
        %1558 = vmatpush1.bf16.msra.mxu0 %v672
        %1559 = vmatprep.subr.bf16.mxu0 %v669
        %1560 = vmatpush1.bf16.msra.mxu0 %v668
        %1561 = vmatprep.subr.bf16.mxu0 %v665
        %1562 = vmatpush1.bf16.msra.mxu0 %v664
        %1563 = vmatprep.subr.bf16.mxu0 0
        %1564 = vmatpush2.bf16.msra.mxu0 0
        %1565 = vmatprep.subr.bf16.mxu0 0
        %1566 = vmatpush2.bf16.msra.mxu0 0
        %1567 = vmatprep.subr.bf16.mxu0 0
        %1568 = vmatpush2.bf16.msra.mxu0 0
        %1569 = vmatprep.subr.bf16.mxu0 0
        %1570 = vmatpush2.bf16.msra.mxu0 0
        %1571 = vmatprep.subr.bf16.mxu0 0
        %1572 = vmatpush2.bf16.msra.mxu0 0
        %1573 = vmatprep.subr.bf16.mxu0 0
        %1574 = vmatpush2.bf16.msra.mxu0 0
        %1575 = vmatprep.subr.bf16.mxu0 0
        %1576 = vmatpush2.bf16.msra.mxu0 0
        %1577 = vmatprep.subr.bf16.mxu0 0
        %1578 = vmatpush2.bf16.msra.mxu0 0
        %1579 = vmatprep.mubr.bf16.mxu0 0
        %1580 = vmatmul.mubr.bf16.gmra.mxu0 %v1505
        %v1581 = vpop.f32.mrf.mxu0
        %v1582 = vadd.f32 0.0, %v1581
        %v1583 = vpop.f32.mrf.mxu0
        %v1584 = vadd.f32 0.0, %v1583
        %v1585 = vpop.f32.mrf.mxu0
        %v1586 = vpop.f32.mrf.mxu0
        %1587 = vdwg.mxu0
        %s1588 = sld [smem:[#allocation2 + $0xd]]
        %s1589 = sld [smem:[#allocation2 + $0xe]]
        %s1590 = sld [smem:[#allocation2 + $0xf]]
        %v1592 = vrot.slane %v1541, 6
        %v1595 = vrot.slane %v1543, 4
        %v1598 = vrot.slane %v1582, 2
        %v1600 = vsel %vm820, %v1504, %v1592
        %v1601 = vsel %vm822, %v1600, %v1595
        %v1602 = vsel %vm824, %v1601, %v1598
        %v1603 = vpack.c.bf16 %v1602, %v1602
        %s1604 = scalar_lea.vmem %s5, 3
        %v1605 = vld [vmem:[%s1604] sm:$0x1]
        %s1606 = scalar_lea.vmem %s6, 6
        %v1607 = vld [vmem:[%s1606] sm:$0x3]
        %1609 = vset.pattern.permute.xlu0 0
        %1610 = vperm.xlu0 %1609, %v1607
        %v1611 = vpop.permute.xlu0 %1610
        %v1614 = vsel %vm834, %v1605, 0
        %v1617 = vsel %vm822, %v1603, 0
        %1619 = vmatprep.subr.bf16.mxu0 0
        %1620 = vmatpush1.bf16.msra.mxu0 0
        %1621 = vmatprep.subr.bf16.mxu0 0
        %1622 = vmatpush1.bf16.msra.mxu0 0
        %1623 = vmatprep.subr.bf16.mxu0 0
        %1624 = vmatpush1.bf16.msra.mxu0 0
        %1625 = vmatprep.subr.bf16.mxu0 0
        %1626 = vmatpush1.bf16.msra.mxu0 0
        %1627 = vmatprep.subr.bf16.mxu0 0
        %1628 = vmatpush1.bf16.msra.mxu0 0
        %1629 = vmatprep.subr.bf16.mxu0 0
        %1630 = vmatpush1.bf16.msra.mxu0 0
        %1631 = vmatprep.subr.bf16.mxu0 0
        %1632 = vmatpush1.bf16.msra.mxu0 0
        %1633 = vmatprep.subr.bf16.mxu0 0
        %1634 = vmatpush1.bf16.msra.mxu0 %v1617
        %1635 = vmatprep.subr.bf16.mxu0 0
        %1636 = vmatpush2.bf16.msra.mxu0 0
        %1637 = vmatprep.subr.bf16.mxu0 0
        %1638 = vmatpush2.bf16.msra.mxu0 0
        %1639 = vmatprep.subr.bf16.mxu0 0
        %1640 = vmatpush2.bf16.msra.mxu0 0
        %1641 = vmatprep.subr.bf16.mxu0 0
        %1642 = vmatpush2.bf16.msra.mxu0 0
        %1643 = vmatprep.subr.bf16.mxu0 0
        %1644 = vmatpush2.bf16.msra.mxu0 0
        %1645 = vmatprep.subr.bf16.mxu0 0
        %1646 = vmatpush2.bf16.msra.mxu0 0
        %1647 = vmatprep.subr.bf16.mxu0 0
        %1648 = vmatpush2.bf16.msra.mxu0 0
        %1649 = vmatprep.subr.bf16.mxu0 0
        %1650 = vmatpush2.bf16.msra.mxu0 0
        %1651 = vmatprep.mubr.bf16.mxu0 0
        %1652 = vmatmul.mubr.bf16.gmra.mxu0 %v1614
        %v1653 = vpop.f32.mrf.mxu0
        %v1654 = vadd.f32 %v1611, %v1653
        %v1655 = vpop.f32.mrf.mxu0
        %v1656 = vpop.f32.mrf.mxu0
        %v1657 = vpop.f32.mrf.mxu0
        %1658 = vdwg.mxu0
        %v1660 = vrot.slane %v1584, 6
        %v1662 = vsel %vm820, %v1504, %v1660
        %v1663 = vpack.c.bf16 %v1662, %v1662
        %s1664 = scalar_lea.vmem %s7, 3
        %v1665 = vld [vmem:[%s1664] sm:$0x1]
        %v1667 = vsel %vm887, %v1665, 0
        %v1670 = vsel %vm820, %v1663, 0
        %1672 = vmatprep.subr.bf16.mxu0 0
        %1673 = vmatpush1.bf16.msra.mxu0 0
        %1674 = vmatprep.subr.bf16.mxu0 0
        %1675 = vmatpush1.bf16.msra.mxu0 0
        %1676 = vmatprep.subr.bf16.mxu0 0
        %1677 = vmatpush1.bf16.msra.mxu0 0
        %1678 = vmatprep.subr.bf16.mxu0 0
        %1679 = vmatpush1.bf16.msra.mxu0 0
        %1680 = vmatprep.subr.bf16.mxu0 0
        %1681 = vmatpush1.bf16.msra.mxu0 0
        %1682 = vmatprep.subr.bf16.mxu0 0
        %1683 = vmatpush1.bf16.msra.mxu0 0
        %1684 = vmatprep.subr.bf16.mxu0 0
        %1685 = vmatpush1.bf16.msra.mxu0 0
        %1686 = vmatprep.subr.bf16.mxu0 0
        %1687 = vmatpush1.bf16.msra.mxu0 %v1670
        %1688 = vmatprep.subr.bf16.mxu0 0
        %1689 = vmatpush2.bf16.msra.mxu0 0
        %1690 = vmatprep.subr.bf16.mxu0 0
        %1691 = vmatpush2.bf16.msra.mxu0 0
        %1692 = vmatprep.subr.bf16.mxu0 0
        %1693 = vmatpush2.bf16.msra.mxu0 0
        %1694 = vmatprep.subr.bf16.mxu0 0
        %1695 = vmatpush2.bf16.msra.mxu0 0
        %1696 = vmatprep.subr.bf16.mxu0 0
        %1697 = vmatpush2.bf16.msra.mxu0 0
        %1698 = vmatprep.subr.bf16.mxu0 0
        %1699 = vmatpush2.bf16.msra.mxu0 0
        %1700 = vmatprep.subr.bf16.mxu0 0
        %1701 = vmatpush2.bf16.msra.mxu0 0
        %1702 = vmatprep.subr.bf16.mxu0 0
        %1703 = vmatpush2.bf16.msra.mxu0 0
        %1704 = vmatprep.mubr.bf16.mxu0 0
        %1705 = vmatmul.mubr.bf16.gmra.mxu0 %v1667
        %v1706 = vpop.f32.mrf.mxu0
        %v1707 = vadd.f32 0.0, %v1706
        %v1708 = vpop.f32.mrf.mxu0
        %v1709 = vpop.f32.mrf.mxu0
        %v1710 = vpop.f32.mrf.mxu0
        %1711 = vdwg.mxu0
        %v1712 = vstv %s1588
        %v1713 = vmul.f32 %v1712, %v1504
        %v1714 = vstv %s1589
        %v1715 = vmul.f32 %v1714, %v1654
        %v1716 = vadd.f32 %v1713, %v1715
        %v1717 = vstv %s1590
        %v1718 = vmul.f32 %v1717, %v1707
        %v1719 = vadd.f32 %v1716, %v1718
        %s1720 = sld [smem:[#allocation2 + $0x1b]]
        %v1721 = vsel %vm820, %v1719, %v1504
        %v1722 = vstv %s1720
        %v1723 = vmul.f32 %v1722, %v1721
        %v1725 = vrot.slane %v1723, 1
        %v1727 = vrot.slane %v1723, 2
        %v1729 = vrot.slane %v1723, 3
        %v1731 = vrot.slane %v1723, 5
        %v1733 = vrot.slane %v1723, 6
        %v1735 = vrot.slane %v1723, 7
        %v1737 = vsel %vm515, %v1723, %v1725
        %v1738 = vsel %vm820, %v1737, %v1727
        %v1739 = vsel %vm961, %v1738, %v1729
        %v1740 = vsel %vm822, %v1739, %v1731
        %v1741 = vsel %vm964, %v1740, %v1733
        %v1742 = vsel %vm824, %v1741, %v1735
        %v1743 = vsel %vm967, %v1742, %v1723
        %v1745 = vrot.slane %v1743, 6
        %v1747 = vsel %vm820, %v1504, %v1745
        %v1748 = vpack.c.bf16 %v1747, %v1747
        %1749 = vmatprep.subr.bf16.mxu0 %v691
        %1750 = vmatpush1.bf16.msra.mxu0 %v690
        %1751 = vmatprep.subr.bf16.mxu0 %v687
        %1752 = vmatpush1.bf16.msra.mxu0 %v686
        %1753 = vmatprep.subr.bf16.mxu0 %v683
        %1754 = vmatpush1.bf16.msra.mxu0 %v682
        %1755 = vmatprep.subr.bf16.mxu0 %v679
        %1756 = vmatpush1.bf16.msra.mxu0 %v678
        %1757 = vmatprep.subr.bf16.mxu0 %v675
        %1758 = vmatpush1.bf16.msra.mxu0 %v674
        %1759 = vmatprep.subr.bf16.mxu0 %v671
        %1760 = vmatpush1.bf16.msra.mxu0 %v670
        %1761 = vmatprep.subr.bf16.mxu0 %v667
        %1762 = vmatpush1.bf16.msra.mxu0 %v666
        %1763 = vmatprep.subr.bf16.mxu0 %v663
        %1764 = vmatpush1.bf16.msra.mxu0 %v662
        %1765 = vmatprep.subr.bf16.mxu0 0
        %1766 = vmatpush2.bf16.msra.mxu0 0
        %1767 = vmatprep.subr.bf16.mxu0 0
        %1768 = vmatpush2.bf16.msra.mxu0 0
        %1769 = vmatprep.subr.bf16.mxu0 0
        %1770 = vmatpush2.bf16.msra.mxu0 0
        %1771 = vmatprep.subr.bf16.mxu0 0
        %1772 = vmatpush2.bf16.msra.mxu0 0
        %1773 = vmatprep.subr.bf16.mxu0 0
        %1774 = vmatpush2.bf16.msra.mxu0 0
        %1775 = vmatprep.subr.bf16.mxu0 0
        %1776 = vmatpush2.bf16.msra.mxu0 0
        %1777 = vmatprep.subr.bf16.mxu0 0
        %1778 = vmatpush2.bf16.msra.mxu0 0
        %1779 = vmatprep.subr.bf16.mxu0 0
        %1780 = vmatpush2.bf16.msra.mxu0 0
        %1781 = vmatprep.mubr.bf16.mxu0 0
        %1782 = vmatmul.mubr.bf16.gmra.mxu0 %v1748
        %v1783 = vpop.f32.mrf.mxu0
        %v1784 = vadd.f32 0.0, %v1783
        %v1785 = vpop.f32.mrf.mxu0
        %v1786 = vadd.f32 0.0, %v1785
        %v1787 = vpop.f32.mrf.mxu0
        %v1788 = vpop.f32.mrf.mxu0
        %1789 = vdwg.mxu0
        %1790 = vmatprep.subr.bf16.mxu0 %v693
        %1791 = vmatpush1.bf16.msra.mxu0 %v692
        %1792 = vmatprep.subr.bf16.mxu0 %v689
        %1793 = vmatpush1.bf16.msra.mxu0 %v688
        %1794 = vmatprep.subr.bf16.mxu0 %v685
        %1795 = vmatpush1.bf16.msra.mxu0 %v684
        %1796 = vmatprep.subr.bf16.mxu0 %v681
        %1797 = vmatpush1.bf16.msra.mxu0 %v680
        %1798 = vmatprep.subr.bf16.mxu0 %v677
        %1799 = vmatpush1.bf16.msra.mxu0 %v676
        %1800 = vmatprep.subr.bf16.mxu0 %v673
        %1801 = vmatpush1.bf16.msra.mxu0 %v672
        %1802 = vmatprep.subr.bf16.mxu0 %v669
        %1803 = vmatpush1.bf16.msra.mxu0 %v668
        %1804 = vmatprep.subr.bf16.mxu0 %v665
        %1805 = vmatpush1.bf16.msra.mxu0 %v664
        %1806 = vmatprep.subr.bf16.mxu0 0
        %1807 = vmatpush2.bf16.msra.mxu0 0
        %1808 = vmatprep.subr.bf16.mxu0 0
        %1809 = vmatpush2.bf16.msra.mxu0 0
        %1810 = vmatprep.subr.bf16.mxu0 0
        %1811 = vmatpush2.bf16.msra.mxu0 0
        %1812 = vmatprep.subr.bf16.mxu0 0
        %1813 = vmatpush2.bf16.msra.mxu0 0
        %1814 = vmatprep.subr.bf16.mxu0 0
        %1815 = vmatpush2.bf16.msra.mxu0 0
        %1816 = vmatprep.subr.bf16.mxu0 0
        %1817 = vmatpush2.bf16.msra.mxu0 0
        %1818 = vmatprep.subr.bf16.mxu0 0
        %1819 = vmatpush2.bf16.msra.mxu0 0
        %1820 = vmatprep.subr.bf16.mxu0 0
        %1821 = vmatpush2.bf16.msra.mxu0 0
        %1822 = vmatprep.mubr.bf16.mxu0 0
        %1823 = vmatmul.mubr.bf16.gmra.mxu0 %v1748
        %v1824 = vpop.f32.mrf.mxu0
        %v1825 = vadd.f32 0.0, %v1824
        %v1826 = vpop.f32.mrf.mxu0
        %v1827 = vadd.f32 0.0, %v1826
        %v1828 = vpop.f32.mrf.mxu0
        %v1829 = vpop.f32.mrf.mxu0
        %1830 = vdwg.mxu0
        %s1831 = sld [smem:[#allocation2 + $0x11]]
        %s1832 = sld [smem:[#allocation2 + $0x12]]
        %s1833 = sld [smem:[#allocation2 + $0x13]]
        %v1835 = vrot.slane %v1784, 6
        %v1838 = vrot.slane %v1786, 4
        %v1841 = vrot.slane %v1825, 2
        %v1843 = vsel %vm820, %v1504, %v1835
        %v1844 = vsel %vm822, %v1843, %v1838
        %v1845 = vsel %vm824, %v1844, %v1841
        %v1846 = vpack.c.bf16 %v1845, %v1845
        %s1847 = scalar_lea.vmem %s5, 4
        %v1848 = vld [vmem:[%s1847] sm:$0x1]
        %s1849 = scalar_lea.vmem %s6, 8
        %v1850 = vld [vmem:[%s1849] sm:$0x3]
        %1852 = vset.pattern.permute.xlu0 0
        %1853 = vperm.xlu0 %1852, %v1850
        %v1854 = vpop.permute.xlu0 %1853
        %v1857 = vsel %vm834, %v1848, 0
        %v1860 = vsel %vm822, %v1846, 0
        %1862 = vmatprep.subr.bf16.mxu0 0
        %1863 = vmatpush1.bf16.msra.mxu0 0
        %1864 = vmatprep.subr.bf16.mxu0 0
        %1865 = vmatpush1.bf16.msra.mxu0 0
        %1866 = vmatprep.subr.bf16.mxu0 0
        %1867 = vmatpush1.bf16.msra.mxu0 0
        %1868 = vmatprep.subr.bf16.mxu0 0
        %1869 = vmatpush1.bf16.msra.mxu0 0
        %1870 = vmatprep.subr.bf16.mxu0 0
        %1871 = vmatpush1.bf16.msra.mxu0 0
        %1872 = vmatprep.subr.bf16.mxu0 0
        %1873 = vmatpush1.bf16.msra.mxu0 0
        %1874 = vmatprep.subr.bf16.mxu0 0
        %1875 = vmatpush1.bf16.msra.mxu0 0
        %1876 = vmatprep.subr.bf16.mxu0 0
        %1877 = vmatpush1.bf16.msra.mxu0 %v1860
        %1878 = vmatprep.subr.bf16.mxu0 0
        %1879 = vmatpush2.bf16.msra.mxu0 0
        %1880 = vmatprep.subr.bf16.mxu0 0
        %1881 = vmatpush2.bf16.msra.mxu0 0
        %1882 = vmatprep.subr.bf16.mxu0 0
        %1883 = vmatpush2.bf16.msra.mxu0 0
        %1884 = vmatprep.subr.bf16.mxu0 0
        %1885 = vmatpush2.bf16.msra.mxu0 0
        %1886 = vmatprep.subr.bf16.mxu0 0
        %1887 = vmatpush2.bf16.msra.mxu0 0
        %1888 = vmatprep.subr.bf16.mxu0 0
        %1889 = vmatpush2.bf16.msra.mxu0 0
        %1890 = vmatprep.subr.bf16.mxu0 0
        %1891 = vmatpush2.bf16.msra.mxu0 0
        %1892 = vmatprep.subr.bf16.mxu0 0
        %1893 = vmatpush2.bf16.msra.mxu0 0
        %1894 = vmatprep.mubr.bf16.mxu0 0
        %1895 = vmatmul.mubr.bf16.gmra.mxu0 %v1857
        %v1896 = vpop.f32.mrf.mxu0
        %v1897 = vadd.f32 %v1854, %v1896
        %v1898 = vpop.f32.mrf.mxu0
        %v1899 = vpop.f32.mrf.mxu0
        %v1900 = vpop.f32.mrf.mxu0
        %1901 = vdwg.mxu0
        %v1903 = vrot.slane %v1827, 6
        %v1905 = vsel %vm820, %v1504, %v1903
        %v1906 = vpack.c.bf16 %v1905, %v1905
        %s1907 = scalar_lea.vmem %s7, 4
        %v1908 = vld [vmem:[%s1907] sm:$0x1]
        %v1910 = vsel %vm887, %v1908, 0
        %v1913 = vsel %vm820, %v1906, 0
        %1915 = vmatprep.subr.bf16.mxu0 0
        %1916 = vmatpush1.bf16.msra.mxu0 0
        %1917 = vmatprep.subr.bf16.mxu0 0
        %1918 = vmatpush1.bf16.msra.mxu0 0
        %1919 = vmatprep.subr.bf16.mxu0 0
        %1920 = vmatpush1.bf16.msra.mxu0 0
        %1921 = vmatprep.subr.bf16.mxu0 0
        %1922 = vmatpush1.bf16.msra.mxu0 0
        %1923 = vmatprep.subr.bf16.mxu0 0
        %1924 = vmatpush1.bf16.msra.mxu0 0
        %1925 = vmatprep.subr.bf16.mxu0 0
        %1926 = vmatpush1.bf16.msra.mxu0 0
        %1927 = vmatprep.subr.bf16.mxu0 0
        %1928 = vmatpush1.bf16.msra.mxu0 0
        %1929 = vmatprep.subr.bf16.mxu0 0
        %1930 = vmatpush1.bf16.msra.mxu0 %v1913
        %1931 = vmatprep.subr.bf16.mxu0 0
        %1932 = vmatpush2.bf16.msra.mxu0 0
        %1933 = vmatprep.subr.bf16.mxu0 0
        %1934 = vmatpush2.bf16.msra.mxu0 0
        %1935 = vmatprep.subr.bf16.mxu0 0
        %1936 = vmatpush2.bf16.msra.mxu0 0
        %1937 = vmatprep.subr.bf16.mxu0 0
        %1938 = vmatpush2.bf16.msra.mxu0 0
        %1939 = vmatprep.subr.bf16.mxu0 0
        %1940 = vmatpush2.bf16.msra.mxu0 0
        %1941 = vmatprep.subr.bf16.mxu0 0
        %1942 = vmatpush2.bf16.msra.mxu0 0
        %1943 = vmatprep.subr.bf16.mxu0 0
        %1944 = vmatpush2.bf16.msra.mxu0 0
        %1945 = vmatprep.subr.bf16.mxu0 0
        %1946 = vmatpush2.bf16.msra.mxu0 0
        %1947 = vmatprep.mubr.bf16.mxu0 0
        %1948 = vmatmul.mubr.bf16.gmra.mxu0 %v1910
        %v1949 = vpop.f32.mrf.mxu0
        %v1950 = vadd.f32 0.0, %v1949
        %v1951 = vpop.f32.mrf.mxu0
        %v1952 = vpop.f32.mrf.mxu0
        %v1953 = vpop.f32.mrf.mxu0
        %1954 = vdwg.mxu0
        %v1955 = vstv %s1831
        %v1956 = vmul.f32 %v1955, %v1504
        %v1957 = vstv %s1832
        %v1958 = vmul.f32 %v1957, %v1897
        %v1959 = vadd.f32 %v1956, %v1958
        %v1960 = vstv %s1833
        %v1961 = vmul.f32 %v1960, %v1950
        %v1962 = vadd.f32 %v1959, %v1961
        %s1963 = sld [smem:[#allocation2 + $0x1c]]
        %v1964 = vsel %vm820, %v1962, %v1504
        %v1965 = vstv %s1963
        %v1966 = vmul.f32 %v1965, %v1964
        %s1967 = sld [smem:[#allocation2 + $0x15]]
        %s1968 = sld [smem:[#allocation2 + $0x16]]
        %s1969 = sld [smem:[#allocation2 + $0x17]]
        %v1970 = vrot.slane %v1786, 6
        %v1972 = vrot.slane %v1825, 4
        %v1974 = vsel %vm820, %v1743, %v1784
        %v1975 = vsel %vm822, %v1974, %v1970
        %v1976 = vsel %vm824, %v1975, %v1972
        %v1977 = vpack.c.bf16 %v1976, %v1976
        %s1978 = scalar_lea.vmem %s5, 5
        %v1979 = vld [vmem:[%s1978] sm:$0x1]
        %s1980 = scalar_lea.vmem %s6, 10
        %v1981 = vld [vmem:[%s1980] sm:$0x3]
        %1983 = vset.pattern.permute.xlu0 0
        %1984 = vperm.xlu0 %1983, %v1981
        %v1985 = vpop.permute.xlu0 %1984
        %v1988 = vsel %vm834, %v1979, 0
        %v1991 = vsel %vm822, %v1977, 0
        %1993 = vmatprep.subr.bf16.mxu0 0
        %1994 = vmatpush1.bf16.msra.mxu0 0
        %1995 = vmatprep.subr.bf16.mxu0 0
        %1996 = vmatpush1.bf16.msra.mxu0 0
        %1997 = vmatprep.subr.bf16.mxu0 0
        %1998 = vmatpush1.bf16.msra.mxu0 0
        %1999 = vmatprep.subr.bf16.mxu0 0
        %2000 = vmatpush1.bf16.msra.mxu0 0
        %2001 = vmatprep.subr.bf16.mxu0 0
        %2002 = vmatpush1.bf16.msra.mxu0 0
        %2003 = vmatprep.subr.bf16.mxu0 0
        %2004 = vmatpush1.bf16.msra.mxu0 0
        %2005 = vmatprep.subr.bf16.mxu0 0
        %2006 = vmatpush1.bf16.msra.mxu0 0
        %2007 = vmatprep.subr.bf16.mxu0 0
        %2008 = vmatpush1.bf16.msra.mxu0 %v1991
        %2009 = vmatprep.subr.bf16.mxu0 0
        %2010 = vmatpush2.bf16.msra.mxu0 0
        %2011 = vmatprep.subr.bf16.mxu0 0
        %2012 = vmatpush2.bf16.msra.mxu0 0
        %2013 = vmatprep.subr.bf16.mxu0 0
        %2014 = vmatpush2.bf16.msra.mxu0 0
        %2015 = vmatprep.subr.bf16.mxu0 0
        %2016 = vmatpush2.bf16.msra.mxu0 0
        %2017 = vmatprep.subr.bf16.mxu0 0
        %2018 = vmatpush2.bf16.msra.mxu0 0
        %2019 = vmatprep.subr.bf16.mxu0 0
        %2020 = vmatpush2.bf16.msra.mxu0 0
        %2021 = vmatprep.subr.bf16.mxu0 0
        %2022 = vmatpush2.bf16.msra.mxu0 0
        %2023 = vmatprep.subr.bf16.mxu0 0
        %2024 = vmatpush2.bf16.msra.mxu0 0
        %2025 = vmatprep.mubr.bf16.mxu0 0
        %2026 = vmatmul.mubr.bf16.gmra.mxu0 %v1988
        %v2027 = vpop.f32.mrf.mxu0
        %v2028 = vadd.f32 %v1985, %v2027
        %v2029 = vpop.f32.mrf.mxu0
        %v2030 = vpop.f32.mrf.mxu0
        %v2031 = vpop.f32.mrf.mxu0
        %2032 = vdwg.mxu0
        %v2033 = vsel %vm820, %v1743, %v1827
        %v2034 = vpack.c.bf16 %v2033, %v2033
        %s2035 = scalar_lea.vmem %s7, 5
        %v2036 = vld [vmem:[%s2035] sm:$0x1]
        %v2038 = vsel %vm887, %v2036, 0
        %v2041 = vsel %vm820, %v2034, 0
        %2043 = vmatprep.subr.bf16.mxu0 0
        %2044 = vmatpush1.bf16.msra.mxu0 0
        %2045 = vmatprep.subr.bf16.mxu0 0
        %2046 = vmatpush1.bf16.msra.mxu0 0
        %2047 = vmatprep.subr.bf16.mxu0 0
        %2048 = vmatpush1.bf16.msra.mxu0 0
        %2049 = vmatprep.subr.bf16.mxu0 0
        %2050 = vmatpush1.bf16.msra.mxu0 0
        %2051 = vmatprep.subr.bf16.mxu0 0
        %2052 = vmatpush1.bf16.msra.mxu0 0
        %2053 = vmatprep.subr.bf16.mxu0 0
        %2054 = vmatpush1.bf16.msra.mxu0 0
        %2055 = vmatprep.subr.bf16.mxu0 0
        %2056 = vmatpush1.bf16.msra.mxu0 0
        %2057 = vmatprep.subr.bf16.mxu0 0
        %2058 = vmatpush1.bf16.msra.mxu0 %v2041
        %2059 = vmatprep.subr.bf16.mxu0 0
        %2060 = vmatpush2.bf16.msra.mxu0 0
        %2061 = vmatprep.subr.bf16.mxu0 0
        %2062 = vmatpush2.bf16.msra.mxu0 0
        %2063 = vmatprep.subr.bf16.mxu0 0
        %2064 = vmatpush2.bf16.msra.mxu0 0
        %2065 = vmatprep.subr.bf16.mxu0 0
        %2066 = vmatpush2.bf16.msra.mxu0 0
        %2067 = vmatprep.subr.bf16.mxu0 0
        %2068 = vmatpush2.bf16.msra.mxu0 0
        %2069 = vmatprep.subr.bf16.mxu0 0
        %2070 = vmatpush2.bf16.msra.mxu0 0
        %2071 = vmatprep.subr.bf16.mxu0 0
        %2072 = vmatpush2.bf16.msra.mxu0 0
        %2073 = vmatprep.subr.bf16.mxu0 0
        %2074 = vmatpush2.bf16.msra.mxu0 0
        %2075 = vmatprep.mubr.bf16.mxu0 0
        %2076 = vmatmul.mubr.bf16.gmra.mxu0 %v2038
        %v2077 = vpop.f32.mrf.mxu0
        %v2078 = vadd.f32 0.0, %v2077
        %v2079 = vpop.f32.mrf.mxu0
        %v2080 = vpop.f32.mrf.mxu0
        %v2081 = vpop.f32.mrf.mxu0
        %2082 = vdwg.mxu0
        %v2083 = vstv %s1967
        %v2084 = vmul.f32 %v2083, %v1743
        %v2085 = vstv %s1968
        %v2086 = vmul.f32 %v2085, %v2028
        %v2087 = vadd.f32 %v2084, %v2086
        %v2088 = vstv %s1969
        %v2089 = vmul.f32 %v2088, %v2078
        %v2090 = vadd.f32 %v2087, %v2089
        %s2091 = sld [smem:[#allocation2 + $0x1d]]
        %v2092 = vsel %vm820, %v2090, %v1743
        %v2093 = vstv %s2091
        %v2094 = vmul.f32 %v2093, %v2092
        %v2095 = vadd.f32 %v1966, %v2094
        %v2097 = vrot.slane %v2095, 1
        %v2099 = vrot.slane %v2095, 2
        %v2101 = vrot.slane %v2095, 3
        %v2103 = vrot.slane %v2095, 5
        %v2105 = vrot.slane %v2095, 6
        %v2107 = vrot.slane %v2095, 7
        %v2109 = vsel %vm515, %v2095, %v2097
        %v2110 = vsel %vm820, %v2109, %v2099
        %v2111 = vsel %vm961, %v2110, %v2101
        %v2112 = vsel %vm822, %v2111, %v2103
        %v2113 = vsel %vm964, %v2112, %v2105
        %v2114 = vsel %vm824, %v2113, %v2107
        %v2115 = vsel %vm967, %v2114, %v2095
        %s2116 = scalar_lea.vmem %s8, 32
        %v2117 = vld [vmem:[%s2116] sm:$0xf]
        %v2118 = vld [vmem:[%s2116 + $0x4] sm:$0xf]
        %v2119 = vld [vmem:[%s2116 + $0x8] sm:$0xf]
        %v2120 = vld [vmem:[%s2116 + $0xc] sm:$0xf]
        %v2121 = vld [vmem:[%s2116 + $0x10] sm:$0xf]
        %v2122 = vld [vmem:[%s2116 + $0x14] sm:$0xf]
        %v2123 = vld [vmem:[%s2116 + $0x18] sm:$0xf]
        %v2124 = vld [vmem:[%s2116 + $0x1c] sm:$0xf]
        %v2125 = vpack.c.bf16 %v2115, %v2115
        %s2126 = scalar_lea.vmem %s9, 64
        %v2127 = vld [vmem:[%s2126] sm:$0xff]
        %v2128 = vld [vmem:[%s2126 + $0x8] sm:$0xff]
        %v2129 = vld [vmem:[%s2126 + $0x10] sm:$0xff]
        %v2130 = vld [vmem:[%s2126 + $0x18] sm:$0xff]
        %v2131 = vld [vmem:[%s2126 + $0x20] sm:$0xff]
        %v2132 = vld [vmem:[%s2126 + $0x28] sm:$0xff]
        %v2133 = vld [vmem:[%s2126 + $0x30] sm:$0xff]
        %v2134 = vld [vmem:[%s2126 + $0x38] sm:$0xff]
        %2136 = vset.pattern.permute.xlu0 0
        %2137 = vperm.xlu0 %2136, %v2127
        %v2138 = vpop.permute.xlu0 %2137
        %2141 = vset.pattern.permute.xlu0 0
        %2142 = vperm.xlu0 %2141, %v2128
        %v2143 = vpop.permute.xlu0 %2142
        %2146 = vset.pattern.permute.xlu0 0
        %2147 = vperm.xlu0 %2146, %v2129
        %v2148 = vpop.permute.xlu0 %2147
        %2151 = vset.pattern.permute.xlu0 0
        %2152 = vperm.xlu0 %2151, %v2130
        %v2153 = vpop.permute.xlu0 %2152
        %2156 = vset.pattern.permute.xlu0 0
        %2157 = vperm.xlu0 %2156, %v2131
        %v2158 = vpop.permute.xlu0 %2157
        %2161 = vset.pattern.permute.xlu0 0
        %2162 = vperm.xlu0 %2161, %v2132
        %v2163 = vpop.permute.xlu0 %2162
        %2166 = vset.pattern.permute.xlu0 0
        %2167 = vperm.xlu0 %2166, %v2133
        %v2168 = vpop.permute.xlu0 %2167
        %2171 = vset.pattern.permute.xlu0 0
        %2172 = vperm.xlu0 %2171, %v2134
        %v2173 = vpop.permute.xlu0 %2172
        %v2183 = vunpack.c.l.b16 %v2117
        %v2184 = vunpack.c.l.b16 %v2118
        %v2185 = vunpack.c.l.b16 %v2119
        %v2186 = vunpack.c.l.b16 %v2120
        %v2187 = vunpack.c.l.b16 %v2121
        %v2188 = vunpack.c.l.b16 %v2122
        %v2189 = vunpack.c.l.b16 %v2123
        %v2190 = vunpack.c.l.b16 %v2124
        %v2191 = vpack.c.b16 %v2184, %v2183
        %v2192 = vpack.c.b16 %v2186, %v2185
        %v2193 = vpack.c.b16 %v2188, %v2187
        %v2194 = vpack.c.b16 %v2190, %v2189
        %v2196 = vsel %vm834, %v2191, 0
        %v2199 = vsel %vm834, %v2192, 0
        %v2202 = vsel %vm834, %v2193, 0
        %v2205 = vsel %vm834, %v2194, 0
        %v2208 = vsel %vm822, %v2125, 0
        %2210 = vmatprep.subr.bf16.mxu0 0
        %2211 = vmatpush1.bf16.msra.mxu0 0
        %2212 = vmatprep.subr.bf16.mxu0 0
        %2213 = vmatpush1.bf16.msra.mxu0 0
        %2214 = vmatprep.subr.bf16.mxu0 0
        %2215 = vmatpush1.bf16.msra.mxu0 0
        %2216 = vmatprep.subr.bf16.mxu0 0
        %2217 = vmatpush1.bf16.msra.mxu0 0
        %2218 = vmatprep.subr.bf16.mxu0 0
        %2219 = vmatpush1.bf16.msra.mxu0 0
        %2220 = vmatprep.subr.bf16.mxu0 0
        %2221 = vmatpush1.bf16.msra.mxu0 0
        %2222 = vmatprep.subr.bf16.mxu0 0
        %2223 = vmatpush1.bf16.msra.mxu0 0
        %2224 = vmatprep.subr.bf16.mxu0 0
        %2225 = vmatpush1.bf16.msra.mxu0 %v2208
        %2226 = vmatprep.subr.bf16.mxu0 0
        %2227 = vmatpush2.bf16.msra.mxu0 0
        %2228 = vmatprep.subr.bf16.mxu0 0
        %2229 = vmatpush2.bf16.msra.mxu0 0
        %2230 = vmatprep.subr.bf16.mxu0 0
        %2231 = vmatpush2.bf16.msra.mxu0 0
        %2232 = vmatprep.subr.bf16.mxu0 0
        %2233 = vmatpush2.bf16.msra.mxu0 0
        %2234 = vmatprep.subr.bf16.mxu0 0
        %2235 = vmatpush2.bf16.msra.mxu0 0
        %2236 = vmatprep.subr.bf16.mxu0 0
        %2237 = vmatpush2.bf16.msra.mxu0 0
        %2238 = vmatprep.subr.bf16.mxu0 0
        %2239 = vmatpush2.bf16.msra.mxu0 0
        %2240 = vmatprep.subr.bf16.mxu0 0
        %2241 = vmatpush2.bf16.msra.mxu0 0
        %2242 = vmatprep.mubr.bf16.mxu0 0
        %2243 = vmatmul.mubr.bf16.gmra.mxu0 %v2196
        %v2244 = vpop.f32.mrf.mxu0
        %v2245 = vadd.f32 %v2138, %v2244
        %v2246 = vpop.f32.mrf.mxu0
        %v2247 = vpop.f32.mrf.mxu0
        %v2248 = vadd.f32 %v2143, %v2247
        %v2249 = vpop.f32.mrf.mxu0
        %2250 = vmatprep.mubr.bf16.mxu0 0
        %2251 = vmatmul.mubr.bf16.gmra.mxu0 %v2199
        %v2252 = vpop.f32.mrf.mxu0
        %v2253 = vadd.f32 %v2148, %v2252
        %v2254 = vpop.f32.mrf.mxu0
        %v2255 = vpop.f32.mrf.mxu0
        %v2256 = vadd.f32 %v2153, %v2255
        %v2257 = vpop.f32.mrf.mxu0
        %2258 = vmatprep.mubr.bf16.mxu0 0
        %2259 = vmatmul.mubr.bf16.gmra.mxu0 %v2202
        %v2260 = vpop.f32.mrf.mxu0
        %v2261 = vadd.f32 %v2158, %v2260
        %v2262 = vpop.f32.mrf.mxu0
        %v2263 = vpop.f32.mrf.mxu0
        %v2264 = vadd.f32 %v2163, %v2263
        %v2265 = vpop.f32.mrf.mxu0
        %2266 = vmatprep.mubr.bf16.mxu0 0
        %2267 = vmatmul.mubr.bf16.gmra.mxu0 %v2205
        %v2268 = vpop.f32.mrf.mxu0
        %v2269 = vadd.f32 %v2168, %v2268
        %v2270 = vpop.f32.mrf.mxu0
        %v2271 = vpop.f32.mrf.mxu0
        %v2272 = vadd.f32 %v2173, %v2271
        %v2273 = vpop.f32.mrf.mxu0
        %2274 = vdwg.mxu0
        %v2275 = vadd.f32 %v1468, %v2245
        %v2276 = vadd.f32 %v1471, %v2248
        %v2277 = vadd.f32 %v1476, %v2253
        %v2278 = vadd.f32 %v1479, %v2256
        %v2279 = vadd.f32 %v1484, %v2261
        %v2280 = vadd.f32 %v1487, %v2264
        %v2281 = vadd.f32 %v1492, %v2269
        %v2282 = vadd.f32 %v1495, %v2272
        %v2283 = vmax.f32 %v2275, 0.0
        %v2284 = vmax.f32 %v2276, 0.0
        %v2285 = vmax.f32 %v2277, 0.0
        %v2286 = vmax.f32 %v2278, 0.0
        %v2287 = vmax.f32 %v2279, 0.0
        %v2288 = vmax.f32 %v2280, 0.0
        %v2289 = vmax.f32 %v2281, 0.0
        %v2290 = vmax.f32 %v2282, 0.0
        %v2291 = vlaneseq
        %v2292 = vand.u32 %v2291, 127
        %vm2293 = vcmp.lt.s32.totalorder %v2292, 96
        %v2294 = vsel %vm2293, %v2283, 0.0
        %v2295 = vsel %vm2293, %v2284, 0.0
        %v2296 = vsel %vm2293, %v2285, 0.0
        %v2297 = vsel %vm2293, %v2286, 0.0
        %v2298 = vsel %vm2293, %v2287, 0.0
        %v2299 = vsel %vm2293, %v2288, 0.0
        %v2300 = vsel %vm2293, %v2289, 0.0
        %v2301 = vsel %vm2293, %v2290, 0.0
        %2302 = vrot.lane.b32.xlu0 %v2294, 8
        %v2303 = vpop.permute.xlu0 %2302
        %2304 = vrot.lane.b32.xlu0 %v2295, 8
        %v2305 = vpop.permute.xlu0 %2304
        %2306 = vrot.lane.b32.xlu0 %v2296, 8
        %v2307 = vpop.permute.xlu0 %2306
        %2308 = vrot.lane.b32.xlu0 %v2297, 8
        %v2309 = vpop.permute.xlu0 %2308
        %2310 = vrot.lane.b32.xlu0 %v2298, 8
        %v2311 = vpop.permute.xlu0 %2310
        %2312 = vrot.lane.b32.xlu0 %v2299, 8
        %v2313 = vpop.permute.xlu0 %2312
        %2314 = vrot.lane.b32.xlu0 %v2300, 8
        %v2315 = vpop.permute.xlu0 %2314
        %2316 = vrot.lane.b32.xlu0 %v2301, 8
        %v2317 = vpop.permute.xlu0 %2316
        %v2318 = vmax.f32 %v2294, %v2303
        %v2319 = vmax.f32 %v2295, %v2305
        %v2320 = vmax.f32 %v2296, %v2307
        %v2321 = vmax.f32 %v2297, %v2309
        %v2322 = vmax.f32 %v2298, %v2311
        %v2323 = vmax.f32 %v2299, %v2313
        %v2324 = vmax.f32 %v2300, %v2315
        %v2325 = vmax.f32 %v2301, %v2317
        %2326 = vrot.lane.b32.xlu0 %v2318, 16
        %v2327 = vpop.permute.xlu0 %2326
        %2328 = vrot.lane.b32.xlu0 %v2319, 16
        %v2329 = vpop.permute.xlu0 %2328
        %2330 = vrot.lane.b32.xlu0 %v2320, 16
        %v2331 = vpop.permute.xlu0 %2330
        %2332 = vrot.lane.b32.xlu0 %v2321, 16
        %v2333 = vpop.permute.xlu0 %2332
        %2334 = vrot.lane.b32.xlu0 %v2322, 16
        %v2335 = vpop.permute.xlu0 %2334
        %2336 = vrot.lane.b32.xlu0 %v2323, 16
        %v2337 = vpop.permute.xlu0 %2336
        %2338 = vrot.lane.b32.xlu0 %v2324, 16
        %v2339 = vpop.permute.xlu0 %2338
        %2340 = vrot.lane.b32.xlu0 %v2325, 16
        %v2341 = vpop.permute.xlu0 %2340
        %v2342 = vmax.f32 %v2318, %v2327
        %v2343 = vmax.f32 %v2319, %v2329
        %v2344 = vmax.f32 %v2320, %v2331
        %v2345 = vmax.f32 %v2321, %v2333
        %v2346 = vmax.f32 %v2322, %v2335
        %v2347 = vmax.f32 %v2323, %v2337
        %v2348 = vmax.f32 %v2324, %v2339
        %v2349 = vmax.f32 %v2325, %v2341
        %2350 = vrot.lane.b32.xlu0 %v2342, 32
        %v2351 = vpop.permute.xlu0 %2350
        %2352 = vrot.lane.b32.xlu0 %v2343, 32
        %v2353 = vpop.permute.xlu0 %2352
        %2354 = vrot.lane.b32.xlu0 %v2344, 32
        %v2355 = vpop.permute.xlu0 %2354
        %2356 = vrot.lane.b32.xlu0 %v2345, 32
        %v2357 = vpop.permute.xlu0 %2356
        %2358 = vrot.lane.b32.xlu0 %v2346, 32
        %v2359 = vpop.permute.xlu0 %2358
        %2360 = vrot.lane.b32.xlu0 %v2347, 32
        %v2361 = vpop.permute.xlu0 %2360
        %2362 = vrot.lane.b32.xlu0 %v2348, 32
        %v2363 = vpop.permute.xlu0 %2362
        %2364 = vrot.lane.b32.xlu0 %v2349, 32
        %v2365 = vpop.permute.xlu0 %2364
        %v2366 = vmax.f32 %v2342, %v2351
        %v2367 = vmax.f32 %v2343, %v2353
        %v2368 = vmax.f32 %v2344, %v2355
        %v2369 = vmax.f32 %v2345, %v2357
        %v2370 = vmax.f32 %v2346, %v2359
        %v2371 = vmax.f32 %v2347, %v2361
        %v2372 = vmax.f32 %v2348, %v2363
        %v2373 = vmax.f32 %v2349, %v2365
        %2374 = vrot.lane.b32.xlu0 %v2366, 64
        %v2375 = vpop.permute.xlu0 %2374
        %2376 = vrot.lane.b32.xlu0 %v2367, 64
        %v2377 = vpop.permute.xlu0 %2376
        %2378 = vrot.lane.b32.xlu0 %v2368, 64
        %v2379 = vpop.permute.xlu0 %2378
        %2380 = vrot.lane.b32.xlu0 %v2369, 64
        %v2381 = vpop.permute.xlu0 %2380
        %2382 = vrot.lane.b32.xlu0 %v2370, 64
        %v2383 = vpop.permute.xlu0 %2382
        %2384 = vrot.lane.b32.xlu0 %v2371, 64
        %v2385 = vpop.permute.xlu0 %2384
        %2386 = vrot.lane.b32.xlu0 %v2372, 64
        %v2387 = vpop.permute.xlu0 %2386
        %2388 = vrot.lane.b32.xlu0 %v2373, 64
        %v2389 = vpop.permute.xlu0 %2388
        %v2390 = vmax.f32 %v2366, %v2375
        %v2391 = vmax.f32 %v2367, %v2377
        %v2392 = vmax.f32 %v2368, %v2379
        %v2393 = vmax.f32 %v2369, %v2381
        %v2394 = vmax.f32 %v2370, %v2383
        %v2395 = vmax.f32 %v2371, %v2385
        %v2396 = vmax.f32 %v2372, %v2387
        %v2397 = vmax.f32 %v2373, %v2389
        %v2398 = vld [vmem:[%s10] sm:$0xf]
        %v2399 = vld [vmem:[%s10 + $0x4] sm:$0xf]
        %v2400 = vld [vmem:[%s10 + $0x8] sm:$0xf]
        %v2401 = vld [vmem:[%s10 + $0xc] sm:$0xf]
        %v2402 = vld [vmem:[%s10 + $0x10] sm:$0xf]
        %v2403 = vld [vmem:[%s10 + $0x14] sm:$0xf]
        %v2404 = vld [vmem:[%s10 + $0x18] sm:$0xf]
        %v2405 = vld [vmem:[%s10 + $0x1c] sm:$0xf]
        %v2406 = vld [vmem:[%s10 + $0x20] sm:$0xf]
        %v2407 = vld [vmem:[%s10 + $0x24] sm:$0xf]
        %v2408 = vld [vmem:[%s10 + $0x28] sm:$0xf]
        %v2409 = vld [vmem:[%s10 + $0x2c] sm:$0xf]
        %v2410 = vld [vmem:[%s10 + $0x30] sm:$0xf]
        %v2411 = vld [vmem:[%s10 + $0x34] sm:$0xf]
        %v2412 = vld [vmem:[%s10 + $0x38] sm:$0xf]
        %v2413 = vld [vmem:[%s10 + $0x3c] sm:$0xf]
        %v2414 = vpack.c.bf16 %v2391, %v2390
        %v2415 = vpack.c.bf16 %v2393, %v2392
        %v2416 = vpack.c.bf16 %v2395, %v2394
        %v2417 = vpack.c.bf16 %v2397, %v2396
        %v2418 = vld [vmem:[%s11] sm:$0xff]
        %v2419 = vld [vmem:[%s11 + $0x8] sm:$0xff]
        %v2420 = vld [vmem:[%s11 + $0x10] sm:$0xff]
        %v2421 = vld [vmem:[%s11 + $0x18] sm:$0xff]
        %v2422 = vld [vmem:[%s11 + $0x20] sm:$0xff]
        %v2423 = vld [vmem:[%s11 + $0x28] sm:$0xff]
        %v2424 = vld [vmem:[%s11 + $0x30] sm:$0xff]
        %v2425 = vld [vmem:[%s11 + $0x38] sm:$0xff]
        %v2426 = vld [vmem:[%s11 + $0x40] sm:$0xff]
        %v2427 = vld [vmem:[%s11 + $0x48] sm:$0xff]
        %v2428 = vld [vmem:[%s11 + $0x50] sm:$0xff]
        %v2429 = vld [vmem:[%s11 + $0x58] sm:$0xff]
        %v2430 = vld [vmem:[%s11 + $0x60] sm:$0xff]
        %v2431 = vld [vmem:[%s11 + $0x68] sm:$0xff]
        %v2432 = vld [vmem:[%s11 + $0x70] sm:$0xff]
        %v2433 = vld [vmem:[%s11 + $0x78] sm:$0xff]
        %2435 = vset.pattern.permute.xlu0 0
        %2436 = vperm.xlu0 %2435, %v2418
        %v2437 = vpop.permute.xlu0 %2436
        %2440 = vset.pattern.permute.xlu0 0
        %2441 = vperm.xlu0 %2440, %v2419
        %v2442 = vpop.permute.xlu0 %2441
        %2445 = vset.pattern.permute.xlu0 0
        %2446 = vperm.xlu0 %2445, %v2420
        %v2447 = vpop.permute.xlu0 %2446
        %2450 = vset.pattern.permute.xlu0 0
        %2451 = vperm.xlu0 %2450, %v2421
        %v2452 = vpop.permute.xlu0 %2451
        %2455 = vset.pattern.permute.xlu0 0
        %2456 = vperm.xlu0 %2455, %v2422
        %v2457 = vpop.permute.xlu0 %2456
        %2460 = vset.pattern.permute.xlu0 0
        %2461 = vperm.xlu0 %2460, %v2423
        %v2462 = vpop.permute.xlu0 %2461
        %2465 = vset.pattern.permute.xlu0 0
        %2466 = vperm.xlu0 %2465, %v2424
        %v2467 = vpop.permute.xlu0 %2466
        %2470 = vset.pattern.permute.xlu0 0
        %2471 = vperm.xlu0 %2470, %v2425
        %v2472 = vpop.permute.xlu0 %2471
        %2475 = vset.pattern.permute.xlu0 0
        %2476 = vperm.xlu0 %2475, %v2426
        %v2477 = vpop.permute.xlu0 %2476
        %2480 = vset.pattern.permute.xlu0 0
        %2481 = vperm.xlu0 %2480, %v2427
        %v2482 = vpop.permute.xlu0 %2481
        %2485 = vset.pattern.permute.xlu0 0
        %2486 = vperm.xlu0 %2485, %v2428
        %v2487 = vpop.permute.xlu0 %2486
        %2490 = vset.pattern.permute.xlu0 0
        %2491 = vperm.xlu0 %2490, %v2429
        %v2492 = vpop.permute.xlu0 %2491
        %2495 = vset.pattern.permute.xlu0 0
        %2496 = vperm.xlu0 %2495, %v2430
        %v2497 = vpop.permute.xlu0 %2496
        %2500 = vset.pattern.permute.xlu0 0
        %2501 = vperm.xlu0 %2500, %v2431
        %v2502 = vpop.permute.xlu0 %2501
        %2505 = vset.pattern.permute.xlu0 0
        %2506 = vperm.xlu0 %2505, %v2432
        %v2507 = vpop.permute.xlu0 %2506
        %2510 = vset.pattern.permute.xlu0 0
        %2511 = vperm.xlu0 %2510, %v2433
        %v2512 = vpop.permute.xlu0 %2511
        %v2530 = vunpack.c.l.b16 %v2398
        %v2531 = vunpack.c.l.b16 %v2399
        %v2532 = vunpack.c.l.b16 %v2400
        %v2533 = vunpack.c.l.b16 %v2401
        %v2534 = vunpack.c.l.b16 %v2402
        %v2535 = vunpack.c.l.b16 %v2403
        %v2536 = vunpack.c.l.b16 %v2404
        %v2537 = vunpack.c.l.b16 %v2405
        %v2538 = vunpack.c.l.b16 %v2406
        %v2539 = vunpack.c.l.b16 %v2407
        %v2540 = vunpack.c.l.b16 %v2408
        %v2541 = vunpack.c.l.b16 %v2409
        %v2542 = vunpack.c.l.b16 %v2410
        %v2543 = vunpack.c.l.b16 %v2411
        %v2544 = vunpack.c.l.b16 %v2412
        %v2545 = vunpack.c.l.b16 %v2413
        %v2546 = vpack.c.b16 %v2531, %v2530
        %v2547 = vpack.c.b16 %v2533, %v2532
        %v2548 = vpack.c.b16 %v2535, %v2534
        %v2549 = vpack.c.b16 %v2537, %v2536
        %v2550 = vpack.c.b16 %v2539, %v2538
        %v2551 = vpack.c.b16 %v2541, %v2540
        %v2552 = vpack.c.b16 %v2543, %v2542
        %v2553 = vpack.c.b16 %v2545, %v2544
        %vm2554 = vcmask 523264
        %v2556 = vsel %vm2554, %v2546, 0
        %v2559 = vsel %vm2554, %v2547, 0
        %v2562 = vsel %vm2554, %v2548, 0
        %v2565 = vsel %vm2554, %v2549, 0
        %v2568 = vsel %vm2554, %v2550, 0
        %v2571 = vsel %vm2554, %v2551, 0
        %v2574 = vsel %vm2554, %v2552, 0
        %v2577 = vsel %vm2554, %v2553, 0
        %2579 = vmatprep.subr.bf16.mxu0 0
        %2580 = vmatpush1.bf16.msra.mxu0 0
        %2581 = vmatprep.subr.bf16.mxu0 0
        %2582 = vmatpush1.bf16.msra.mxu0 0
        %2583 = vmatprep.subr.bf16.mxu0 0
        %2584 = vmatpush1.bf16.msra.mxu0 0
        %2585 = vmatprep.subr.bf16.mxu0 0
        %2586 = vmatpush1.bf16.msra.mxu0 0
        %2587 = vmatprep.subr.bf16.mxu0 0
        %2588 = vmatpush1.bf16.msra.mxu0 %v2417
        %2589 = vmatprep.subr.bf16.mxu0 0
        %2590 = vmatpush1.bf16.msra.mxu0 %v2416
        %2591 = vmatprep.subr.bf16.mxu0 0
        %2592 = vmatpush1.bf16.msra.mxu0 %v2415
        %2593 = vmatprep.subr.bf16.mxu0 0
        %2594 = vmatpush1.bf16.msra.mxu0 %v2414
        %2595 = vmatprep.subr.bf16.mxu0 0
        %2596 = vmatpush2.bf16.msra.mxu0 0
        %2597 = vmatprep.subr.bf16.mxu0 0
        %2598 = vmatpush2.bf16.msra.mxu0 0
        %2599 = vmatprep.subr.bf16.mxu0 0
        %2600 = vmatpush2.bf16.msra.mxu0 0
        %2601 = vmatprep.subr.bf16.mxu0 0
        %2602 = vmatpush2.bf16.msra.mxu0 0
        %2603 = vmatprep.subr.bf16.mxu0 0
        %2604 = vmatpush2.bf16.msra.mxu0 0
        %2605 = vmatprep.subr.bf16.mxu0 0
        %2606 = vmatpush2.bf16.msra.mxu0 0
        %2607 = vmatprep.subr.bf16.mxu0 0
        %2608 = vmatpush2.bf16.msra.mxu0 0
        %2609 = vmatprep.subr.bf16.mxu0 0
        %2610 = vmatpush2.bf16.msra.mxu0 0
        %2611 = vmatprep.mubr.bf16.mxu0 0
        %2612 = vmatmul.mubr.bf16.gmra.mxu0 %v2556
        %v2613 = vpop.f32.mrf.mxu0
        %v2614 = vadd.f32 %v2437, %v2613
        %v2615 = vpop.f32.mrf.mxu0
        %v2616 = vpop.f32.mrf.mxu0
        %v2617 = vadd.f32 %v2442, %v2616
        %v2618 = vpop.f32.mrf.mxu0
        %2619 = vmatprep.mubr.bf16.mxu0 0
        %2620 = vmatmul.mubr.bf16.gmra.mxu0 %v2559
        %v2621 = vpop.f32.mrf.mxu0
        %v2622 = vadd.f32 %v2447, %v2621
        %v2623 = vpop.f32.mrf.mxu0
        %v2624 = vpop.f32.mrf.mxu0
        %v2625 = vadd.f32 %v2452, %v2624
        %v2626 = vpop.f32.mrf.mxu0
        %2627 = vmatprep.mubr.bf16.mxu0 0
        %2628 = vmatmul.mubr.bf16.gmra.mxu0 %v2562
        %v2629 = vpop.f32.mrf.mxu0
        %v2630 = vadd.f32 %v2457, %v2629
        %v2631 = vpop.f32.mrf.mxu0
        %v2632 = vpop.f32.mrf.mxu0
        %v2633 = vadd.f32 %v2462, %v2632
        %v2634 = vpop.f32.mrf.mxu0
        %2635 = vmatprep.mubr.bf16.mxu0 0
        %2636 = vmatmul.mubr.bf16.gmra.mxu0 %v2565
        %v2637 = vpop.f32.mrf.mxu0
        %v2638 = vadd.f32 %v2467, %v2637
        %v2639 = vpop.f32.mrf.mxu0
        %v2640 = vpop.f32.mrf.mxu0
        %v2641 = vadd.f32 %v2472, %v2640
        %v2642 = vpop.f32.mrf.mxu0
        %2643 = vmatprep.mubr.bf16.mxu0 0
        %2644 = vmatmul.mubr.bf16.gmra.mxu0 %v2568
        %v2645 = vpop.f32.mrf.mxu0
        %v2646 = vadd.f32 %v2477, %v2645
        %v2647 = vpop.f32.mrf.mxu0
        %v2648 = vpop.f32.mrf.mxu0
        %v2649 = vadd.f32 %v2482, %v2648
        %v2650 = vpop.f32.mrf.mxu0
        %2651 = vmatprep.mubr.bf16.mxu0 0
        %2652 = vmatmul.mubr.bf16.gmra.mxu0 %v2571
        %v2653 = vpop.f32.mrf.mxu0
        %v2654 = vadd.f32 %v2487, %v2653
        %v2655 = vpop.f32.mrf.mxu0
        %v2656 = vpop.f32.mrf.mxu0
        %v2657 = vadd.f32 %v2492, %v2656
        %v2658 = vpop.f32.mrf.mxu0
        %2659 = vmatprep.mubr.bf16.mxu0 0
        %2660 = vmatmul.mubr.bf16.gmra.mxu0 %v2574
        %v2661 = vpop.f32.mrf.mxu0
        %v2662 = vadd.f32 %v2497, %v2661
        %v2663 = vpop.f32.mrf.mxu0
        %v2664 = vpop.f32.mrf.mxu0
        %v2665 = vadd.f32 %v2502, %v2664
        %v2666 = vpop.f32.mrf.mxu0
        %2667 = vmatprep.mubr.bf16.mxu0 0
        %2668 = vmatmul.mubr.bf16.gmra.mxu0 %v2577
        %v2669 = vpop.f32.mrf.mxu0
        %v2670 = vadd.f32 %v2507, %v2669
        %v2671 = vpop.f32.mrf.mxu0
        %v2672 = vpop.f32.mrf.mxu0
        %v2673 = vadd.f32 %v2512, %v2672
        %v2674 = vpop.f32.mrf.mxu0
        %2675 = vdwg.mxu0
        %v2676 = vmax.f32 %v2614, 0.0
        %v2677 = vmax.f32 %v2617, 0.0
        %v2678 = vmax.f32 %v2622, 0.0
        %v2679 = vmax.f32 %v2625, 0.0
        %v2680 = vmax.f32 %v2630, 0.0
        %v2681 = vmax.f32 %v2633, 0.0
        %v2682 = vmax.f32 %v2638, 0.0
        %v2683 = vmax.f32 %v2641, 0.0
        %v2684 = vmax.f32 %v2646, 0.0
        %v2685 = vmax.f32 %v2649, 0.0
        %v2686 = vmax.f32 %v2654, 0.0
        %v2687 = vmax.f32 %v2657, 0.0
        %v2688 = vmax.f32 %v2662, 0.0
        %v2689 = vmax.f32 %v2665, 0.0
        %v2690 = vmax.f32 %v2670, 0.0
        %v2691 = vmax.f32 %v2673, 0.0
        %v2692 = vld [vmem:[%s12] sm:$0xf]
        %v2693 = vld [vmem:[%s12 + $0x4] sm:$0xf]
        %v2694 = vpack.c.bf16 %v2677, %v2676
        %v2695 = vpack.c.bf16 %v2679, %v2678
        %v2696 = vpack.c.bf16 %v2681, %v2680
        %v2697 = vpack.c.bf16 %v2683, %v2682
        %v2698 = vpack.c.bf16 %v2685, %v2684
        %v2699 = vpack.c.bf16 %v2687, %v2686
        %v2700 = vpack.c.bf16 %v2689, %v2688
        %v2701 = vpack.c.bf16 %v2691, %v2690
        %v2702 = vld [vmem:[%s13] sm:$0xff]
        %v2703 = vld [vmem:[%s13 + $0x8] sm:$0xff]
        %2705 = vset.pattern.permute.xlu0 0
        %2706 = vperm.xlu0 %2705, %v2702
        %v2707 = vpop.permute.xlu0 %2706
        %2710 = vset.pattern.permute.xlu0 0
        %2711 = vperm.xlu0 %2710, %v2703
        %v2712 = vpop.permute.xlu0 %2711
        %v2716 = vunpack.c.l.b16 %v2692
        %v2717 = vunpack.c.l.b16 %v2693
        %v2718 = vpack.c.b16 %v2717, %v2716
        %2720 = vmatprep.subr.bf16.mxu0 0
        %2721 = vmatpush1.bf16.msra.mxu0 %v2701
        %2722 = vmatprep.subr.bf16.mxu0 0
        %2723 = vmatpush1.bf16.msra.mxu0 %v2700
        %2724 = vmatprep.subr.bf16.mxu0 0
        %2725 = vmatpush1.bf16.msra.mxu0 %v2699
        %2726 = vmatprep.subr.bf16.mxu0 0
        %2727 = vmatpush1.bf16.msra.mxu0 %v2698
        %2728 = vmatprep.subr.bf16.mxu0 0
        %2729 = vmatpush1.bf16.msra.mxu0 %v2697
        %2730 = vmatprep.subr.bf16.mxu0 0
        %2731 = vmatpush1.bf16.msra.mxu0 %v2696
        %2732 = vmatprep.subr.bf16.mxu0 0
        %2733 = vmatpush1.bf16.msra.mxu0 %v2695
        %2734 = vmatprep.subr.bf16.mxu0 0
        %2735 = vmatpush1.bf16.msra.mxu0 %v2694
        %2736 = vmatprep.subr.bf16.mxu0 0
        %2737 = vmatpush2.bf16.msra.mxu0 0
        %2738 = vmatprep.subr.bf16.mxu0 0
        %2739 = vmatpush2.bf16.msra.mxu0 0
        %2740 = vmatprep.subr.bf16.mxu0 0
        %2741 = vmatpush2.bf16.msra.mxu0 0
        %2742 = vmatprep.subr.bf16.mxu0 0
        %2743 = vmatpush2.bf16.msra.mxu0 0
        %2744 = vmatprep.subr.bf16.mxu0 0
        %2745 = vmatpush2.bf16.msra.mxu0 0
        %2746 = vmatprep.subr.bf16.mxu0 0
        %2747 = vmatpush2.bf16.msra.mxu0 0
        %2748 = vmatprep.subr.bf16.mxu0 0
        %2749 = vmatpush2.bf16.msra.mxu0 0
        %2750 = vmatprep.subr.bf16.mxu0 0
        %2751 = vmatpush2.bf16.msra.mxu0 0
        %2752 = vmatprep.mubr.bf16.mxu0 0
        %2753 = vmatmul.mubr.bf16.gmra.mxu0 %v2718
        %v2754 = vpop.f32.mrf.mxu0
        %v2755 = vadd.f32 %v2707, %v2754
        %v2756 = vpop.f32.mrf.mxu0
        %v2757 = vpop.f32.mrf.mxu0
        %v2758 = vadd.f32 %v2712, %v2757
        %v2759 = vpop.f32.mrf.mxu0
        %2760 = vdwg.mxu0
        %2761 = vst [vmem:[%s475] sm:$0xff] %v2755
        %2762 = vst [vmem:[%s475 + $0x8] sm:$0xff] %v2758
        %p2763 = scmp.lt.s32.totalorder %s26, 1
        %s2764 = scalar_select %p2763, %s26, 1
        %s2765 = smul.addr %s2764, 2
        %s2766 = smul.addr %s2765, 8
        %s2767 = scalar_lea.vmem %s14, %s2766
        // Predicated region
        $region81: #{_lambda_.1} parent=75 // pred_check
          %p2768 = pneg %p343
        $region82: #{_lambda_.1} parent=75 // pred_check_branch
          %2770 = sbr.rel (%p2768) target = $region84
        $region83: #{_lambda_.1} parent=75 // pred_region
          _
        $region84: #{_lambda_.1} parent=75 // pred_fallthru
          _
      $region76: #{_lambda_.1} parent=5 // pred_fallthru
        _
      %p2771 = scmp.le.s32.totalorder 2, %s21
      // Predicated region
      $region85: #{_lambda_.1} parent=5 // pred_check
        %p2772 = pneg %p2771
      $region86: #{_lambda_.1} parent=5 // pred_check_branch
        %2774 = sbr.rel (%p2772) target = $region88
      $region87: #{_lambda_.1} parent=5 // pred_region
        %s2775 = ssub.s32 %s21, 2
        // Predicated region
        $region89: #{_lambda_.1} parent=87 // pred_check
          %p2776 = pneg %p349
        $region90: #{_lambda_.1} parent=87 // pred_check_branch
          %2778 = sbr.rel (%p2776) target = $region92
        $region91: #{_lambda_.1} parent=87 // pred_region
          %p2779 = scmp.lt.s32.totalorder %s27, 1
          %s2780 = scalar_select %p2779, %s27, 1
          %s2781 = smul.addr %s2780, 2
          %s2782 = smul.addr %s2781, 8
          %s2783 = scalar_lea.vmem %s14, %s2782
        $region92: #{_lambda_.1} parent=87 // pred_fallthru
          _
      $region88: #{_lambda_.1} parent=5 // pred_fallthru
        _
    $region6: #{_lambda_.1} parent=1 // loop_footer
      %s25 = sadd.s32 1, %s21
    $region7: #{_lambda_.1} parent=1 // loop_footer_branch
      %20 = sbr.rel target = $region3
    $region8: #{_lambda_.1} parent=1 // loop_exit
      _
    %2784 = vsyncpa [#allocation3], 1
    %s2785 = scalar_lea.sflag [#allocation3], 1
    %2786 = vsyncpa %s2785, 1

</llo_original>
